<compile_context>
chip_gen: v7x
topology: tpu7x:2x2x1
jax: 0.10.0
libtpu: 0.0.40
codegen_flags: <defaults>
</compile_context>

<pallas_src>
import functools

import jax
import jax.numpy as jnp
from jax.experimental import pallas as pl
from jax.experimental.pallas import tpu as pltpu

_NEG = -1e30  # bias for padded vocab columns (never wins the argmax)


def _round_up(x, m):
    return ((x + m - 1) // m) * m


# --------------------------------- kernel -----------------------------------

def seq2seq_kernel(tf_ref,                             # SMEM scalar prefetch: (L-1,) i32
                   src_ref, trg_ref,                   # (S*Bp,Ip), (L,Bp,Vp)
                   w_enc_ih_ref, w_enc_hh_ref, b_enc_ref,   # (Ip,4Hp), (Hp,4Hp), (1,4Hp)
                   w_dec_ref, b_dec_ref,               # (Vp+Hp,4Hp), (1,4Hp)
                   w_out_ref, b_out_ref,               # (Hp,Vp), (1,Vp)
                   out_ref,                            # (L,Bp,Vp)
                   xg_sc, z_dec_sc,                    # VMEM scratch
                   *, S, L, Hp, Ip, Vp, Bp):
    f32 = jnp.float32

    # Hoist weights / broadcast biases once (outside the time loops).
    w_enc_hh = w_enc_hh_ref[...]
    w_dec = w_dec_ref[...]
    w_out = w_out_ref[...]
    b_dec = jnp.broadcast_to(b_dec_ref[...], (Bp, 4 * Hp))
    b_out = jnp.broadcast_to(b_out_ref[...], (Bp, Vp))

    # ---- encoder input transform: ONE big MXU matmul over all timesteps ----
    # Bias folded in here so the recurrence only needs h @ W_hh.
    xg_sc[...] = (jnp.dot(src_ref[...], w_enc_ih_ref[...],
                          preferred_element_type=f32) + b_enc_ref[...])

    def gates_to_hc(gates, c):
        # PyTorch gate order i, f, g, o; every Hp slice is 128-lane aligned.
        i = jax.nn.sigmoid(gates[:, 0 * Hp:1 * Hp])
        f = jax.nn.sigmoid(gates[:, 1 * Hp:2 * Hp])
        g = jnp.tanh(gates[:, 2 * Hp:3 * Hp])
        o = jax.nn.sigmoid(gates[:, 3 * Hp:4 * Hp])
        c_new = f * c + i * g
        h_new = o * jnp.tanh(c_new)
        return h_new, c_new

    # ------------------------ encoder recurrence ------------------------
    def enc_step(t, carry):
        h, c = carry
        off = pl.multiple_of(t * Bp, Bp)
        gates = xg_sc[pl.ds(off, Bp), :] + jnp.dot(h, w_enc_hh,
                                                   preferred_element_type=f32)
        return gates_to_hc(gates, c)

    h0 = jnp.zeros((Bp, Hp), f32)
    c0 = jnp.zeros((Bp, Hp), f32)
    h, c = jax.lax.fori_loop(0, S, enc_step, (h0, c0), unroll=True)

    # ------------------- decoder: fused teacher-forced loop -------------------
    out_ref[0] = jnp.zeros((Bp, Vp), f32)        # outputs[0] stays zero (torch.zeros)
    iota = jax.lax.broadcasted_iota(jnp.int32, (Bp, Vp), 1)

    def dec_step(t, carry):
        h, c, inp = carry
        z_dec_sc[:, :Vp] = inp                   # stage [input_t, h] -> one fused matmul
        z_dec_sc[:, Vp:] = h
        gates = jnp.dot(z_dec_sc[...], w_dec, preferred_element_type=f32) + b_dec
        h_new, c_new = gates_to_hc(gates, c)
        logits = jnp.dot(h_new, w_out, preferred_element_type=f32) + b_out
        out_ref[t] = logits                      # lane-dense VMEM store

        # top1 = one_hot(argmax(logits, axis=1)) with first-max tie-breaking.
        mx = jnp.max(logits, axis=1, keepdims=True)
        idx = jnp.min(jnp.where(logits == mx, iota, Vp), axis=1, keepdims=True)
        top1 = (iota == idx).astype(f32)

        tf = tf_ref[t - 1]                       # pre-drawn coin flip for step t
        inp_new = jnp.where(tf == 1, trg_ref[t], top1)
        return h_new, c_new, inp_new

    jax.lax.fori_loop(1, L, dec_step, (h, c, trg_ref[0]), unroll=True)


# ----------------------------- param packing --------------------------------

def _pack_lstm_split(w_ih, w_hh, b_ih, b_hh, in_pad, h_pad):
    """PyTorch LSTM params -> padded (in_pad,4*h_pad) / (h_pad,4*h_pad) weights
    with biases pre-summed.  Each gate block is padded to h_pad so gate slices
    are 128-lane aligned; padded columns are exactly zero -> padded hidden
    state stays exactly zero through the recurrence."""
    four_h, in_dim = w_ih.shape
    H = four_h // 4
    b_sum = b_ih + b_hh
    w_i = jnp.zeros((in_pad, 4 * h_pad), jnp.float32)
    w_h = jnp.zeros((h_pad, 4 * h_pad), jnp.float32)
    b = jnp.zeros((1, 4 * h_pad), jnp.float32)
    for g in range(4):
        w_i = w_i.at[:in_dim, g * h_pad:g * h_pad + H].set(w_ih[g * H:(g + 1) * H].T)
        w_h = w_h.at[:H, g * h_pad:g * h_pad + H].set(w_hh[g * H:(g + 1) * H].T)
        b = b.at[0, g * h_pad:g * h_pad + H].set(b_sum[g * H:(g + 1) * H])
    return w_i, w_h, b


def _pack_lstm_stacked(w_ih, w_hh, b_ih, b_hh, in_pad, h_pad):
    """Stacked [W_ih; W_hh] for the decoder's fused [x, h] matmul."""
    w_i, w_h, b = _pack_lstm_split(w_ih, w_hh, b_ih, b_hh, in_pad, h_pad)
    return jnp.concatenate([w_i, w_h], axis=0), b


def _pack_proj(w_out, b_out, h_pad, v_pad):
    """PyTorch Linear (V, H) -> padded (Hp, Vp); padded vocab columns get a
    huge negative bias so the in-kernel argmax never picks them."""
    V, H = w_out.shape
    w = jnp.zeros((h_pad, v_pad), jnp.float32).at[:H, :V].set(w_out.T)
    b = jnp.full((1, v_pad), _NEG, jnp.float32).at[0, :V].set(b_out)
    return w, b


# ------------------------------- forward glue --------------------------------

def seq2seq_forward(src, trg, params, tf_flags):
    S, B, In = src.shape
    L, _, V = trg.shape
    H = params["enc_w_hh"].shape[1]

    lane, sub = 128, 8
    Ip = _round_up(In, lane)
    Hp = _round_up(H, lane)
    Vp = _round_up(V, lane)
    Bp = _round_up(B, sub)

    w_enc_ih, w_enc_hh, b_enc = _pack_lstm_split(
        params["enc_w_ih"], params["enc_w_hh"],
        params["enc_b_ih"], params["enc_b_hh"], Ip, Hp)
    w_dec, b_dec = _pack_lstm_stacked(
        params["dec_w_ih"], params["dec_w_hh"],
        params["dec_b_ih"], params["dec_b_hh"], Vp, Hp)
    w_out, b_out = _pack_proj(params["dec_w_out"], params["dec_b_out"], Hp, Vp)

    # Time-major padded inputs; src is pre-flattened to (S*Bp, Ip) so the
    # encoder input transform is a single lane/sublane-dense matmul.
    src_p = jnp.pad(src, ((0, 0), (0, Bp - B), (0, Ip - In))).reshape(S * Bp, Ip)
    trg_p = jnp.pad(trg, ((0, 0), (0, Bp - B), (0, Vp - V)))

    kernel = functools.partial(seq2seq_kernel,
                               S=S, L=L, Hp=Hp, Ip=Ip, Vp=Vp, Bp=Bp)

    out_p = pl.pallas_call(
        kernel,
        out_shape=jax.ShapeDtypeStruct((L, Bp, Vp), jnp.float32),
        grid_spec=pltpu.PrefetchScalarGridSpec(
            num_scalar_prefetch=1,
            grid=(1,),
            in_specs=[
                pl.BlockSpec((S * Bp, Ip), lambda i, tf: (0, 0)),
                pl.BlockSpec((L, Bp, Vp), lambda i, tf: (0, 0, 0)),
                pl.BlockSpec((Ip, 4 * Hp), lambda i, tf: (0, 0)),
                pl.BlockSpec((Hp, 4 * Hp), lambda i, tf: (0, 0)),
                pl.BlockSpec((1, 4 * Hp), lambda i, tf: (0, 0)),
                pl.BlockSpec((Vp + Hp, 4 * Hp), lambda i, tf: (0, 0)),
                pl.BlockSpec((1, 4 * Hp), lambda i, tf: (0, 0)),
                pl.BlockSpec((Hp, Vp), lambda i, tf: (0, 0)),
                pl.BlockSpec((1, Vp), lambda i, tf: (0, 0)),
            ],
            out_specs=pl.BlockSpec((L, Bp, Vp), lambda i, tf: (0, 0, 0)),
            scratch_shapes=[pltpu.VMEM((S * Bp, 4 * Hp), jnp.float32),
                            pltpu.VMEM((Bp, Vp + Hp), jnp.float32)]),
        compiler_params=pltpu.CompilerParams(
            dimension_semantics=("arbitrary",)),
    )(tf_flags, src_p, trg_p, w_enc_ih, w_enc_hh, b_enc,
      w_dec, b_dec, w_out, b_out)

    return out_p[:, :B, :V]


# --------------------------- pure-JAX reference ------------------------------

def seq2seq_reference(src, trg, params, tf_flags):
    P = jax.lax.Precision.HIGHEST
    S, B, _ = src.shape
    L, _, V = trg.shape
    H = params["enc_w_hh"].shape[1]

    def lstm_step(x, h, c, w_ih, w_hh, b_ih, b_hh):
        gates = (jnp.dot(x, w_ih.T, precision=P)
                 + jnp.dot(h, w_hh.T, precision=P) + b_ih + b_hh)
        i, f, g, o = jnp.split(gates, 4, axis=1)
        c_new = jax.nn.sigmoid(f) * c + jax.nn.sigmoid(i) * jnp.tanh(g)
        h_new = jax.nn.sigmoid(o) * jnp.tanh(c_new)
        return h_new, c_new

    h = jnp.zeros((B, H), jnp.float32)
    c = jnp.zeros((B, H), jnp.float32)
    for t in range(S):
        h, c = lstm_step(src[t], h, c, params["enc_w_ih"], params["enc_w_hh"],
                         params["enc_b_ih"], params["enc_b_hh"])

    outs = [jnp.zeros((B, V), jnp.float32)]
    inp = trg[0]
    for t in range(1, L):
        h, c = lstm_step(inp, h, c, params["dec_w_ih"], params["dec_w_hh"],
                         params["dec_b_ih"], params["dec_b_hh"])
        logits = jnp.dot(h, params["dec_w_out"].T, precision=P) + params["dec_b_out"]
        outs.append(logits)
        top1 = jax.nn.one_hot(jnp.argmax(logits, axis=1), V, dtype=jnp.float32)
        inp = jnp.where(tf_flags[t - 1] == 1, trg[t], top1)
    return jnp.stack(outs)


# ------------------------------- param setup ---------------------------------

def init_params(key, in_dim, hid, vocab):
    ks = jax.random.split(key, 10)
    s = 0.1
    n = lambda k, shape: s * jax.random.normal(k, shape, jnp.float32)
    return {
        # encoder LSTM (PyTorch layout: W_ih (4H, In), W_hh (4H, H))
        "enc_w_ih": n(ks[0], (4 * hid, in_dim)),
        "enc_w_hh": n(ks[1], (4 * hid, hid)),
        "enc_b_ih": n(ks[2], (4 * hid,)),
        "enc_b_hh": n(ks[3], (4 * hid,)),
        # decoder LSTM over one-hot vocab input + vocab projection
        "dec_w_ih": n(ks[4], (4 * hid, vocab)),
        "dec_w_hh": n(ks[5], (4 * hid, hid)),
        "dec_b_ih": n(ks[6], (4 * hid,)),
        "dec_b_hh": n(ks[7], (4 * hid,)),
        "dec_w_out": n(ks[8], (vocab, hid)),
        "dec_b_out": n(ks[9], (vocab,)),
    }


if __name__ == "__main__":
    key = jax.random.PRNGKey(0)
    k_src, k_trg, k_par, k_tf = jax.random.split(key, 4)

    B, src_len, in_dim, hid = 2, 8, 16, 32
    trg_len, vocab = 8, 16

    src = jax.random.normal(k_src, (src_len, B, in_dim), jnp.float32)
    trg_ids = jax.random.randint(k_trg, (trg_len, B), 0, vocab)
    trg = jax.nn.one_hot(trg_ids, vocab, dtype=jnp.float32)

    params = init_params(k_par, in_dim, hid, vocab)

    # TODO(synk): torch.rand(1).item() is host-side per-step randomness; the
    # teacher-forcing coin flips are pre-drawn and passed via scalar prefetch.
    teacher_forcing_ratio = 0.5
    tf_flags = (jax.random.uniform(k_tf, (trg_len - 1,))
                < teacher_forcing_ratio).astype(jnp.int32)

    # Numeric correctness check on the fully teacher-forced path (no argmax
    # feedback, so the comparison is purely numeric).
    tf_all = jnp.ones((trg_len - 1,), jnp.int32)
    out_tf = jax.block_until_ready(seq2seq_forward(src, trg, params, tf_all))
    ref_tf = seq2seq_reference(src, trg, params, tf_all)
    assert out_tf.shape == (trg_len, B, vocab)
    assert bool(jnp.all(jnp.isfinite(out_tf)))
    assert bool(jnp.allclose(out_tf, ref_tf, rtol=2e-2, atol=2e-2))

    # Mixed teacher-forcing / free-running run (as in the PyTorch module).
    outputs = jax.block_until_ready(seq2seq_forward(src, trg, params, tf_flags))
    assert outputs.shape == (trg_len, B, vocab)
    assert bool(jnp.all(jnp.isfinite(outputs)))
    assert bool(jnp.all(outputs[0] == 0.0))      # outputs[0] never written, stays zero
    assert bool(jnp.any(outputs[1:] != 0.0))     # decoder actually wrote logits
    print("KERNEL_OK")
</pallas_src>

<mosaic_0001>
module attributes {stable_mosaic.version = 11 : i64} {
  func.func @seq2seq_kernel(%arg0: i32, %arg1: memref<7xi32, #tpu.memory_space<smem>>, %arg2: memref<64x128xf32, #tpu.memory_space<vmem>>, %arg3: memref<8x8x128xf32, #tpu.memory_space<vmem>>, %arg4: memref<128x512xf32, #tpu.memory_space<vmem>>, %arg5: memref<128x512xf32, #tpu.memory_space<vmem>>, %arg6: memref<1x512xf32, #tpu.memory_space<vmem>>, %arg7: memref<256x512xf32, #tpu.memory_space<vmem>>, %arg8: memref<1x512xf32, #tpu.memory_space<vmem>>, %arg9: memref<128x128xf32, #tpu.memory_space<vmem>>, %arg10: memref<1x128xf32, #tpu.memory_space<vmem>>, %arg11: memref<8x8x128xf32, #tpu.memory_space<vmem>>, %arg12: memref<64x512xf32, #tpu.memory_space<vmem>>, %arg13: memref<8x256xf32, #tpu.memory_space<vmem>>) attributes {dimension_semantics = [#tpu.dimension_semantics<arbitrary>], iteration_bounds = array<i64: 1>, scalar_prefetch = 1 : i64, scratch_operands = 2 : i64, tpu.core_type = #tpu.core_type<tc>, window_params = [{pipeline_mode = #tpu.pipeline_mode<synchronous>, transform_indices = @transform_0, window_bounds = array<i64: 64, 128>}, {pipeline_mode = #tpu.pipeline_mode<synchronous>, transform_indices = @transform_1, window_bounds = array<i64: 8, 8, 128>}, {pipeline_mode = #tpu.pipeline_mode<synchronous>, transform_indices = @transform_2, window_bounds = array<i64: 128, 512>}, {pipeline_mode = #tpu.pipeline_mode<synchronous>, transform_indices = @transform_3, window_bounds = array<i64: 128, 512>}, {pipeline_mode = #tpu.pipeline_mode<synchronous>, transform_indices = @transform_4, window_bounds = array<i64: 1, 512>}, {pipeline_mode = #tpu.pipeline_mode<synchronous>, transform_indices = @transform_5, window_bounds = array<i64: 256, 512>}, {pipeline_mode = #tpu.pipeline_mode<synchronous>, transform_indices = @transform_6, window_bounds = array<i64: 1, 512>}, {pipeline_mode = #tpu.pipeline_mode<synchronous>, transform_indices = @transform_7, window_bounds = array<i64: 128, 128>}, {pipeline_mode = #tpu.pipeline_mode<synchronous>, transform_indices = @transform_8, window_bounds = array<i64: 1, 128>}, {pipeline_mode = #tpu.pipeline_mode<synchronous>, transform_indices = @transform_9, window_bounds = array<i64: 8, 8, 128>}]} {
    %c0 = arith.constant 0 : index
    %c0_0 = arith.constant 0 : index
    %0 = vector.load %arg5[%c0, %c0_0] : memref<128x512xf32, #tpu.memory_space<vmem>>, vector<128x512xf32>
    %c0_1 = arith.constant 0 : index
    %c0_2 = arith.constant 0 : index
    %1 = vector.load %arg7[%c0_1, %c0_2] : memref<256x512xf32, #tpu.memory_space<vmem>>, vector<256x512xf32>
    %c0_3 = arith.constant 0 : index
    %c0_4 = arith.constant 0 : index
    %2 = vector.load %arg9[%c0_3, %c0_4] : memref<128x128xf32, #tpu.memory_space<vmem>>, vector<128x128xf32>
    %c0_5 = arith.constant 0 : index
    %c0_6 = arith.constant 0 : index
    %3 = vector.load %arg8[%c0_5, %c0_6] : memref<1x512xf32, #tpu.memory_space<vmem>>, vector<1x512xf32>
    %4 = vector.shape_cast %3 : vector<1x512xf32> to vector<1x512xf32>
    %5 = vector.broadcast %4 : vector<1x512xf32> to vector<8x512xf32>
    %c0_7 = arith.constant 0 : index
    %c0_8 = arith.constant 0 : index
    %6 = vector.load %arg10[%c0_7, %c0_8] : memref<1x128xf32, #tpu.memory_space<vmem>>, vector<1x128xf32>
    %7 = vector.shape_cast %6 : vector<1x128xf32> to vector<1x128xf32>
    %8 = vector.broadcast %7 : vector<1x128xf32> to vector<8x128xf32>
    %c0_9 = arith.constant 0 : index
    %c0_10 = arith.constant 0 : index
    %9 = vector.load %arg2[%c0_9, %c0_10] : memref<64x128xf32, #tpu.memory_space<vmem>>, vector<64x128xf32>
    %c0_11 = arith.constant 0 : index
    %c0_12 = arith.constant 0 : index
    %10 = vector.load %arg4[%c0_11, %c0_12] : memref<128x512xf32, #tpu.memory_space<vmem>>, vector<128x512xf32>
    %cst = arith.constant dense<0.000000e+00> : vector<64x512xf32>
    %11 = tpu.matmul %9, %10, %cst {dimension_numbers = #tpu.dot_dimension_numbers<[1], [0], [0], [1], [0, 0, 1, 1], [], []>} : vector<64x128xf32>, vector<128x512xf32>, vector<64x512xf32> -> vector<64x512xf32>
    %c0_13 = arith.constant 0 : index
    %c0_14 = arith.constant 0 : index
    %12 = vector.load %arg6[%c0_13, %c0_14] : memref<1x512xf32, #tpu.memory_space<vmem>>, vector<1x512xf32>
    %13 = vector.broadcast %12 : vector<1x512xf32> to vector<64x512xf32>
    %14 = arith.addf %11, %13 : vector<64x512xf32>
    %c0_15 = arith.constant 0 : index
    %c0_16 = arith.constant 0 : index
    %15 = vector.load %arg12[%c0_15, %c0_16] : memref<64x512xf32, #tpu.memory_space<vmem>>, vector<64x512xf32>
    tpu.vector_store %arg12[%c0_15, %c0_16], %14 {strides = array<i32>} : memref<64x512xf32, #tpu.memory_space<vmem>>, vector<64x512xf32>,
    %cst_17 = arith.constant 0.000000e+00 : f32
    %16 = vector.broadcast %cst_17 : f32 to vector<8x128xf32>
    %cst_18 = arith.constant 0.000000e+00 : f32
    %17 = vector.broadcast %cst_18 : f32 to vector<8x128xf32>
    %c0_i32 = arith.constant 0 : i32
    %c8_i32 = arith.constant 8 : i32
    %18 = arith.muli %c0_i32, %c8_i32 : i32
    %19 = tpu.assume_multiple %18, 8 : i32
    %20 = arith.index_cast %19 : i32 to index
    %c0_19 = arith.constant 0 : index
    %21 = vector.load %arg12[%20, %c0_19] : memref<64x512xf32, #tpu.memory_space<vmem>>, vector<8x512xf32>
    %cst_20 = arith.constant dense<0.000000e+00> : vector<8x512xf32>
    %22 = tpu.matmul %16, %0, %cst_20 {dimension_numbers = #tpu.dot_dimension_numbers<[1], [0], [0], [1], [0, 0, 1, 1], [], []>} : vector<8x128xf32>, vector<128x512xf32>, vector<8x512xf32> -> vector<8x512xf32>
    %23 = arith.addf %21, %22 : vector<8x512xf32>
    %24 = vector.extract_strided_slice %23 {offsets = [0, 0], sizes = [8, 128], strides = [1, 1]} : vector<8x512xf32> to vector<8x128xf32>
    %25 = arith.negf %24 : vector<8x128xf32>
    %26 = math.exp %25 : vector<8x128xf32>
    %cst_21 = arith.constant 1.000000e+00 : f32
    %27 = vector.broadcast %cst_21 : f32 to vector<8x128xf32>
    %28 = arith.addf %27, %26 : vector<8x128xf32>
    %29 = arith.divf %27, %28 : vector<8x128xf32>
    %30 = vector.extract_strided_slice %23 {offsets = [0, 128], sizes = [8, 128], strides = [1, 1]} : vector<8x512xf32> to vector<8x128xf32>
    %31 = arith.negf %30 : vector<8x128xf32>
    %32 = math.exp %31 : vector<8x128xf32>
    %cst_22 = arith.constant 1.000000e+00 : f32
    %33 = vector.broadcast %cst_22 : f32 to vector<8x128xf32>
    %34 = arith.addf %33, %32 : vector<8x128xf32>
    %35 = arith.divf %33, %34 : vector<8x128xf32>
    %36 = vector.extract_strided_slice %23 {offsets = [0, 256], sizes = [8, 128], strides = [1, 1]} : vector<8x512xf32> to vector<8x128xf32>
    %37 = math.tanh %36 : vector<8x128xf32>
    %38 = vector.extract_strided_slice %23 {offsets = [0, 384], sizes = [8, 128], strides = [1, 1]} : vector<8x512xf32> to vector<8x128xf32>
    %39 = arith.negf %38 : vector<8x128xf32>
    %40 = math.exp %39 : vector<8x128xf32>
    %cst_23 = arith.constant 1.000000e+00 : f32
    %41 = vector.broadcast %cst_23 : f32 to vector<8x128xf32>
    %42 = arith.addf %41, %40 : vector<8x128xf32>
    %43 = arith.divf %41, %42 : vector<8x128xf32>
    %44 = arith.mulf %35, %17 : vector<8x128xf32>
    %45 = arith.mulf %29, %37 : vector<8x128xf32>
    %46 = arith.addf %44, %45 : vector<8x128xf32>
    %47 = math.tanh %46 : vector<8x128xf32>
    %48 = arith.mulf %43, %47 : vector<8x128xf32>
    %c1_i32 = arith.constant 1 : i32
    %c8_i32_24 = arith.constant 8 : i32
    %49 = arith.muli %c1_i32, %c8_i32_24 : i32
    %50 = tpu.assume_multiple %49, 8 : i32
    %51 = arith.index_cast %50 : i32 to index
    %c0_25 = arith.constant 0 : index
    %52 = vector.load %arg12[%51, %c0_25] : memref<64x512xf32, #tpu.memory_space<vmem>>, vector<8x512xf32>
    %cst_26 = arith.constant dense<0.000000e+00> : vector<8x512xf32>
    %53 = tpu.matmul %48, %0, %cst_26 {dimension_numbers = #tpu.dot_dimension_numbers<[1], [0], [0], [1], [0, 0, 1, 1], [], []>} : vector<8x128xf32>, vector<128x512xf32>, vector<8x512xf32> -> vector<8x512xf32>
    %54 = arith.addf %52, %53 : vector<8x512xf32>
    %55 = vector.extract_strided_slice %54 {offsets = [0, 0], sizes = [8, 128], strides = [1, 1]} : vector<8x512xf32> to vector<8x128xf32>
    %56 = arith.negf %55 : vector<8x128xf32>
    %57 = math.exp %56 : vector<8x128xf32>
    %cst_27 = arith.constant 1.000000e+00 : f32
    %58 = vector.broadcast %cst_27 : f32 to vector<8x128xf32>
    %59 = arith.addf %58, %57 : vector<8x128xf32>
    %60 = arith.divf %58, %59 : vector<8x128xf32>
    %61 = vector.extract_strided_slice %54 {offsets = [0, 128], sizes = [8, 128], strides = [1, 1]} : vector<8x512xf32> to vector<8x128xf32>
    %62 = arith.negf %61 : vector<8x128xf32>
    %63 = math.exp %62 : vector<8x128xf32>
    %cst_28 = arith.constant 1.000000e+00 : f32
    %64 = vector.broadcast %cst_28 : f32 to vector<8x128xf32>
    %65 = arith.addf %64, %63 : vector<8x128xf32>
    %66 = arith.divf %64, %65 : vector<8x128xf32>
    %67 = vector.extract_strided_slice %54 {offsets = [0, 256], sizes = [8, 128], strides = [1, 1]} : vector<8x512xf32> to vector<8x128xf32>
    %68 = math.tanh %67 : vector<8x128xf32>
    %69 = vector.extract_strided_slice %54 {offsets = [0, 384], sizes = [8, 128], strides = [1, 1]} : vector<8x512xf32> to vector<8x128xf32>
    %70 = arith.negf %69 : vector<8x128xf32>
    %71 = math.exp %70 : vector<8x128xf32>
    %cst_29 = arith.constant 1.000000e+00 : f32
    %72 = vector.broadcast %cst_29 : f32 to vector<8x128xf32>
    %73 = arith.addf %72, %71 : vector<8x128xf32>
    %74 = arith.divf %72, %73 : vector<8x128xf32>
    %75 = arith.mulf %66, %46 : vector<8x128xf32>
    %76 = arith.mulf %60, %68 : vector<8x128xf32>
    %77 = arith.addf %75, %76 : vector<8x128xf32>
    %78 = math.tanh %77 : vector<8x128xf32>
    %79 = arith.mulf %74, %78 : vector<8x128xf32>
    %c2_i32 = arith.constant 2 : i32
    %c8_i32_30 = arith.constant 8 : i32
    %80 = arith.muli %c2_i32, %c8_i32_30 : i32
    %81 = tpu.assume_multiple %80, 8 : i32
    %82 = arith.index_cast %81 : i32 to index
    %c0_31 = arith.constant 0 : index
    %83 = vector.load %arg12[%82, %c0_31] : memref<64x512xf32, #tpu.memory_space<vmem>>, vector<8x512xf32>
    %cst_32 = arith.constant dense<0.000000e+00> : vector<8x512xf32>
    %84 = tpu.matmul %79, %0, %cst_32 {dimension_numbers = #tpu.dot_dimension_numbers<[1], [0], [0], [1], [0, 0, 1, 1], [], []>} : vector<8x128xf32>, vector<128x512xf32>, vector<8x512xf32> -> vector<8x512xf32>
    %85 = arith.addf %83, %84 : vector<8x512xf32>
    %86 = vector.extract_strided_slice %85 {offsets = [0, 0], sizes = [8, 128], strides = [1, 1]} : vector<8x512xf32> to vector<8x128xf32>
    %87 = arith.negf %86 : vector<8x128xf32>
    %88 = math.exp %87 : vector<8x128xf32>
    %cst_33 = arith.constant 1.000000e+00 : f32
    %89 = vector.broadcast %cst_33 : f32 to vector<8x128xf32>
    %90 = arith.addf %89, %88 : vector<8x128xf32>
    %91 = arith.divf %89, %90 : vector<8x128xf32>
    %92 = vector.extract_strided_slice %85 {offsets = [0, 128], sizes = [8, 128], strides = [1, 1]} : vector<8x512xf32> to vector<8x128xf32>
    %93 = arith.negf %92 : vector<8x128xf32>
    %94 = math.exp %93 : vector<8x128xf32>
    %cst_34 = arith.constant 1.000000e+00 : f32
    %95 = vector.broadcast %cst_34 : f32 to vector<8x128xf32>
    %96 = arith.addf %95, %94 : vector<8x128xf32>
    %97 = arith.divf %95, %96 : vector<8x128xf32>
    %98 = vector.extract_strided_slice %85 {offsets = [0, 256], sizes = [8, 128], strides = [1, 1]} : vector<8x512xf32> to vector<8x128xf32>
    %99 = math.tanh %98 : vector<8x128xf32>
    %100 = vector.extract_strided_slice %85 {offsets = [0, 384], sizes = [8, 128], strides = [1, 1]} : vector<8x512xf32> to vector<8x128xf32>
    %101 = arith.negf %100 : vector<8x128xf32>
    %102 = math.exp %101 : vector<8x128xf32>
    %cst_35 = arith.constant 1.000000e+00 : f32
    %103 = vector.broadcast %cst_35 : f32 to vector<8x128xf32>
    %104 = arith.addf %103, %102 : vector<8x128xf32>
    %105 = arith.divf %103, %104 : vector<8x128xf32>
    %106 = arith.mulf %97, %77 : vector<8x128xf32>
    %107 = arith.mulf %91, %99 : vector<8x128xf32>
    %108 = arith.addf %106, %107 : vector<8x128xf32>
    %109 = math.tanh %108 : vector<8x128xf32>
    %110 = arith.mulf %105, %109 : vector<8x128xf32>
    %c3_i32 = arith.constant 3 : i32
    %c8_i32_36 = arith.constant 8 : i32
    %111 = arith.muli %c3_i32, %c8_i32_36 : i32
    %112 = tpu.assume_multiple %111, 8 : i32
    %113 = arith.index_cast %112 : i32 to index
    %c0_37 = arith.constant 0 : index
    %114 = vector.load %arg12[%113, %c0_37] : memref<64x512xf32, #tpu.memory_space<vmem>>, vector<8x512xf32>
    %cst_38 = arith.constant dense<0.000000e+00> : vector<8x512xf32>
    %115 = tpu.matmul %110, %0, %cst_38 {dimension_numbers = #tpu.dot_dimension_numbers<[1], [0], [0], [1], [0, 0, 1, 1], [], []>} : vector<8x128xf32>, vector<128x512xf32>, vector<8x512xf32> -> vector<8x512xf32>
    %116 = arith.addf %114, %115 : vector<8x512xf32>
    %117 = vector.extract_strided_slice %116 {offsets = [0, 0], sizes = [8, 128], strides = [1, 1]} : vector<8x512xf32> to vector<8x128xf32>
    %118 = arith.negf %117 : vector<8x128xf32>
    %119 = math.exp %118 : vector<8x128xf32>
    %cst_39 = arith.constant 1.000000e+00 : f32
    %120 = vector.broadcast %cst_39 : f32 to vector<8x128xf32>
    %121 = arith.addf %120, %119 : vector<8x128xf32>
    %122 = arith.divf %120, %121 : vector<8x128xf32>
    %123 = vector.extract_strided_slice %116 {offsets = [0, 128], sizes = [8, 128], strides = [1, 1]} : vector<8x512xf32> to vector<8x128xf32>
    %124 = arith.negf %123 : vector<8x128xf32>
    %125 = math.exp %124 : vector<8x128xf32>
    %cst_40 = arith.constant 1.000000e+00 : f32
    %126 = vector.broadcast %cst_40 : f32 to vector<8x128xf32>
    %127 = arith.addf %126, %125 : vector<8x128xf32>
    %128 = arith.divf %126, %127 : vector<8x128xf32>
    %129 = vector.extract_strided_slice %116 {offsets = [0, 256], sizes = [8, 128], strides = [1, 1]} : vector<8x512xf32> to vector<8x128xf32>
    %130 = math.tanh %129 : vector<8x128xf32>
    %131 = vector.extract_strided_slice %116 {offsets = [0, 384], sizes = [8, 128], strides = [1, 1]} : vector<8x512xf32> to vector<8x128xf32>
    %132 = arith.negf %131 : vector<8x128xf32>
    %133 = math.exp %132 : vector<8x128xf32>
    %cst_41 = arith.constant 1.000000e+00 : f32
    %134 = vector.broadcast %cst_41 : f32 to vector<8x128xf32>
    %135 = arith.addf %134, %133 : vector<8x128xf32>
    %136 = arith.divf %134, %135 : vector<8x128xf32>
    %137 = arith.mulf %128, %108 : vector<8x128xf32>
    %138 = arith.mulf %122, %130 : vector<8x128xf32>
    %139 = arith.addf %137, %138 : vector<8x128xf32>
    %140 = math.tanh %139 : vector<8x128xf32>
    %141 = arith.mulf %136, %140 : vector<8x128xf32>
    %c4_i32 = arith.constant 4 : i32
    %c8_i32_42 = arith.constant 8 : i32
    %142 = arith.muli %c4_i32, %c8_i32_42 : i32
    %143 = tpu.assume_multiple %142, 8 : i32
    %144 = arith.index_cast %143 : i32 to index
    %c0_43 = arith.constant 0 : index
    %145 = vector.load %arg12[%144, %c0_43] : memref<64x512xf32, #tpu.memory_space<vmem>>, vector<8x512xf32>
    %cst_44 = arith.constant dense<0.000000e+00> : vector<8x512xf32>
    %146 = tpu.matmul %141, %0, %cst_44 {dimension_numbers = #tpu.dot_dimension_numbers<[1], [0], [0], [1], [0, 0, 1, 1], [], []>} : vector<8x128xf32>, vector<128x512xf32>, vector<8x512xf32> -> vector<8x512xf32>
    %147 = arith.addf %145, %146 : vector<8x512xf32>
    %148 = vector.extract_strided_slice %147 {offsets = [0, 0], sizes = [8, 128], strides = [1, 1]} : vector<8x512xf32> to vector<8x128xf32>
    %149 = arith.negf %148 : vector<8x128xf32>
    %150 = math.exp %149 : vector<8x128xf32>
    %cst_45 = arith.constant 1.000000e+00 : f32
    %151 = vector.broadcast %cst_45 : f32 to vector<8x128xf32>
    %152 = arith.addf %151, %150 : vector<8x128xf32>
    %153 = arith.divf %151, %152 : vector<8x128xf32>
    %154 = vector.extract_strided_slice %147 {offsets = [0, 128], sizes = [8, 128], strides = [1, 1]} : vector<8x512xf32> to vector<8x128xf32>
    %155 = arith.negf %154 : vector<8x128xf32>
    %156 = math.exp %155 : vector<8x128xf32>
    %cst_46 = arith.constant 1.000000e+00 : f32
    %157 = vector.broadcast %cst_46 : f32 to vector<8x128xf32>
    %158 = arith.addf %157, %156 : vector<8x128xf32>
    %159 = arith.divf %157, %158 : vector<8x128xf32>
    %160 = vector.extract_strided_slice %147 {offsets = [0, 256], sizes = [8, 128], strides = [1, 1]} : vector<8x512xf32> to vector<8x128xf32>
    %161 = math.tanh %160 : vector<8x128xf32>
    %162 = vector.extract_strided_slice %147 {offsets = [0, 384], sizes = [8, 128], strides = [1, 1]} : vector<8x512xf32> to vector<8x128xf32>
    %163 = arith.negf %162 : vector<8x128xf32>
    %164 = math.exp %163 : vector<8x128xf32>
    %cst_47 = arith.constant 1.000000e+00 : f32
    %165 = vector.broadcast %cst_47 : f32 to vector<8x128xf32>
    %166 = arith.addf %165, %164 : vector<8x128xf32>
    %167 = arith.divf %165, %166 : vector<8x128xf32>
    %168 = arith.mulf %159, %139 : vector<8x128xf32>
    %169 = arith.mulf %153, %161 : vector<8x128xf32>
    %170 = arith.addf %168, %169 : vector<8x128xf32>
    %171 = math.tanh %170 : vector<8x128xf32>
    %172 = arith.mulf %167, %171 : vector<8x128xf32>
    %c5_i32 = arith.constant 5 : i32
    %c8_i32_48 = arith.constant 8 : i32
    %173 = arith.muli %c5_i32, %c8_i32_48 : i32
    %174 = tpu.assume_multiple %173, 8 : i32
    %175 = arith.index_cast %174 : i32 to index
    %c0_49 = arith.constant 0 : index
    %176 = vector.load %arg12[%175, %c0_49] : memref<64x512xf32, #tpu.memory_space<vmem>>, vector<8x512xf32>
    %cst_50 = arith.constant dense<0.000000e+00> : vector<8x512xf32>
    %177 = tpu.matmul %172, %0, %cst_50 {dimension_numbers = #tpu.dot_dimension_numbers<[1], [0], [0], [1], [0, 0, 1, 1], [], []>} : vector<8x128xf32>, vector<128x512xf32>, vector<8x512xf32> -> vector<8x512xf32>
    %178 = arith.addf %176, %177 : vector<8x512xf32>
    %179 = vector.extract_strided_slice %178 {offsets = [0, 0], sizes = [8, 128], strides = [1, 1]} : vector<8x512xf32> to vector<8x128xf32>
    %180 = arith.negf %179 : vector<8x128xf32>
    %181 = math.exp %180 : vector<8x128xf32>
    %cst_51 = arith.constant 1.000000e+00 : f32
    %182 = vector.broadcast %cst_51 : f32 to vector<8x128xf32>
    %183 = arith.addf %182, %181 : vector<8x128xf32>
    %184 = arith.divf %182, %183 : vector<8x128xf32>
    %185 = vector.extract_strided_slice %178 {offsets = [0, 128], sizes = [8, 128], strides = [1, 1]} : vector<8x512xf32> to vector<8x128xf32>
    %186 = arith.negf %185 : vector<8x128xf32>
    %187 = math.exp %186 : vector<8x128xf32>
    %cst_52 = arith.constant 1.000000e+00 : f32
    %188 = vector.broadcast %cst_52 : f32 to vector<8x128xf32>
    %189 = arith.addf %188, %187 : vector<8x128xf32>
    %190 = arith.divf %188, %189 : vector<8x128xf32>
    %191 = vector.extract_strided_slice %178 {offsets = [0, 256], sizes = [8, 128], strides = [1, 1]} : vector<8x512xf32> to vector<8x128xf32>
    %192 = math.tanh %191 : vector<8x128xf32>
    %193 = vector.extract_strided_slice %178 {offsets = [0, 384], sizes = [8, 128], strides = [1, 1]} : vector<8x512xf32> to vector<8x128xf32>
    %194 = arith.negf %193 : vector<8x128xf32>
    %195 = math.exp %194 : vector<8x128xf32>
    %cst_53 = arith.constant 1.000000e+00 : f32
    %196 = vector.broadcast %cst_53 : f32 to vector<8x128xf32>
    %197 = arith.addf %196, %195 : vector<8x128xf32>
    %198 = arith.divf %196, %197 : vector<8x128xf32>
    %199 = arith.mulf %190, %170 : vector<8x128xf32>
    %200 = arith.mulf %184, %192 : vector<8x128xf32>
    %201 = arith.addf %199, %200 : vector<8x128xf32>
    %202 = math.tanh %201 : vector<8x128xf32>
    %203 = arith.mulf %198, %202 : vector<8x128xf32>
    %c6_i32 = arith.constant 6 : i32
    %c8_i32_54 = arith.constant 8 : i32
    %204 = arith.muli %c6_i32, %c8_i32_54 : i32
    %205 = tpu.assume_multiple %204, 8 : i32
    %206 = arith.index_cast %205 : i32 to index
    %c0_55 = arith.constant 0 : index
    %207 = vector.load %arg12[%206, %c0_55] : memref<64x512xf32, #tpu.memory_space<vmem>>, vector<8x512xf32>
    %cst_56 = arith.constant dense<0.000000e+00> : vector<8x512xf32>
    %208 = tpu.matmul %203, %0, %cst_56 {dimension_numbers = #tpu.dot_dimension_numbers<[1], [0], [0], [1], [0, 0, 1, 1], [], []>} : vector<8x128xf32>, vector<128x512xf32>, vector<8x512xf32> -> vector<8x512xf32>
    %209 = arith.addf %207, %208 : vector<8x512xf32>
    %210 = vector.extract_strided_slice %209 {offsets = [0, 0], sizes = [8, 128], strides = [1, 1]} : vector<8x512xf32> to vector<8x128xf32>
    %211 = arith.negf %210 : vector<8x128xf32>
    %212 = math.exp %211 : vector<8x128xf32>
    %cst_57 = arith.constant 1.000000e+00 : f32
    %213 = vector.broadcast %cst_57 : f32 to vector<8x128xf32>
    %214 = arith.addf %213, %212 : vector<8x128xf32>
    %215 = arith.divf %213, %214 : vector<8x128xf32>
    %216 = vector.extract_strided_slice %209 {offsets = [0, 128], sizes = [8, 128], strides = [1, 1]} : vector<8x512xf32> to vector<8x128xf32>
    %217 = arith.negf %216 : vector<8x128xf32>
    %218 = math.exp %217 : vector<8x128xf32>
    %cst_58 = arith.constant 1.000000e+00 : f32
    %219 = vector.broadcast %cst_58 : f32 to vector<8x128xf32>
    %220 = arith.addf %219, %218 : vector<8x128xf32>
    %221 = arith.divf %219, %220 : vector<8x128xf32>
    %222 = vector.extract_strided_slice %209 {offsets = [0, 256], sizes = [8, 128], strides = [1, 1]} : vector<8x512xf32> to vector<8x128xf32>
    %223 = math.tanh %222 : vector<8x128xf32>
    %224 = vector.extract_strided_slice %209 {offsets = [0, 384], sizes = [8, 128], strides = [1, 1]} : vector<8x512xf32> to vector<8x128xf32>
    %225 = arith.negf %224 : vector<8x128xf32>
    %226 = math.exp %225 : vector<8x128xf32>
    %cst_59 = arith.constant 1.000000e+00 : f32
    %227 = vector.broadcast %cst_59 : f32 to vector<8x128xf32>
    %228 = arith.addf %227, %226 : vector<8x128xf32>
    %229 = arith.divf %227, %228 : vector<8x128xf32>
    %230 = arith.mulf %221, %201 : vector<8x128xf32>
    %231 = arith.mulf %215, %223 : vector<8x128xf32>
    %232 = arith.addf %230, %231 : vector<8x128xf32>
    %233 = math.tanh %232 : vector<8x128xf32>
    %234 = arith.mulf %229, %233 : vector<8x128xf32>
    %c7_i32 = arith.constant 7 : i32
    %c8_i32_60 = arith.constant 8 : i32
    %235 = arith.muli %c7_i32, %c8_i32_60 : i32
    %236 = tpu.assume_multiple %235, 8 : i32
    %237 = arith.index_cast %236 : i32 to index
    %c0_61 = arith.constant 0 : index
    %238 = vector.load %arg12[%237, %c0_61] : memref<64x512xf32, #tpu.memory_space<vmem>>, vector<8x512xf32>
    %cst_62 = arith.constant dense<0.000000e+00> : vector<8x512xf32>
    %239 = tpu.matmul %234, %0, %cst_62 {dimension_numbers = #tpu.dot_dimension_numbers<[1], [0], [0], [1], [0, 0, 1, 1], [], []>} : vector<8x128xf32>, vector<128x512xf32>, vector<8x512xf32> -> vector<8x512xf32>
    %240 = arith.addf %238, %239 : vector<8x512xf32>
    %241 = vector.extract_strided_slice %240 {offsets = [0, 0], sizes = [8, 128], strides = [1, 1]} : vector<8x512xf32> to vector<8x128xf32>
    %242 = arith.negf %241 : vector<8x128xf32>
    %243 = math.exp %242 : vector<8x128xf32>
    %cst_63 = arith.constant 1.000000e+00 : f32
    %244 = vector.broadcast %cst_63 : f32 to vector<8x128xf32>
    %245 = arith.addf %244, %243 : vector<8x128xf32>
    %246 = arith.divf %244, %245 : vector<8x128xf32>
    %247 = vector.extract_strided_slice %240 {offsets = [0, 128], sizes = [8, 128], strides = [1, 1]} : vector<8x512xf32> to vector<8x128xf32>
    %248 = arith.negf %247 : vector<8x128xf32>
    %249 = math.exp %248 : vector<8x128xf32>
    %cst_64 = arith.constant 1.000000e+00 : f32
    %250 = vector.broadcast %cst_64 : f32 to vector<8x128xf32>
    %251 = arith.addf %250, %249 : vector<8x128xf32>
    %252 = arith.divf %250, %251 : vector<8x128xf32>
    %253 = vector.extract_strided_slice %240 {offsets = [0, 256], sizes = [8, 128], strides = [1, 1]} : vector<8x512xf32> to vector<8x128xf32>
    %254 = math.tanh %253 : vector<8x128xf32>
    %255 = vector.extract_strided_slice %240 {offsets = [0, 384], sizes = [8, 128], strides = [1, 1]} : vector<8x512xf32> to vector<8x128xf32>
    %256 = arith.negf %255 : vector<8x128xf32>
    %257 = math.exp %256 : vector<8x128xf32>
    %cst_65 = arith.constant 1.000000e+00 : f32
    %258 = vector.broadcast %cst_65 : f32 to vector<8x128xf32>
    %259 = arith.addf %258, %257 : vector<8x128xf32>
    %260 = arith.divf %258, %259 : vector<8x128xf32>
    %261 = arith.mulf %252, %232 : vector<8x128xf32>
    %262 = arith.mulf %246, %254 : vector<8x128xf32>
    %263 = arith.addf %261, %262 : vector<8x128xf32>
    %264 = math.tanh %263 : vector<8x128xf32>
    %265 = arith.mulf %260, %264 : vector<8x128xf32>
    %c8_i32_66 = arith.constant 8 : i32
    %cst_67 = arith.constant 0.000000e+00 : f32
    %266 = vector.broadcast %cst_67 : f32 to vector<8x128xf32>
    %c0_68 = arith.constant 0 : index
    %c0_69 = arith.constant 0 : index
    %c0_70 = arith.constant 0 : index
    %267 = vector.load %arg11[%c0_68, %c0_69, %c0_70] : memref<8x8x128xf32, #tpu.memory_space<vmem>>, vector<1x8x128xf32>
    %268 = vector.shape_cast %267 : vector<1x8x128xf32> to vector<8x128xf32>
    %269 = vector.shape_cast %266 : vector<8x128xf32> to vector<1x8x128xf32>
    tpu.vector_store %arg11[%c0_68, %c0_69, %c0_70], %269 {strides = array<i32>} : memref<8x8x128xf32, #tpu.memory_space<vmem>>, vector<1x8x128xf32>,
    %270 = tpu.iota {dimensions = array<i32: 1>} : vector<8x128xi32>
    %c0_71 = arith.constant 0 : index
    %c0_72 = arith.constant 0 : index
    %c0_73 = arith.constant 0 : index
    %271 = vector.load %arg3[%c0_71, %c0_72, %c0_73] : memref<8x8x128xf32, #tpu.memory_space<vmem>>, vector<1x8x128xf32>
    %272 = vector.shape_cast %271 : vector<1x8x128xf32> to vector<8x128xf32>
    %c1_i32_74 = arith.constant 1 : i32
    %c0_75 = arith.constant 0 : index
    %c0_76 = arith.constant 0 : index
    %273 = vector.load %arg13[%c0_75, %c0_76] : memref<8x256xf32, #tpu.memory_space<vmem>>, vector<8x128xf32>
    tpu.vector_store %arg13[%c0_75, %c0_76], %272 {strides = array<i32>} : memref<8x256xf32, #tpu.memory_space<vmem>>, vector<8x128xf32>,
    %c0_77 = arith.constant 0 : index
    %c128 = arith.constant 128 : index
    %274 = vector.load %arg13[%c0_77, %c128] : memref<8x256xf32, #tpu.memory_space<vmem>>, vector<8x128xf32>
    tpu.vector_store %arg13[%c0_77, %c128], %265 {strides = array<i32>} : memref<8x256xf32, #tpu.memory_space<vmem>>, vector<8x128xf32>,
    %c0_78 = arith.constant 0 : index
    %c0_79 = arith.constant 0 : index
    %275 = vector.load %arg13[%c0_78, %c0_79] : memref<8x256xf32, #tpu.memory_space<vmem>>, vector<8x256xf32>
    %cst_80 = arith.constant dense<0.000000e+00> : vector<8x512xf32>
    %276 = tpu.matmul %275, %1, %cst_80 {dimension_numbers = #tpu.dot_dimension_numbers<[1], [0], [0], [1], [0, 0, 1, 1], [], []>} : vector<8x256xf32>, vector<256x512xf32>, vector<8x512xf32> -> vector<8x512xf32>
    %277 = arith.addf %276, %5 : vector<8x512xf32>
    %278 = vector.extract_strided_slice %277 {offsets = [0, 0], sizes = [8, 128], strides = [1, 1]} : vector<8x512xf32> to vector<8x128xf32>
    %279 = arith.negf %278 : vector<8x128xf32>
    %280 = math.exp %279 : vector<8x128xf32>
    %cst_81 = arith.constant 1.000000e+00 : f32
    %281 = vector.broadcast %cst_81 : f32 to vector<8x128xf32>
    %282 = arith.addf %281, %280 : vector<8x128xf32>
    %283 = arith.divf %281, %282 : vector<8x128xf32>
    %284 = vector.extract_strided_slice %277 {offsets = [0, 128], sizes = [8, 128], strides = [1, 1]} : vector<8x512xf32> to vector<8x128xf32>
    %285 = arith.negf %284 : vector<8x128xf32>
    %286 = math.exp %285 : vector<8x128xf32>
    %cst_82 = arith.constant 1.000000e+00 : f32
    %287 = vector.broadcast %cst_82 : f32 to vector<8x128xf32>
    %288 = arith.addf %287, %286 : vector<8x128xf32>
    %289 = arith.divf %287, %288 : vector<8x128xf32>
    %290 = vector.extract_strided_slice %277 {offsets = [0, 256], sizes = [8, 128], strides = [1, 1]} : vector<8x512xf32> to vector<8x128xf32>
    %291 = math.tanh %290 : vector<8x128xf32>
    %292 = vector.extract_strided_slice %277 {offsets = [0, 384], sizes = [8, 128], strides = [1, 1]} : vector<8x512xf32> to vector<8x128xf32>
    %293 = arith.negf %292 : vector<8x128xf32>
    %294 = math.exp %293 : vector<8x128xf32>
    %cst_83 = arith.constant 1.000000e+00 : f32
    %295 = vector.broadcast %cst_83 : f32 to vector<8x128xf32>
    %296 = arith.addf %295, %294 : vector<8x128xf32>
    %297 = arith.divf %295, %296 : vector<8x128xf32>
    %298 = arith.mulf %289, %263 : vector<8x128xf32>
    %299 = arith.mulf %283, %291 : vector<8x128xf32>
    %300 = arith.addf %298, %299 : vector<8x128xf32>
    %301 = math.tanh %300 : vector<8x128xf32>
    %302 = arith.mulf %297, %301 : vector<8x128xf32>
    %cst_84 = arith.constant dense<0.000000e+00> : vector<8x128xf32>
    %303 = tpu.matmul %302, %2, %cst_84 {dimension_numbers = #tpu.dot_dimension_numbers<[1], [0], [0], [1], [0, 0, 1, 1], [], []>} : vector<8x128xf32>, vector<128x128xf32>, vector<8x128xf32> -> vector<8x128xf32>
    %304 = arith.addf %303, %8 : vector<8x128xf32>
    %305 = arith.index_cast %c1_i32_74 : i32 to index
    %c0_85 = arith.constant 0 : index
    %c0_86 = arith.constant 0 : index
    %306 = vector.load %arg11[%305, %c0_85, %c0_86] : memref<8x8x128xf32, #tpu.memory_space<vmem>>, vector<1x8x128xf32>
    %307 = vector.shape_cast %306 : vector<1x8x128xf32> to vector<8x128xf32>
    %308 = vector.shape_cast %304 : vector<8x128xf32> to vector<1x8x128xf32>
    tpu.vector_store %arg11[%305, %c0_85, %c0_86], %308 {strides = array<i32>} : memref<8x8x128xf32, #tpu.memory_space<vmem>>, vector<1x8x128xf32>,
    %cst_87 = arith.constant dense<0xFF800000> : vector<8xf32>
    %309 = vector.multi_reduction <maximumf>, %304, %cst_87 [1] : vector<8x128xf32> to vector<8xf32>
    %310 = vector.shape_cast %309 : vector<8xf32> to vector<8x1xf32>
    %311 = vector.broadcast %310 : vector<8x1xf32> to vector<8x128xf32>
    %312 = arith.cmpf oeq, %304, %311 : vector<8x128xf32>
    %c128_i32 = arith.constant 128 : i32
    %313 = vector.broadcast %c128_i32 : i32 to vector<8x128xi32>
    %314 = arith.select %312, %270, %313 : vector<8x128xi1>, vector<8x128xi32>
    %cst_88 = arith.constant dense<2147483647> : vector<8xi32>
    %315 = vector.multi_reduction <minsi>, %314, %cst_88 [1] : vector<8x128xi32> to vector<8xi32>
    %316 = vector.shape_cast %315 : vector<8xi32> to vector<8x1xi32>
    %317 = vector.broadcast %316 : vector<8x1xi32> to vector<8x128xi32>
    %318 = arith.cmpi eq, %270, %317 : vector<8x128xi32>
    %319 = arith.extui %318 : vector<8x128xi1> to vector<8x128xi32>
    %320 = arith.sitofp %319 : vector<8x128xi32> to vector<8x128xf32>
    %c1_i32_89 = arith.constant 1 : i32
    %321 = arith.subi %c1_i32_74, %c1_i32_89 : i32
    %322 = arith.index_cast %321 : i32 to index
    %323 = memref.load %arg1[%322] : memref<7xi32, #tpu.memory_space<smem>>
    %c1_i32_90 = arith.constant 1 : i32
    %324 = arith.cmpi eq, %323, %c1_i32_90 : i32
    %325 = arith.index_cast %c1_i32_74 : i32 to index
    %c0_91 = arith.constant 0 : index
    %c0_92 = arith.constant 0 : index
    %326 = vector.load %arg3[%325, %c0_91, %c0_92] : memref<8x8x128xf32, #tpu.memory_space<vmem>>, vector<1x8x128xf32>
    %327 = vector.shape_cast %326 : vector<1x8x128xf32> to vector<8x128xf32>
    %328 = arith.select %324, %327, %320 : vector<8x128xf32>
    %c2_i32_93 = arith.constant 2 : i32
    %c0_94 = arith.constant 0 : index
    %c0_95 = arith.constant 0 : index
    %329 = vector.load %arg13[%c0_94, %c0_95] : memref<8x256xf32, #tpu.memory_space<vmem>>, vector<8x128xf32>
    tpu.vector_store %arg13[%c0_94, %c0_95], %328 {strides = array<i32>} : memref<8x256xf32, #tpu.memory_space<vmem>>, vector<8x128xf32>,
    %c0_96 = arith.constant 0 : index
    %c128_97 = arith.constant 128 : index
    %330 = vector.load %arg13[%c0_96, %c128_97] : memref<8x256xf32, #tpu.memory_space<vmem>>, vector<8x128xf32>
    tpu.vector_store %arg13[%c0_96, %c128_97], %302 {strides = array<i32>} : memref<8x256xf32, #tpu.memory_space<vmem>>, vector<8x128xf32>,
    %c0_98 = arith.constant 0 : index
    %c0_99 = arith.constant 0 : index
    %331 = vector.load %arg13[%c0_98, %c0_99] : memref<8x256xf32, #tpu.memory_space<vmem>>, vector<8x256xf32>
    %cst_100 = arith.constant dense<0.000000e+00> : vector<8x512xf32>
    %332 = tpu.matmul %331, %1, %cst_100 {dimension_numbers = #tpu.dot_dimension_numbers<[1], [0], [0], [1], [0, 0, 1, 1], [], []>} : vector<8x256xf32>, vector<256x512xf32>, vector<8x512xf32> -> vector<8x512xf32>
    %333 = arith.addf %332, %5 : vector<8x512xf32>
    %334 = vector.extract_strided_slice %333 {offsets = [0, 0], sizes = [8, 128], strides = [1, 1]} : vector<8x512xf32> to vector<8x128xf32>
    %335 = arith.negf %334 : vector<8x128xf32>
    %336 = math.exp %335 : vector<8x128xf32>
    %cst_101 = arith.constant 1.000000e+00 : f32
    %337 = vector.broadcast %cst_101 : f32 to vector<8x128xf32>
    %338 = arith.addf %337, %336 : vector<8x128xf32>
    %339 = arith.divf %337, %338 : vector<8x128xf32>
    %340 = vector.extract_strided_slice %333 {offsets = [0, 128], sizes = [8, 128], strides = [1, 1]} : vector<8x512xf32> to vector<8x128xf32>
    %341 = arith.negf %340 : vector<8x128xf32>
    %342 = math.exp %341 : vector<8x128xf32>
    %cst_102 = arith.constant 1.000000e+00 : f32
    %343 = vector.broadcast %cst_102 : f32 to vector<8x128xf32>
    %344 = arith.addf %343, %342 : vector<8x128xf32>
    %345 = arith.divf %343, %344 : vector<8x128xf32>
    %346 = vector.extract_strided_slice %333 {offsets = [0, 256], sizes = [8, 128], strides = [1, 1]} : vector<8x512xf32> to vector<8x128xf32>
    %347 = math.tanh %346 : vector<8x128xf32>
    %348 = vector.extract_strided_slice %333 {offsets = [0, 384], sizes = [8, 128], strides = [1, 1]} : vector<8x512xf32> to vector<8x128xf32>
    %349 = arith.negf %348 : vector<8x128xf32>
    %350 = math.exp %349 : vector<8x128xf32>
    %cst_103 = arith.constant 1.000000e+00 : f32
    %351 = vector.broadcast %cst_103 : f32 to vector<8x128xf32>
    %352 = arith.addf %351, %350 : vector<8x128xf32>
    %353 = arith.divf %351, %352 : vector<8x128xf32>
    %354 = arith.mulf %345, %300 : vector<8x128xf32>
    %355 = arith.mulf %339, %347 : vector<8x128xf32>
    %356 = arith.addf %354, %355 : vector<8x128xf32>
    %357 = math.tanh %356 : vector<8x128xf32>
    %358 = arith.mulf %353, %357 : vector<8x128xf32>
    %cst_104 = arith.constant dense<0.000000e+00> : vector<8x128xf32>
    %359 = tpu.matmul %358, %2, %cst_104 {dimension_numbers = #tpu.dot_dimension_numbers<[1], [0], [0], [1], [0, 0, 1, 1], [], []>} : vector<8x128xf32>, vector<128x128xf32>, vector<8x128xf32> -> vector<8x128xf32>
    %360 = arith.addf %359, %8 : vector<8x128xf32>
    %361 = arith.index_cast %c2_i32_93 : i32 to index
    %c0_105 = arith.constant 0 : index
    %c0_106 = arith.constant 0 : index
    %362 = vector.load %arg11[%361, %c0_105, %c0_106] : memref<8x8x128xf32, #tpu.memory_space<vmem>>, vector<1x8x128xf32>
    %363 = vector.shape_cast %362 : vector<1x8x128xf32> to vector<8x128xf32>
    %364 = vector.shape_cast %360 : vector<8x128xf32> to vector<1x8x128xf32>
    tpu.vector_store %arg11[%361, %c0_105, %c0_106], %364 {strides = array<i32>} : memref<8x8x128xf32, #tpu.memory_space<vmem>>, vector<1x8x128xf32>,
    %cst_107 = arith.constant dense<0xFF800000> : vector<8xf32>
    %365 = vector.multi_reduction <maximumf>, %360, %cst_107 [1] : vector<8x128xf32> to vector<8xf32>
    %366 = vector.shape_cast %365 : vector<8xf32> to vector<8x1xf32>
    %367 = vector.broadcast %366 : vector<8x1xf32> to vector<8x128xf32>
    %368 = arith.cmpf oeq, %360, %367 : vector<8x128xf32>
    %c128_i32_108 = arith.constant 128 : i32
    %369 = vector.broadcast %c128_i32_108 : i32 to vector<8x128xi32>
    %370 = arith.select %368, %270, %369 : vector<8x128xi1>, vector<8x128xi32>
    %cst_109 = arith.constant dense<2147483647> : vector<8xi32>
    %371 = vector.multi_reduction <minsi>, %370, %cst_109 [1] : vector<8x128xi32> to vector<8xi32>
    %372 = vector.shape_cast %371 : vector<8xi32> to vector<8x1xi32>
    %373 = vector.broadcast %372 : vector<8x1xi32> to vector<8x128xi32>
    %374 = arith.cmpi eq, %270, %373 : vector<8x128xi32>
    %375 = arith.extui %374 : vector<8x128xi1> to vector<8x128xi32>
    %376 = arith.sitofp %375 : vector<8x128xi32> to vector<8x128xf32>
    %c1_i32_110 = arith.constant 1 : i32
    %377 = arith.subi %c2_i32_93, %c1_i32_110 : i32
    %378 = arith.index_cast %377 : i32 to index
    %379 = memref.load %arg1[%378] : memref<7xi32, #tpu.memory_space<smem>>
    %c1_i32_111 = arith.constant 1 : i32
    %380 = arith.cmpi eq, %379, %c1_i32_111 : i32
    %381 = arith.index_cast %c2_i32_93 : i32 to index
    %c0_112 = arith.constant 0 : index
    %c0_113 = arith.constant 0 : index
    %382 = vector.load %arg3[%381, %c0_112, %c0_113] : memref<8x8x128xf32, #tpu.memory_space<vmem>>, vector<1x8x128xf32>
    %383 = vector.shape_cast %382 : vector<1x8x128xf32> to vector<8x128xf32>
    %384 = arith.select %380, %383, %376 : vector<8x128xf32>
    %c3_i32_114 = arith.constant 3 : i32
    %c0_115 = arith.constant 0 : index
    %c0_116 = arith.constant 0 : index
    %385 = vector.load %arg13[%c0_115, %c0_116] : memref<8x256xf32, #tpu.memory_space<vmem>>, vector<8x128xf32>
    tpu.vector_store %arg13[%c0_115, %c0_116], %384 {strides = array<i32>} : memref<8x256xf32, #tpu.memory_space<vmem>>, vector<8x128xf32>,
    %c0_117 = arith.constant 0 : index
    %c128_118 = arith.constant 128 : index
    %386 = vector.load %arg13[%c0_117, %c128_118] : memref<8x256xf32, #tpu.memory_space<vmem>>, vector<8x128xf32>
    tpu.vector_store %arg13[%c0_117, %c128_118], %358 {strides = array<i32>} : memref<8x256xf32, #tpu.memory_space<vmem>>, vector<8x128xf32>,
    %c0_119 = arith.constant 0 : index
    %c0_120 = arith.constant 0 : index
    %387 = vector.load %arg13[%c0_119, %c0_120] : memref<8x256xf32, #tpu.memory_space<vmem>>, vector<8x256xf32>
    %cst_121 = arith.constant dense<0.000000e+00> : vector<8x512xf32>
    %388 = tpu.matmul %387, %1, %cst_121 {dimension_numbers = #tpu.dot_dimension_numbers<[1], [0], [0], [1], [0, 0, 1, 1], [], []>} : vector<8x256xf32>, vector<256x512xf32>, vector<8x512xf32> -> vector<8x512xf32>
    %389 = arith.addf %388, %5 : vector<8x512xf32>
    %390 = vector.extract_strided_slice %389 {offsets = [0, 0], sizes = [8, 128], strides = [1, 1]} : vector<8x512xf32> to vector<8x128xf32>
    %391 = arith.negf %390 : vector<8x128xf32>
    %392 = math.exp %391 : vector<8x128xf32>
    %cst_122 = arith.constant 1.000000e+00 : f32
    %393 = vector.broadcast %cst_122 : f32 to vector<8x128xf32>
    %394 = arith.addf %393, %392 : vector<8x128xf32>
    %395 = arith.divf %393, %394 : vector<8x128xf32>
    %396 = vector.extract_strided_slice %389 {offsets = [0, 128], sizes = [8, 128], strides = [1, 1]} : vector<8x512xf32> to vector<8x128xf32>
    %397 = arith.negf %396 : vector<8x128xf32>
    %398 = math.exp %397 : vector<8x128xf32>
    %cst_123 = arith.constant 1.000000e+00 : f32
    %399 = vector.broadcast %cst_123 : f32 to vector<8x128xf32>
    %400 = arith.addf %399, %398 : vector<8x128xf32>
    %401 = arith.divf %399, %400 : vector<8x128xf32>
    %402 = vector.extract_strided_slice %389 {offsets = [0, 256], sizes = [8, 128], strides = [1, 1]} : vector<8x512xf32> to vector<8x128xf32>
    %403 = math.tanh %402 : vector<8x128xf32>
    %404 = vector.extract_strided_slice %389 {offsets = [0, 384], sizes = [8, 128], strides = [1, 1]} : vector<8x512xf32> to vector<8x128xf32>
    %405 = arith.negf %404 : vector<8x128xf32>
    %406 = math.exp %405 : vector<8x128xf32>
    %cst_124 = arith.constant 1.000000e+00 : f32
    %407 = vector.broadcast %cst_124 : f32 to vector<8x128xf32>
    %408 = arith.addf %407, %406 : vector<8x128xf32>
    %409 = arith.divf %407, %408 : vector<8x128xf32>
    %410 = arith.mulf %401, %356 : vector<8x128xf32>
    %411 = arith.mulf %395, %403 : vector<8x128xf32>
    %412 = arith.addf %410, %411 : vector<8x128xf32>
    %413 = math.tanh %412 : vector<8x128xf32>
    %414 = arith.mulf %409, %413 : vector<8x128xf32>
    %cst_125 = arith.constant dense<0.000000e+00> : vector<8x128xf32>
    %415 = tpu.matmul %414, %2, %cst_125 {dimension_numbers = #tpu.dot_dimension_numbers<[1], [0], [0], [1], [0, 0, 1, 1], [], []>} : vector<8x128xf32>, vector<128x128xf32>, vector<8x128xf32> -> vector<8x128xf32>
    %416 = arith.addf %415, %8 : vector<8x128xf32>
    %417 = arith.index_cast %c3_i32_114 : i32 to index
    %c0_126 = arith.constant 0 : index
    %c0_127 = arith.constant 0 : index
    %418 = vector.load %arg11[%417, %c0_126, %c0_127] : memref<8x8x128xf32, #tpu.memory_space<vmem>>, vector<1x8x128xf32>
    %419 = vector.shape_cast %418 : vector<1x8x128xf32> to vector<8x128xf32>
    %420 = vector.shape_cast %416 : vector<8x128xf32> to vector<1x8x128xf32>
    tpu.vector_store %arg11[%417, %c0_126, %c0_127], %420 {strides = array<i32>} : memref<8x8x128xf32, #tpu.memory_space<vmem>>, vector<1x8x128xf32>,
    %cst_128 = arith.constant dense<0xFF800000> : vector<8xf32>
    %421 = vector.multi_reduction <maximumf>, %416, %cst_128 [1] : vector<8x128xf32> to vector<8xf32>
    %422 = vector.shape_cast %421 : vector<8xf32> to vector<8x1xf32>
    %423 = vector.broadcast %422 : vector<8x1xf32> to vector<8x128xf32>
    %424 = arith.cmpf oeq, %416, %423 : vector<8x128xf32>
    %c128_i32_129 = arith.constant 128 : i32
    %425 = vector.broadcast %c128_i32_129 : i32 to vector<8x128xi32>
    %426 = arith.select %424, %270, %425 : vector<8x128xi1>, vector<8x128xi32>
    %cst_130 = arith.constant dense<2147483647> : vector<8xi32>
    %427 = vector.multi_reduction <minsi>, %426, %cst_130 [1] : vector<8x128xi32> to vector<8xi32>
    %428 = vector.shape_cast %427 : vector<8xi32> to vector<8x1xi32>
    %429 = vector.broadcast %428 : vector<8x1xi32> to vector<8x128xi32>
    %430 = arith.cmpi eq, %270, %429 : vector<8x128xi32>
    %431 = arith.extui %430 : vector<8x128xi1> to vector<8x128xi32>
    %432 = arith.sitofp %431 : vector<8x128xi32> to vector<8x128xf32>
    %c1_i32_131 = arith.constant 1 : i32
    %433 = arith.subi %c3_i32_114, %c1_i32_131 : i32
    %434 = arith.index_cast %433 : i32 to index
    %435 = memref.load %arg1[%434] : memref<7xi32, #tpu.memory_space<smem>>
    %c1_i32_132 = arith.constant 1 : i32
    %436 = arith.cmpi eq, %435, %c1_i32_132 : i32
    %437 = arith.index_cast %c3_i32_114 : i32 to index
    %c0_133 = arith.constant 0 : index
    %c0_134 = arith.constant 0 : index
    %438 = vector.load %arg3[%437, %c0_133, %c0_134] : memref<8x8x128xf32, #tpu.memory_space<vmem>>, vector<1x8x128xf32>
    %439 = vector.shape_cast %438 : vector<1x8x128xf32> to vector<8x128xf32>
    %440 = arith.select %436, %439, %432 : vector<8x128xf32>
    %c4_i32_135 = arith.constant 4 : i32
    %c0_136 = arith.constant 0 : index
    %c0_137 = arith.constant 0 : index
    %441 = vector.load %arg13[%c0_136, %c0_137] : memref<8x256xf32, #tpu.memory_space<vmem>>, vector<8x128xf32>
    tpu.vector_store %arg13[%c0_136, %c0_137], %440 {strides = array<i32>} : memref<8x256xf32, #tpu.memory_space<vmem>>, vector<8x128xf32>,
    %c0_138 = arith.constant 0 : index
    %c128_139 = arith.constant 128 : index
    %442 = vector.load %arg13[%c0_138, %c128_139] : memref<8x256xf32, #tpu.memory_space<vmem>>, vector<8x128xf32>
    tpu.vector_store %arg13[%c0_138, %c128_139], %414 {strides = array<i32>} : memref<8x256xf32, #tpu.memory_space<vmem>>, vector<8x128xf32>,
    %c0_140 = arith.constant 0 : index
    %c0_141 = arith.constant 0 : index
    %443 = vector.load %arg13[%c0_140, %c0_141] : memref<8x256xf32, #tpu.memory_space<vmem>>, vector<8x256xf32>
    %cst_142 = arith.constant dense<0.000000e+00> : vector<8x512xf32>
    %444 = tpu.matmul %443, %1, %cst_142 {dimension_numbers = #tpu.dot_dimension_numbers<[1], [0], [0], [1], [0, 0, 1, 1], [], []>} : vector<8x256xf32>, vector<256x512xf32>, vector<8x512xf32> -> vector<8x512xf32>
    %445 = arith.addf %444, %5 : vector<8x512xf32>
    %446 = vector.extract_strided_slice %445 {offsets = [0, 0], sizes = [8, 128], strides = [1, 1]} : vector<8x512xf32> to vector<8x128xf32>
    %447 = arith.negf %446 : vector<8x128xf32>
    %448 = math.exp %447 : vector<8x128xf32>
    %cst_143 = arith.constant 1.000000e+00 : f32
    %449 = vector.broadcast %cst_143 : f32 to vector<8x128xf32>
    %450 = arith.addf %449, %448 : vector<8x128xf32>
    %451 = arith.divf %449, %450 : vector<8x128xf32>
    %452 = vector.extract_strided_slice %445 {offsets = [0, 128], sizes = [8, 128], strides = [1, 1]} : vector<8x512xf32> to vector<8x128xf32>
    %453 = arith.negf %452 : vector<8x128xf32>
    %454 = math.exp %453 : vector<8x128xf32>
    %cst_144 = arith.constant 1.000000e+00 : f32
    %455 = vector.broadcast %cst_144 : f32 to vector<8x128xf32>
    %456 = arith.addf %455, %454 : vector<8x128xf32>
    %457 = arith.divf %455, %456 : vector<8x128xf32>
    %458 = vector.extract_strided_slice %445 {offsets = [0, 256], sizes = [8, 128], strides = [1, 1]} : vector<8x512xf32> to vector<8x128xf32>
    %459 = math.tanh %458 : vector<8x128xf32>
    %460 = vector.extract_strided_slice %445 {offsets = [0, 384], sizes = [8, 128], strides = [1, 1]} : vector<8x512xf32> to vector<8x128xf32>
    %461 = arith.negf %460 : vector<8x128xf32>
    %462 = math.exp %461 : vector<8x128xf32>
    %cst_145 = arith.constant 1.000000e+00 : f32
    %463 = vector.broadcast %cst_145 : f32 to vector<8x128xf32>
    %464 = arith.addf %463, %462 : vector<8x128xf32>
    %465 = arith.divf %463, %464 : vector<8x128xf32>
    %466 = arith.mulf %457, %412 : vector<8x128xf32>
    %467 = arith.mulf %451, %459 : vector<8x128xf32>
    %468 = arith.addf %466, %467 : vector<8x128xf32>
    %469 = math.tanh %468 : vector<8x128xf32>
    %470 = arith.mulf %465, %469 : vector<8x128xf32>
    %cst_146 = arith.constant dense<0.000000e+00> : vector<8x128xf32>
    %471 = tpu.matmul %470, %2, %cst_146 {dimension_numbers = #tpu.dot_dimension_numbers<[1], [0], [0], [1], [0, 0, 1, 1], [], []>} : vector<8x128xf32>, vector<128x128xf32>, vector<8x128xf32> -> vector<8x128xf32>
    %472 = arith.addf %471, %8 : vector<8x128xf32>
    %473 = arith.index_cast %c4_i32_135 : i32 to index
    %c0_147 = arith.constant 0 : index
    %c0_148 = arith.constant 0 : index
    %474 = vector.load %arg11[%473, %c0_147, %c0_148] : memref<8x8x128xf32, #tpu.memory_space<vmem>>, vector<1x8x128xf32>
    %475 = vector.shape_cast %474 : vector<1x8x128xf32> to vector<8x128xf32>
    %476 = vector.shape_cast %472 : vector<8x128xf32> to vector<1x8x128xf32>
    tpu.vector_store %arg11[%473, %c0_147, %c0_148], %476 {strides = array<i32>} : memref<8x8x128xf32, #tpu.memory_space<vmem>>, vector<1x8x128xf32>,
    %cst_149 = arith.constant dense<0xFF800000> : vector<8xf32>
    %477 = vector.multi_reduction <maximumf>, %472, %cst_149 [1] : vector<8x128xf32> to vector<8xf32>
    %478 = vector.shape_cast %477 : vector<8xf32> to vector<8x1xf32>
    %479 = vector.broadcast %478 : vector<8x1xf32> to vector<8x128xf32>
    %480 = arith.cmpf oeq, %472, %479 : vector<8x128xf32>
    %c128_i32_150 = arith.constant 128 : i32
    %481 = vector.broadcast %c128_i32_150 : i32 to vector<8x128xi32>
    %482 = arith.select %480, %270, %481 : vector<8x128xi1>, vector<8x128xi32>
    %cst_151 = arith.constant dense<2147483647> : vector<8xi32>
    %483 = vector.multi_reduction <minsi>, %482, %cst_151 [1] : vector<8x128xi32> to vector<8xi32>
    %484 = vector.shape_cast %483 : vector<8xi32> to vector<8x1xi32>
    %485 = vector.broadcast %484 : vector<8x1xi32> to vector<8x128xi32>
    %486 = arith.cmpi eq, %270, %485 : vector<8x128xi32>
    %487 = arith.extui %486 : vector<8x128xi1> to vector<8x128xi32>
    %488 = arith.sitofp %487 : vector<8x128xi32> to vector<8x128xf32>
    %c1_i32_152 = arith.constant 1 : i32
    %489 = arith.subi %c4_i32_135, %c1_i32_152 : i32
    %490 = arith.index_cast %489 : i32 to index
    %491 = memref.load %arg1[%490] : memref<7xi32, #tpu.memory_space<smem>>
    %c1_i32_153 = arith.constant 1 : i32
    %492 = arith.cmpi eq, %491, %c1_i32_153 : i32
    %493 = arith.index_cast %c4_i32_135 : i32 to index
    %c0_154 = arith.constant 0 : index
    %c0_155 = arith.constant 0 : index
    %494 = vector.load %arg3[%493, %c0_154, %c0_155] : memref<8x8x128xf32, #tpu.memory_space<vmem>>, vector<1x8x128xf32>
    %495 = vector.shape_cast %494 : vector<1x8x128xf32> to vector<8x128xf32>
    %496 = arith.select %492, %495, %488 : vector<8x128xf32>
    %c5_i32_156 = arith.constant 5 : i32
    %c0_157 = arith.constant 0 : index
    %c0_158 = arith.constant 0 : index
    %497 = vector.load %arg13[%c0_157, %c0_158] : memref<8x256xf32, #tpu.memory_space<vmem>>, vector<8x128xf32>
    tpu.vector_store %arg13[%c0_157, %c0_158], %496 {strides = array<i32>} : memref<8x256xf32, #tpu.memory_space<vmem>>, vector<8x128xf32>,
    %c0_159 = arith.constant 0 : index
    %c128_160 = arith.constant 128 : index
    %498 = vector.load %arg13[%c0_159, %c128_160] : memref<8x256xf32, #tpu.memory_space<vmem>>, vector<8x128xf32>
    tpu.vector_store %arg13[%c0_159, %c128_160], %470 {strides = array<i32>} : memref<8x256xf32, #tpu.memory_space<vmem>>, vector<8x128xf32>,
    %c0_161 = arith.constant 0 : index
    %c0_162 = arith.constant 0 : index
    %499 = vector.load %arg13[%c0_161, %c0_162] : memref<8x256xf32, #tpu.memory_space<vmem>>, vector<8x256xf32>
    %cst_163 = arith.constant dense<0.000000e+00> : vector<8x512xf32>
    %500 = tpu.matmul %499, %1, %cst_163 {dimension_numbers = #tpu.dot_dimension_numbers<[1], [0], [0], [1], [0, 0, 1, 1], [], []>} : vector<8x256xf32>, vector<256x512xf32>, vector<8x512xf32> -> vector<8x512xf32>
    %501 = arith.addf %500, %5 : vector<8x512xf32>
    %502 = vector.extract_strided_slice %501 {offsets = [0, 0], sizes = [8, 128], strides = [1, 1]} : vector<8x512xf32> to vector<8x128xf32>
    %503 = arith.negf %502 : vector<8x128xf32>
    %504 = math.exp %503 : vector<8x128xf32>
    %cst_164 = arith.constant 1.000000e+00 : f32
    %505 = vector.broadcast %cst_164 : f32 to vector<8x128xf32>
    %506 = arith.addf %505, %504 : vector<8x128xf32>
    %507 = arith.divf %505, %506 : vector<8x128xf32>
    %508 = vector.extract_strided_slice %501 {offsets = [0, 128], sizes = [8, 128], strides = [1, 1]} : vector<8x512xf32> to vector<8x128xf32>
    %509 = arith.negf %508 : vector<8x128xf32>
    %510 = math.exp %509 : vector<8x128xf32>
    %cst_165 = arith.constant 1.000000e+00 : f32
    %511 = vector.broadcast %cst_165 : f32 to vector<8x128xf32>
    %512 = arith.addf %511, %510 : vector<8x128xf32>
    %513 = arith.divf %511, %512 : vector<8x128xf32>
    %514 = vector.extract_strided_slice %501 {offsets = [0, 256], sizes = [8, 128], strides = [1, 1]} : vector<8x512xf32> to vector<8x128xf32>
    %515 = math.tanh %514 : vector<8x128xf32>
    %516 = vector.extract_strided_slice %501 {offsets = [0, 384], sizes = [8, 128], strides = [1, 1]} : vector<8x512xf32> to vector<8x128xf32>
    %517 = arith.negf %516 : vector<8x128xf32>
    %518 = math.exp %517 : vector<8x128xf32>
    %cst_166 = arith.constant 1.000000e+00 : f32
    %519 = vector.broadcast %cst_166 : f32 to vector<8x128xf32>
    %520 = arith.addf %519, %518 : vector<8x128xf32>
    %521 = arith.divf %519, %520 : vector<8x128xf32>
    %522 = arith.mulf %513, %468 : vector<8x128xf32>
    %523 = arith.mulf %507, %515 : vector<8x128xf32>
    %524 = arith.addf %522, %523 : vector<8x128xf32>
    %525 = math.tanh %524 : vector<8x128xf32>
    %526 = arith.mulf %521, %525 : vector<8x128xf32>
    %cst_167 = arith.constant dense<0.000000e+00> : vector<8x128xf32>
    %527 = tpu.matmul %526, %2, %cst_167 {dimension_numbers = #tpu.dot_dimension_numbers<[1], [0], [0], [1], [0, 0, 1, 1], [], []>} : vector<8x128xf32>, vector<128x128xf32>, vector<8x128xf32> -> vector<8x128xf32>
    %528 = arith.addf %527, %8 : vector<8x128xf32>
    %529 = arith.index_cast %c5_i32_156 : i32 to index
    %c0_168 = arith.constant 0 : index
    %c0_169 = arith.constant 0 : index
    %530 = vector.load %arg11[%529, %c0_168, %c0_169] : memref<8x8x128xf32, #tpu.memory_space<vmem>>, vector<1x8x128xf32>
    %531 = vector.shape_cast %530 : vector<1x8x128xf32> to vector<8x128xf32>
    %532 = vector.shape_cast %528 : vector<8x128xf32> to vector<1x8x128xf32>
    tpu.vector_store %arg11[%529, %c0_168, %c0_169], %532 {strides = array<i32>} : memref<8x8x128xf32, #tpu.memory_space<vmem>>, vector<1x8x128xf32>,
    %cst_170 = arith.constant dense<0xFF800000> : vector<8xf32>
    %533 = vector.multi_reduction <maximumf>, %528, %cst_170 [1] : vector<8x128xf32> to vector<8xf32>
    %534 = vector.shape_cast %533 : vector<8xf32> to vector<8x1xf32>
    %535 = vector.broadcast %534 : vector<8x1xf32> to vector<8x128xf32>
    %536 = arith.cmpf oeq, %528, %535 : vector<8x128xf32>
    %c128_i32_171 = arith.constant 128 : i32
    %537 = vector.broadcast %c128_i32_171 : i32 to vector<8x128xi32>
    %538 = arith.select %536, %270, %537 : vector<8x128xi1>, vector<8x128xi32>
    %cst_172 = arith.constant dense<2147483647> : vector<8xi32>
    %539 = vector.multi_reduction <minsi>, %538, %cst_172 [1] : vector<8x128xi32> to vector<8xi32>
    %540 = vector.shape_cast %539 : vector<8xi32> to vector<8x1xi32>
    %541 = vector.broadcast %540 : vector<8x1xi32> to vector<8x128xi32>
    %542 = arith.cmpi eq, %270, %541 : vector<8x128xi32>
    %543 = arith.extui %542 : vector<8x128xi1> to vector<8x128xi32>
    %544 = arith.sitofp %543 : vector<8x128xi32> to vector<8x128xf32>
    %c1_i32_173 = arith.constant 1 : i32
    %545 = arith.subi %c5_i32_156, %c1_i32_173 : i32
    %546 = arith.index_cast %545 : i32 to index
    %547 = memref.load %arg1[%546] : memref<7xi32, #tpu.memory_space<smem>>
    %c1_i32_174 = arith.constant 1 : i32
    %548 = arith.cmpi eq, %547, %c1_i32_174 : i32
    %549 = arith.index_cast %c5_i32_156 : i32 to index
    %c0_175 = arith.constant 0 : index
    %c0_176 = arith.constant 0 : index
    %550 = vector.load %arg3[%549, %c0_175, %c0_176] : memref<8x8x128xf32, #tpu.memory_space<vmem>>, vector<1x8x128xf32>
    %551 = vector.shape_cast %550 : vector<1x8x128xf32> to vector<8x128xf32>
    %552 = arith.select %548, %551, %544 : vector<8x128xf32>
    %c6_i32_177 = arith.constant 6 : i32
    %c0_178 = arith.constant 0 : index
    %c0_179 = arith.constant 0 : index
    %553 = vector.load %arg13[%c0_178, %c0_179] : memref<8x256xf32, #tpu.memory_space<vmem>>, vector<8x128xf32>
    tpu.vector_store %arg13[%c0_178, %c0_179], %552 {strides = array<i32>} : memref<8x256xf32, #tpu.memory_space<vmem>>, vector<8x128xf32>,
    %c0_180 = arith.constant 0 : index
    %c128_181 = arith.constant 128 : index
    %554 = vector.load %arg13[%c0_180, %c128_181] : memref<8x256xf32, #tpu.memory_space<vmem>>, vector<8x128xf32>
    tpu.vector_store %arg13[%c0_180, %c128_181], %526 {strides = array<i32>} : memref<8x256xf32, #tpu.memory_space<vmem>>, vector<8x128xf32>,
    %c0_182 = arith.constant 0 : index
    %c0_183 = arith.constant 0 : index
    %555 = vector.load %arg13[%c0_182, %c0_183] : memref<8x256xf32, #tpu.memory_space<vmem>>, vector<8x256xf32>
    %cst_184 = arith.constant dense<0.000000e+00> : vector<8x512xf32>
    %556 = tpu.matmul %555, %1, %cst_184 {dimension_numbers = #tpu.dot_dimension_numbers<[1], [0], [0], [1], [0, 0, 1, 1], [], []>} : vector<8x256xf32>, vector<256x512xf32>, vector<8x512xf32> -> vector<8x512xf32>
    %557 = arith.addf %556, %5 : vector<8x512xf32>
    %558 = vector.extract_strided_slice %557 {offsets = [0, 0], sizes = [8, 128], strides = [1, 1]} : vector<8x512xf32> to vector<8x128xf32>
    %559 = arith.negf %558 : vector<8x128xf32>
    %560 = math.exp %559 : vector<8x128xf32>
    %cst_185 = arith.constant 1.000000e+00 : f32
    %561 = vector.broadcast %cst_185 : f32 to vector<8x128xf32>
    %562 = arith.addf %561, %560 : vector<8x128xf32>
    %563 = arith.divf %561, %562 : vector<8x128xf32>
    %564 = vector.extract_strided_slice %557 {offsets = [0, 128], sizes = [8, 128], strides = [1, 1]} : vector<8x512xf32> to vector<8x128xf32>
    %565 = arith.negf %564 : vector<8x128xf32>
    %566 = math.exp %565 : vector<8x128xf32>
    %cst_186 = arith.constant 1.000000e+00 : f32
    %567 = vector.broadcast %cst_186 : f32 to vector<8x128xf32>
    %568 = arith.addf %567, %566 : vector<8x128xf32>
    %569 = arith.divf %567, %568 : vector<8x128xf32>
    %570 = vector.extract_strided_slice %557 {offsets = [0, 256], sizes = [8, 128], strides = [1, 1]} : vector<8x512xf32> to vector<8x128xf32>
    %571 = math.tanh %570 : vector<8x128xf32>
    %572 = vector.extract_strided_slice %557 {offsets = [0, 384], sizes = [8, 128], strides = [1, 1]} : vector<8x512xf32> to vector<8x128xf32>
    %573 = arith.negf %572 : vector<8x128xf32>
    %574 = math.exp %573 : vector<8x128xf32>
    %cst_187 = arith.constant 1.000000e+00 : f32
    %575 = vector.broadcast %cst_187 : f32 to vector<8x128xf32>
    %576 = arith.addf %575, %574 : vector<8x128xf32>
    %577 = arith.divf %575, %576 : vector<8x128xf32>
    %578 = arith.mulf %569, %524 : vector<8x128xf32>
    %579 = arith.mulf %563, %571 : vector<8x128xf32>
    %580 = arith.addf %578, %579 : vector<8x128xf32>
    %581 = math.tanh %580 : vector<8x128xf32>
    %582 = arith.mulf %577, %581 : vector<8x128xf32>
    %cst_188 = arith.constant dense<0.000000e+00> : vector<8x128xf32>
    %583 = tpu.matmul %582, %2, %cst_188 {dimension_numbers = #tpu.dot_dimension_numbers<[1], [0], [0], [1], [0, 0, 1, 1], [], []>} : vector<8x128xf32>, vector<128x128xf32>, vector<8x128xf32> -> vector<8x128xf32>
    %584 = arith.addf %583, %8 : vector<8x128xf32>
    %585 = arith.index_cast %c6_i32_177 : i32 to index
    %c0_189 = arith.constant 0 : index
    %c0_190 = arith.constant 0 : index
    %586 = vector.load %arg11[%585, %c0_189, %c0_190] : memref<8x8x128xf32, #tpu.memory_space<vmem>>, vector<1x8x128xf32>
    %587 = vector.shape_cast %586 : vector<1x8x128xf32> to vector<8x128xf32>
    %588 = vector.shape_cast %584 : vector<8x128xf32> to vector<1x8x128xf32>
    tpu.vector_store %arg11[%585, %c0_189, %c0_190], %588 {strides = array<i32>} : memref<8x8x128xf32, #tpu.memory_space<vmem>>, vector<1x8x128xf32>,
    %cst_191 = arith.constant dense<0xFF800000> : vector<8xf32>
    %589 = vector.multi_reduction <maximumf>, %584, %cst_191 [1] : vector<8x128xf32> to vector<8xf32>
    %590 = vector.shape_cast %589 : vector<8xf32> to vector<8x1xf32>
    %591 = vector.broadcast %590 : vector<8x1xf32> to vector<8x128xf32>
    %592 = arith.cmpf oeq, %584, %591 : vector<8x128xf32>
    %c128_i32_192 = arith.constant 128 : i32
    %593 = vector.broadcast %c128_i32_192 : i32 to vector<8x128xi32>
    %594 = arith.select %592, %270, %593 : vector<8x128xi1>, vector<8x128xi32>
    %cst_193 = arith.constant dense<2147483647> : vector<8xi32>
    %595 = vector.multi_reduction <minsi>, %594, %cst_193 [1] : vector<8x128xi32> to vector<8xi32>
    %596 = vector.shape_cast %595 : vector<8xi32> to vector<8x1xi32>
    %597 = vector.broadcast %596 : vector<8x1xi32> to vector<8x128xi32>
    %598 = arith.cmpi eq, %270, %597 : vector<8x128xi32>
    %599 = arith.extui %598 : vector<8x128xi1> to vector<8x128xi32>
    %600 = arith.sitofp %599 : vector<8x128xi32> to vector<8x128xf32>
    %c1_i32_194 = arith.constant 1 : i32
    %601 = arith.subi %c6_i32_177, %c1_i32_194 : i32
    %602 = arith.index_cast %601 : i32 to index
    %603 = memref.load %arg1[%602] : memref<7xi32, #tpu.memory_space<smem>>
    %c1_i32_195 = arith.constant 1 : i32
    %604 = arith.cmpi eq, %603, %c1_i32_195 : i32
    %605 = arith.index_cast %c6_i32_177 : i32 to index
    %c0_196 = arith.constant 0 : index
    %c0_197 = arith.constant 0 : index
    %606 = vector.load %arg3[%605, %c0_196, %c0_197] : memref<8x8x128xf32, #tpu.memory_space<vmem>>, vector<1x8x128xf32>
    %607 = vector.shape_cast %606 : vector<1x8x128xf32> to vector<8x128xf32>
    %608 = arith.select %604, %607, %600 : vector<8x128xf32>
    %c7_i32_198 = arith.constant 7 : i32
    %c0_199 = arith.constant 0 : index
    %c0_200 = arith.constant 0 : index
    %609 = vector.load %arg13[%c0_199, %c0_200] : memref<8x256xf32, #tpu.memory_space<vmem>>, vector<8x128xf32>
    tpu.vector_store %arg13[%c0_199, %c0_200], %608 {strides = array<i32>} : memref<8x256xf32, #tpu.memory_space<vmem>>, vector<8x128xf32>,
    %c0_201 = arith.constant 0 : index
    %c128_202 = arith.constant 128 : index
    %610 = vector.load %arg13[%c0_201, %c128_202] : memref<8x256xf32, #tpu.memory_space<vmem>>, vector<8x128xf32>
    tpu.vector_store %arg13[%c0_201, %c128_202], %582 {strides = array<i32>} : memref<8x256xf32, #tpu.memory_space<vmem>>, vector<8x128xf32>,
    %c0_203 = arith.constant 0 : index
    %c0_204 = arith.constant 0 : index
    %611 = vector.load %arg13[%c0_203, %c0_204] : memref<8x256xf32, #tpu.memory_space<vmem>>, vector<8x256xf32>
    %cst_205 = arith.constant dense<0.000000e+00> : vector<8x512xf32>
    %612 = tpu.matmul %611, %1, %cst_205 {dimension_numbers = #tpu.dot_dimension_numbers<[1], [0], [0], [1], [0, 0, 1, 1], [], []>} : vector<8x256xf32>, vector<256x512xf32>, vector<8x512xf32> -> vector<8x512xf32>
    %613 = arith.addf %612, %5 : vector<8x512xf32>
    %614 = vector.extract_strided_slice %613 {offsets = [0, 0], sizes = [8, 128], strides = [1, 1]} : vector<8x512xf32> to vector<8x128xf32>
    %615 = arith.negf %614 : vector<8x128xf32>
    %616 = math.exp %615 : vector<8x128xf32>
    %cst_206 = arith.constant 1.000000e+00 : f32
    %617 = vector.broadcast %cst_206 : f32 to vector<8x128xf32>
    %618 = arith.addf %617, %616 : vector<8x128xf32>
    %619 = arith.divf %617, %618 : vector<8x128xf32>
    %620 = vector.extract_strided_slice %613 {offsets = [0, 128], sizes = [8, 128], strides = [1, 1]} : vector<8x512xf32> to vector<8x128xf32>
    %621 = arith.negf %620 : vector<8x128xf32>
    %622 = math.exp %621 : vector<8x128xf32>
    %cst_207 = arith.constant 1.000000e+00 : f32
    %623 = vector.broadcast %cst_207 : f32 to vector<8x128xf32>
    %624 = arith.addf %623, %622 : vector<8x128xf32>
    %625 = arith.divf %623, %624 : vector<8x128xf32>
    %626 = vector.extract_strided_slice %613 {offsets = [0, 256], sizes = [8, 128], strides = [1, 1]} : vector<8x512xf32> to vector<8x128xf32>
    %627 = math.tanh %626 : vector<8x128xf32>
    %628 = vector.extract_strided_slice %613 {offsets = [0, 384], sizes = [8, 128], strides = [1, 1]} : vector<8x512xf32> to vector<8x128xf32>
    %629 = arith.negf %628 : vector<8x128xf32>
    %630 = math.exp %629 : vector<8x128xf32>
    %cst_208 = arith.constant 1.000000e+00 : f32
    %631 = vector.broadcast %cst_208 : f32 to vector<8x128xf32>
    %632 = arith.addf %631, %630 : vector<8x128xf32>
    %633 = arith.divf %631, %632 : vector<8x128xf32>
    %634 = arith.mulf %625, %580 : vector<8x128xf32>
    %635 = arith.mulf %619, %627 : vector<8x128xf32>
    %636 = arith.addf %634, %635 : vector<8x128xf32>
    %637 = math.tanh %636 : vector<8x128xf32>
    %638 = arith.mulf %633, %637 : vector<8x128xf32>
    %cst_209 = arith.constant dense<0.000000e+00> : vector<8x128xf32>
    %639 = tpu.matmul %638, %2, %cst_209 {dimension_numbers = #tpu.dot_dimension_numbers<[1], [0], [0], [1], [0, 0, 1, 1], [], []>} : vector<8x128xf32>, vector<128x128xf32>, vector<8x128xf32> -> vector<8x128xf32>
    %640 = arith.addf %639, %8 : vector<8x128xf32>
    %641 = arith.index_cast %c7_i32_198 : i32 to index
    %c0_210 = arith.constant 0 : index
    %c0_211 = arith.constant 0 : index
    %642 = vector.load %arg11[%641, %c0_210, %c0_211] : memref<8x8x128xf32, #tpu.memory_space<vmem>>, vector<1x8x128xf32>
    %643 = vector.shape_cast %642 : vector<1x8x128xf32> to vector<8x128xf32>
    %644 = vector.shape_cast %640 : vector<8x128xf32> to vector<1x8x128xf32>
    tpu.vector_store %arg11[%641, %c0_210, %c0_211], %644 {strides = array<i32>} : memref<8x8x128xf32, #tpu.memory_space<vmem>>, vector<1x8x128xf32>,
    %cst_212 = arith.constant dense<0xFF800000> : vector<8xf32>
    %645 = vector.multi_reduction <maximumf>, %640, %cst_212 [1] : vector<8x128xf32> to vector<8xf32>
    %646 = vector.shape_cast %645 : vector<8xf32> to vector<8x1xf32>
    %647 = vector.broadcast %646 : vector<8x1xf32> to vector<8x128xf32>
    %648 = arith.cmpf oeq, %640, %647 : vector<8x128xf32>
    %c128_i32_213 = arith.constant 128 : i32
    %649 = vector.broadcast %c128_i32_213 : i32 to vector<8x128xi32>
    %650 = arith.select %648, %270, %649 : vector<8x128xi1>, vector<8x128xi32>
    %cst_214 = arith.constant dense<2147483647> : vector<8xi32>
    %651 = vector.multi_reduction <minsi>, %650, %cst_214 [1] : vector<8x128xi32> to vector<8xi32>
    %652 = vector.shape_cast %651 : vector<8xi32> to vector<8x1xi32>
    %653 = vector.broadcast %652 : vector<8x1xi32> to vector<8x128xi32>
    %654 = arith.cmpi eq, %270, %653 : vector<8x128xi32>
    %655 = arith.extui %654 : vector<8x128xi1> to vector<8x128xi32>
    %656 = arith.sitofp %655 : vector<8x128xi32> to vector<8x128xf32>
    %c1_i32_215 = arith.constant 1 : i32
    %657 = arith.subi %c7_i32_198, %c1_i32_215 : i32
    %658 = arith.index_cast %657 : i32 to index
    %659 = memref.load %arg1[%658] : memref<7xi32, #tpu.memory_space<smem>>
    %c1_i32_216 = arith.constant 1 : i32
    %660 = arith.cmpi eq, %659, %c1_i32_216 : i32
    %661 = arith.index_cast %c7_i32_198 : i32 to index
    %c0_217 = arith.constant 0 : index
    %c0_218 = arith.constant 0 : index
    %662 = vector.load %arg3[%661, %c0_217, %c0_218] : memref<8x8x128xf32, #tpu.memory_space<vmem>>, vector<1x8x128xf32>
    %663 = vector.shape_cast %662 : vector<1x8x128xf32> to vector<8x128xf32>
    %664 = arith.select %660, %663, %656 : vector<8x128xf32>
    %c7_i32_219 = arith.constant 7 : i32
    return
  }
  func.func @transform_0(%arg0: i32, %arg1: memref<7xi32, #tpu.memory_space<smem>>) -> (i32, i32) {
    %c0_i32 = arith.constant 0 : i32
    %c0_i32_0 = arith.constant 0 : i32
    %c0_i32_1 = arith.constant 0 : i32
    return %c0_i32, %c0_i32_0 : i32, i32
  }
  func.func @transform_1(%arg0: i32, %arg1: memref<7xi32, #tpu.memory_space<smem>>) -> (i32, i32, i32) {
    %c0_i32 = arith.constant 0 : i32
    %c0_i32_0 = arith.constant 0 : i32
    %c0_i32_1 = arith.constant 0 : i32
    %c0_i32_2 = arith.constant 0 : i32
    return %c0_i32, %c0_i32_0, %c0_i32_1 : i32, i32, i32
  }
  func.func @transform_2(%arg0: i32, %arg1: memref<7xi32, #tpu.memory_space<smem>>) -> (i32, i32) {
    %c0_i32 = arith.constant 0 : i32
    %c0_i32_0 = arith.constant 0 : i32
    %c0_i32_1 = arith.constant 0 : i32
    return %c0_i32, %c0_i32_0 : i32, i32
  }
  func.func @transform_3(%arg0: i32, %arg1: memref<7xi32, #tpu.memory_space<smem>>) -> (i32, i32) {
    %c0_i32 = arith.constant 0 : i32
    %c0_i32_0 = arith.constant 0 : i32
    %c0_i32_1 = arith.constant 0 : i32
    return %c0_i32, %c0_i32_0 : i32, i32
  }
  func.func @transform_4(%arg0: i32, %arg1: memref<7xi32, #tpu.memory_space<smem>>) -> (i32, i32) {
    %c0_i32 = arith.constant 0 : i32
    %c0_i32_0 = arith.constant 0 : i32
    %c0_i32_1 = arith.constant 0 : i32
    return %c0_i32, %c0_i32_0 : i32, i32
  }
  func.func @transform_5(%arg0: i32, %arg1: memref<7xi32, #tpu.memory_space<smem>>) -> (i32, i32) {
    %c0_i32 = arith.constant 0 : i32
    %c0_i32_0 = arith.constant 0 : i32
    %c0_i32_1 = arith.constant 0 : i32
    return %c0_i32, %c0_i32_0 : i32, i32
  }
  func.func @transform_6(%arg0: i32, %arg1: memref<7xi32, #tpu.memory_space<smem>>) -> (i32, i32) {
    %c0_i32 = arith.constant 0 : i32
    %c0_i32_0 = arith.constant 0 : i32
    %c0_i32_1 = arith.constant 0 : i32
    return %c0_i32, %c0_i32_0 : i32, i32
  }
  func.func @transform_7(%arg0: i32, %arg1: memref<7xi32, #tpu.memory_space<smem>>) -> (i32, i32) {
    %c0_i32 = arith.constant 0 : i32
    %c0_i32_0 = arith.constant 0 : i32
    %c0_i32_1 = arith.constant 0 : i32
    return %c0_i32, %c0_i32_0 : i32, i32
  }
  func.func @transform_8(%arg0: i32, %arg1: memref<7xi32, #tpu.memory_space<smem>>) -> (i32, i32) {
    %c0_i32 = arith.constant 0 : i32
    %c0_i32_0 = arith.constant 0 : i32
    %c0_i32_1 = arith.constant 0 : i32
    return %c0_i32, %c0_i32_0 : i32, i32
  }
  func.func @transform_9(%arg0: i32, %arg1: memref<7xi32, #tpu.memory_space<smem>>) -> (i32, i32, i32) {
    %c0_i32 = arith.constant 0 : i32
    %c0_i32_0 = arith.constant 0 : i32
    %c0_i32_1 = arith.constant 0 : i32
    %c0_i32_2 = arith.constant 0 : i32
    return %c0_i32, %c0_i32_0, %c0_i32_1 : i32, i32, i32
  }
}

</mosaic_0001>

<llo_original>
// kernel: tpu_custom_call.1
$region0: #{tpu_custom_call.1}
  #allocation0 [shape = 'u32[]', space=smem, size = 0x4, offset = 0x4, fixed_abs, tag = 'smem constant byte address 0x4 - core index']
  #allocation1 [shape = 'u32[144,128]{1,0:T(1,128)}', space=vmem, size = 0x12000, scoped, tag = 'internal scratch']
  #allocation2 [shape = 'f32[64,512]{1,0:T(8,128)}', space=vmem, size = 0x20000, scoped, tag = 'scratch operand']
  #allocation3 [shape = 'f32[8,256]{1,0:T(8,128)}', space=vmem, size = 0x2000, scoped, tag = 'scratch operand']
  #allocation4 [shape = 's32[1]{0}', space=sflag, size = 0x4, scoped, tag = 'scoped memory for tpu_custom_call.1']
  #allocation5 [shape = 'u8[512]{0}', space=smem, size = 0x200, scoped, tag = 'prefetched SMEM operand 0']
  %s0 = inlined_call_operand.hbm [shape: s32[7], index: 0, kind: input, shape index: {}]
  %s1 = inlined_call_operand.hbm [shape: f32[64,128], index: 1, kind: input, shape index: {}]
  %s2 = inlined_call_operand.hbm [shape: f32[8,8,128], index: 2, kind: input, shape index: {}]
  %s3 = inlined_call_operand.hbm [shape: f32[128,512], index: 3, kind: input, shape index: {}]
  %s4 = inlined_call_operand.hbm [shape: f32[128,512], index: 4, kind: input, shape index: {}]
  %s5 = inlined_call_operand.vmem [shape: f32[1,512], index: 5, kind: input, shape index: {}]
  %s6 = inlined_call_operand.hbm [shape: f32[256,512], index: 6, kind: input, shape index: {}]
  %s7 = inlined_call_operand.vmem [shape: f32[1,512], index: 7, kind: input, shape index: {}]
  %s8 = inlined_call_operand.hbm [shape: f32[128,128], index: 8, kind: input, shape index: {}]
  %s9 = inlined_call_operand.vmem [shape: f32[1,128], index: 9, kind: input, shape index: {}]
  %s10 = inlined_call_operand.hbm [shape: f32[8,8,128], index: 10, kind: output, shape index: {}]
  %s11 = sld [smem:[#allocation0]]
  $region70: #{tpu_custom_call.1} parent=0
    _
  %s13 = ssub.s32 1, %s11
  %s14 = scalar_select 0, %s13, %s11
  %16 = dma.hbm_to_smem %s0, 16, [#allocation5], [#allocation4]
  %17 = dma.done [#allocation4], 16
  %18 = sfence
  $region1: #{tpu_custom_call.1} parent=0
    #allocation6 [shape = 'u8[32768]{0}', space=vmem, size = 0x8000, scoped, tag = 'input window, operand 1, single buffered']
    #allocation7 [shape = 's32[1]{0}', space=sflag, size = 0x4, scoped, tag = 'scoped memory for tpu_custom_call.1']
    #allocation8 [shape = 's32[1]{0}', space=sflag, size = 0x4, scoped, tag = 'scoped memory for tpu_custom_call.1']
    #allocation9 [shape = 'u8[32768]{0}', space=vmem, size = 0x8000, scoped, tag = 'input window, operand 2, single buffered']
    #allocation10 [shape = 's32[1]{0}', space=sflag, size = 0x4, scoped, tag = 'scoped memory for tpu_custom_call.1']
    #allocation11 [shape = 'u8[262144]{0}', space=vmem, size = 0x40000, scoped, tag = 'input window, operand 3, single buffered']
    #allocation12 [shape = 'u8[262144]{0}', space=vmem, size = 0x40000, scoped, tag = 'input window, operand 4, single buffered']
    #allocation13 [shape = 's32[1]{0}', space=sflag, size = 0x4, scoped, tag = 'scoped memory for tpu_custom_call.1']
    #allocation14 [shape = 'u8[524288]{0}', space=vmem, size = 0x80000, scoped, tag = 'input window, operand 6, single buffered']
    #allocation15 [shape = 'u8[65536]{0}', space=vmem, size = 0x10000, scoped, tag = 'input window, operand 8, single buffered']
    #allocation16 [shape = 's32[1]{0}', space=sflag, size = 0x4, scoped, tag = 'scoped memory for tpu_custom_call.1']
    #allocation17 [shape = 'u8[32768]{0}', space=vmem, size = 0x8000, scoped, tag = 'output window, operand 0, single buffered']
    %19 = vsyncpa [#allocation7], 0
    %20 = vsyncpa [#allocation10], 0
    %21 = vsyncpa [#allocation13], 0
    %22 = vsyncpa [#allocation16], 0
    %23 = vsyncpa [#allocation8], 0
    // Predicated region
    $region2: #{tpu_custom_call.1} parent=1 // pred_check
      _
    $region3: #{tpu_custom_call.1} parent=1 // pred_check_branch
      %25 = sbr.rel (0) target = $region5
    $region4: #{tpu_custom_call.1} parent=1 // pred_region
      %s27 = ssub.s32 1024, 1024
      %28 = vsyncadd [#allocation7], %s27
      %s29 = sshll.u32 [#allocation6], 4
      %s30 = int_to_ptr.vmem [resolvable:$true] %s29
      %35 = dma.hbm_to_vmem [thread:$0]  %s1, 1024, %s30, [#allocation7], 128, 128, 8
    $region5: #{tpu_custom_call.1} parent=1 // pred_fallthru
      _
    // Predicated region
    $region6: #{tpu_custom_call.1} parent=1 // pred_check
      _
    $region7: #{tpu_custom_call.1} parent=1 // pred_check_branch
      %37 = sbr.rel (0) target = $region9
    $region8: #{tpu_custom_call.1} parent=1 // pred_region
      %s39 = ssub.s32 1024, 1024
      %40 = vsyncadd [#allocation10], %s39
      %s41 = sshll.u32 [#allocation9], 4
      %s42 = int_to_ptr.vmem [resolvable:$true] %s41
      %47 = dma.hbm_to_vmem [thread:$0]  %s2, 1024, %s42, [#allocation10], 128, 128, 8
    $region9: #{tpu_custom_call.1} parent=1 // pred_fallthru
      _
    // Predicated region
    $region10: #{tpu_custom_call.1} parent=1 // pred_check
      _
    $region11: #{tpu_custom_call.1} parent=1 // pred_check_branch
      %49 = sbr.rel (0) target = $region13
    $region12: #{tpu_custom_call.1} parent=1 // pred_region
      %s51 = ssub.s32 8192, 8192
      %52 = vsyncadd [#allocation10], %s51
      %s53 = sshll.u32 [#allocation11], 4
      %s54 = int_to_ptr.vmem [resolvable:$true] %s53
      %59 = dma.hbm_to_vmem [thread:$0]  %s3, 8192, %s54, [#allocation10], 512, 512, 32
    $region13: #{tpu_custom_call.1} parent=1 // pred_fallthru
      _
    // Predicated region
    $region14: #{tpu_custom_call.1} parent=1 // pred_check
      _
    $region15: #{tpu_custom_call.1} parent=1 // pred_check_branch
      %61 = sbr.rel (0) target = $region17
    $region16: #{tpu_custom_call.1} parent=1 // pred_region
      %s63 = ssub.s32 8192, 8192
      %64 = vsyncadd [#allocation13], %s63
      %s65 = sshll.u32 [#allocation12], 4
      %s66 = int_to_ptr.vmem [resolvable:$true] %s65
      %71 = dma.hbm_to_vmem [thread:$0]  %s4, 8192, %s66, [#allocation13], 512, 512, 32
    $region17: #{tpu_custom_call.1} parent=1 // pred_fallthru
      _
    // Predicated region
    $region18: #{tpu_custom_call.1} parent=1 // pred_check
      _
    $region19: #{tpu_custom_call.1} parent=1 // pred_check_branch
      %73 = sbr.rel (0) target = $region21
    $region20: #{tpu_custom_call.1} parent=1 // pred_region
      _
    $region21: #{tpu_custom_call.1} parent=1 // pred_fallthru
      _
    // Predicated region
    $region22: #{tpu_custom_call.1} parent=1 // pred_check
      _
    $region23: #{tpu_custom_call.1} parent=1 // pred_check_branch
      %75 = sbr.rel (0) target = $region25
    $region24: #{tpu_custom_call.1} parent=1 // pred_region
      %s77 = ssub.s32 16384, 16384
      %78 = vsyncadd [#allocation13], %s77
      %s79 = sshll.u32 [#allocation14], 4
      %s80 = int_to_ptr.vmem [resolvable:$true] %s79
      %85 = dma.hbm_to_vmem [thread:$0]  %s6, 16384, %s80, [#allocation13], 512, 512, 32
    $region25: #{tpu_custom_call.1} parent=1 // pred_fallthru
      _
    // Predicated region
    $region26: #{tpu_custom_call.1} parent=1 // pred_check
      _
    $region27: #{tpu_custom_call.1} parent=1 // pred_check_branch
      %87 = sbr.rel (0) target = $region29
    $region28: #{tpu_custom_call.1} parent=1 // pred_region
      _
    $region29: #{tpu_custom_call.1} parent=1 // pred_fallthru
      _
    // Predicated region
    $region30: #{tpu_custom_call.1} parent=1 // pred_check
      _
    $region31: #{tpu_custom_call.1} parent=1 // pred_check_branch
      %89 = sbr.rel (0) target = $region33
    $region32: #{tpu_custom_call.1} parent=1 // pred_region
      %s91 = ssub.s32 2048, 2048
      %92 = vsyncadd [#allocation16], %s91
      %s93 = sshll.u32 [#allocation15], 4
      %s94 = int_to_ptr.vmem [resolvable:$true] %s93
      %99 = dma.hbm_to_vmem [thread:$0]  %s8, 2048, %s94, [#allocation16], 128, 128, 8
    $region33: #{tpu_custom_call.1} parent=1 // pred_fallthru
      _
    // Predicated region
    $region34: #{tpu_custom_call.1} parent=1 // pred_check
      _
    $region35: #{tpu_custom_call.1} parent=1 // pred_check_branch
      %101 = sbr.rel (0) target = $region37
    $region36: #{tpu_custom_call.1} parent=1 // pred_region
      _
    $region37: #{tpu_custom_call.1} parent=1 // pred_fallthru
      _
    // Predicated region
    $region38: #{tpu_custom_call.1} parent=1 // pred_check
      _
    $region39: #{tpu_custom_call.1} parent=1 // pred_check_branch
      %103 = sbr.rel (0) target = $region41
    $region40: #{tpu_custom_call.1} parent=1 // pred_region
      %104 = dma.done [#allocation7], 1024
    $region41: #{tpu_custom_call.1} parent=1 // pred_fallthru
      _
    // Predicated region
    $region42: #{tpu_custom_call.1} parent=1 // pred_check
      _
    $region43: #{tpu_custom_call.1} parent=1 // pred_check_branch
      %106 = sbr.rel (0) target = $region45
    $region44: #{tpu_custom_call.1} parent=1 // pred_region
      %107 = dma.done [#allocation10], 1024
    $region45: #{tpu_custom_call.1} parent=1 // pred_fallthru
      _
    // Predicated region
    $region46: #{tpu_custom_call.1} parent=1 // pred_check
      _
    $region47: #{tpu_custom_call.1} parent=1 // pred_check_branch
      %109 = sbr.rel (0) target = $region49
    $region48: #{tpu_custom_call.1} parent=1 // pred_region
      %110 = dma.done [#allocation10], 8192
    $region49: #{tpu_custom_call.1} parent=1 // pred_fallthru
      _
    // Predicated region
    $region50: #{tpu_custom_call.1} parent=1 // pred_check
      _
    $region51: #{tpu_custom_call.1} parent=1 // pred_check_branch
      %112 = sbr.rel (0) target = $region53
    $region52: #{tpu_custom_call.1} parent=1 // pred_region
      %113 = dma.done [#allocation13], 8192
    $region53: #{tpu_custom_call.1} parent=1 // pred_fallthru
      _
    // Predicated region
    $region54: #{tpu_custom_call.1} parent=1 // pred_check
      _
    $region55: #{tpu_custom_call.1} parent=1 // pred_check_branch
      %115 = sbr.rel (0) target = $region57
    $region56: #{tpu_custom_call.1} parent=1 // pred_region
      %116 = dma.done [#allocation13], 16384
    $region57: #{tpu_custom_call.1} parent=1 // pred_fallthru
      _
    // Predicated region
    $region58: #{tpu_custom_call.1} parent=1 // pred_check
      _
    $region59: #{tpu_custom_call.1} parent=1 // pred_check_branch
      %118 = sbr.rel (0) target = $region61
    $region60: #{tpu_custom_call.1} parent=1 // pred_region
      %119 = dma.done [#allocation16], 2048
    $region61: #{tpu_custom_call.1} parent=1 // pred_fallthru
      _
    %v120 = vld [vmem:[#allocation12] sm:$0xff]
    %v121 = vld [vmem:[#allocation12 + $0x8] sm:$0xff]
    %v122 = vld [vmem:[#allocation12 + $0x10] sm:$0xff]
    %v123 = vld [vmem:[#allocation12 + $0x18] sm:$0xff]
    %v124 = vld [vmem:[#allocation12 + $0x20] sm:$0xff]
    %v125 = vld [vmem:[#allocation12 + $0x28] sm:$0xff]
    %v126 = vld [vmem:[#allocation12 + $0x30] sm:$0xff]
    %v127 = vld [vmem:[#allocation12 + $0x38] sm:$0xff]
    %v128 = vld [vmem:[#allocation12 + $0x40] sm:$0xff]
    %v129 = vld [vmem:[#allocation12 + $0x48] sm:$0xff]
    %v130 = vld [vmem:[#allocation12 + $0x50] sm:$0xff]
    %v131 = vld [vmem:[#allocation12 + $0x58] sm:$0xff]
    %v132 = vld [vmem:[#allocation12 + $0x60] sm:$0xff]
    %v133 = vld [vmem:[#allocation12 + $0x68] sm:$0xff]
    %v134 = vld [vmem:[#allocation12 + $0x70] sm:$0xff]
    %v135 = vld [vmem:[#allocation12 + $0x78] sm:$0xff]
    %v136 = vld [vmem:[#allocation12 + $0x80] sm:$0xff]
    %v137 = vld [vmem:[#allocation12 + $0x88] sm:$0xff]
    %v138 = vld [vmem:[#allocation12 + $0x90] sm:$0xff]
    %v139 = vld [vmem:[#allocation12 + $0x98] sm:$0xff]
    %v140 = vld [vmem:[#allocation12 + $0xa0] sm:$0xff]
    %v141 = vld [vmem:[#allocation12 + $0xa8] sm:$0xff]
    %v142 = vld [vmem:[#allocation12 + $0xb0] sm:$0xff]
    %v143 = vld [vmem:[#allocation12 + $0xb8] sm:$0xff]
    %v144 = vld [vmem:[#allocation12 + $0xc0] sm:$0xff]
    %v145 = vld [vmem:[#allocation12 + $0xc8] sm:$0xff]
    %v146 = vld [vmem:[#allocation12 + $0xd0] sm:$0xff]
    %v147 = vld [vmem:[#allocation12 + $0xd8] sm:$0xff]
    %v148 = vld [vmem:[#allocation12 + $0xe0] sm:$0xff]
    %v149 = vld [vmem:[#allocation12 + $0xe8] sm:$0xff]
    %v150 = vld [vmem:[#allocation12 + $0xf0] sm:$0xff]
    %v151 = vld [vmem:[#allocation12 + $0xf8] sm:$0xff]
    %v152 = vld [vmem:[#allocation12 + $0x100] sm:$0xff]
    %v153 = vld [vmem:[#allocation12 + $0x108] sm:$0xff]
    %v154 = vld [vmem:[#allocation12 + $0x110] sm:$0xff]
    %v155 = vld [vmem:[#allocation12 + $0x118] sm:$0xff]
    %v156 = vld [vmem:[#allocation12 + $0x120] sm:$0xff]
    %v157 = vld [vmem:[#allocation12 + $0x128] sm:$0xff]
    %v158 = vld [vmem:[#allocation12 + $0x130] sm:$0xff]
    %v159 = vld [vmem:[#allocation12 + $0x138] sm:$0xff]
    %v160 = vld [vmem:[#allocation12 + $0x140] sm:$0xff]
    %v161 = vld [vmem:[#allocation12 + $0x148] sm:$0xff]
    %v162 = vld [vmem:[#allocation12 + $0x150] sm:$0xff]
    %v163 = vld [vmem:[#allocation12 + $0x158] sm:$0xff]
    %v164 = vld [vmem:[#allocation12 + $0x160] sm:$0xff]
    %v165 = vld [vmem:[#allocation12 + $0x168] sm:$0xff]
    %v166 = vld [vmem:[#allocation12 + $0x170] sm:$0xff]
    %v167 = vld [vmem:[#allocation12 + $0x178] sm:$0xff]
    %v168 = vld [vmem:[#allocation12 + $0x180] sm:$0xff]
    %v169 = vld [vmem:[#allocation12 + $0x188] sm:$0xff]
    %v170 = vld [vmem:[#allocation12 + $0x190] sm:$0xff]
    %v171 = vld [vmem:[#allocation12 + $0x198] sm:$0xff]
    %v172 = vld [vmem:[#allocation12 + $0x1a0] sm:$0xff]
    %v173 = vld [vmem:[#allocation12 + $0x1a8] sm:$0xff]
    %v174 = vld [vmem:[#allocation12 + $0x1b0] sm:$0xff]
    %v175 = vld [vmem:[#allocation12 + $0x1b8] sm:$0xff]
    %v176 = vld [vmem:[#allocation12 + $0x1c0] sm:$0xff]
    %v177 = vld [vmem:[#allocation12 + $0x1c8] sm:$0xff]
    %v178 = vld [vmem:[#allocation12 + $0x1d0] sm:$0xff]
    %v179 = vld [vmem:[#allocation12 + $0x1d8] sm:$0xff]
    %v180 = vld [vmem:[#allocation12 + $0x1e0] sm:$0xff]
    %v181 = vld [vmem:[#allocation12 + $0x1e8] sm:$0xff]
    %v182 = vld [vmem:[#allocation12 + $0x1f0] sm:$0xff]
    %v183 = vld [vmem:[#allocation12 + $0x1f8] sm:$0xff]
    %v184 = vld [vmem:[#allocation14] sm:$0xff]
    %v185 = vld [vmem:[#allocation14 + $0x8] sm:$0xff]
    %v186 = vld [vmem:[#allocation14 + $0x10] sm:$0xff]
    %v187 = vld [vmem:[#allocation14 + $0x18] sm:$0xff]
    %v188 = vld [vmem:[#allocation14 + $0x20] sm:$0xff]
    %v189 = vld [vmem:[#allocation14 + $0x28] sm:$0xff]
    %v190 = vld [vmem:[#allocation14 + $0x30] sm:$0xff]
    %v191 = vld [vmem:[#allocation14 + $0x38] sm:$0xff]
    %v192 = vld [vmem:[#allocation14 + $0x40] sm:$0xff]
    %v193 = vld [vmem:[#allocation14 + $0x48] sm:$0xff]
    %v194 = vld [vmem:[#allocation14 + $0x50] sm:$0xff]
    %v195 = vld [vmem:[#allocation14 + $0x58] sm:$0xff]
    %v196 = vld [vmem:[#allocation14 + $0x60] sm:$0xff]
    %v197 = vld [vmem:[#allocation14 + $0x68] sm:$0xff]
    %v198 = vld [vmem:[#allocation14 + $0x70] sm:$0xff]
    %v199 = vld [vmem:[#allocation14 + $0x78] sm:$0xff]
    %v200 = vld [vmem:[#allocation14 + $0x80] sm:$0xff]
    %v201 = vld [vmem:[#allocation14 + $0x88] sm:$0xff]
    %v202 = vld [vmem:[#allocation14 + $0x90] sm:$0xff]
    %v203 = vld [vmem:[#allocation14 + $0x98] sm:$0xff]
    %v204 = vld [vmem:[#allocation14 + $0xa0] sm:$0xff]
    %v205 = vld [vmem:[#allocation14 + $0xa8] sm:$0xff]
    %v206 = vld [vmem:[#allocation14 + $0xb0] sm:$0xff]
    %v207 = vld [vmem:[#allocation14 + $0xb8] sm:$0xff]
    %v208 = vld [vmem:[#allocation14 + $0xc0] sm:$0xff]
    %v209 = vld [vmem:[#allocation14 + $0xc8] sm:$0xff]
    %v210 = vld [vmem:[#allocation14 + $0xd0] sm:$0xff]
    %v211 = vld [vmem:[#allocation14 + $0xd8] sm:$0xff]
    %v212 = vld [vmem:[#allocation14 + $0xe0] sm:$0xff]
    %v213 = vld [vmem:[#allocation14 + $0xe8] sm:$0xff]
    %v214 = vld [vmem:[#allocation14 + $0xf0] sm:$0xff]
    %v215 = vld [vmem:[#allocation14 + $0xf8] sm:$0xff]
    %v216 = vld [vmem:[#allocation14 + $0x100] sm:$0xff]
    %v217 = vld [vmem:[#allocation14 + $0x108] sm:$0xff]
    %v218 = vld [vmem:[#allocation14 + $0x110] sm:$0xff]
    %v219 = vld [vmem:[#allocation14 + $0x118] sm:$0xff]
    %v220 = vld [vmem:[#allocation14 + $0x120] sm:$0xff]
    %v221 = vld [vmem:[#allocation14 + $0x128] sm:$0xff]
    %v222 = vld [vmem:[#allocation14 + $0x130] sm:$0xff]
    %v223 = vld [vmem:[#allocation14 + $0x138] sm:$0xff]
    %v224 = vld [vmem:[#allocation14 + $0x140] sm:$0xff]
    %v225 = vld [vmem:[#allocation14 + $0x148] sm:$0xff]
    %v226 = vld [vmem:[#allocation14 + $0x150] sm:$0xff]
    %v227 = vld [vmem:[#allocation14 + $0x158] sm:$0xff]
    %v228 = vld [vmem:[#allocation14 + $0x160] sm:$0xff]
    %v229 = vld [vmem:[#allocation14 + $0x168] sm:$0xff]
    %v230 = vld [vmem:[#allocation14 + $0x170] sm:$0xff]
    %v231 = vld [vmem:[#allocation14 + $0x178] sm:$0xff]
    %v232 = vld [vmem:[#allocation14 + $0x180] sm:$0xff]
    %v233 = vld [vmem:[#allocation14 + $0x188] sm:$0xff]
    %v234 = vld [vmem:[#allocation14 + $0x190] sm:$0xff]
    %v235 = vld [vmem:[#allocation14 + $0x198] sm:$0xff]
    %v236 = vld [vmem:[#allocation14 + $0x1a0] sm:$0xff]
    %v237 = vld [vmem:[#allocation14 + $0x1a8] sm:$0xff]
    %v238 = vld [vmem:[#allocation14 + $0x1b0] sm:$0xff]
    %v239 = vld [vmem:[#allocation14 + $0x1b8] sm:$0xff]
    %v240 = vld [vmem:[#allocation14 + $0x1c0] sm:$0xff]
    %v241 = vld [vmem:[#allocation14 + $0x1c8] sm:$0xff]
    %v242 = vld [vmem:[#allocation14 + $0x1d0] sm:$0xff]
    %v243 = vld [vmem:[#allocation14 + $0x1d8] sm:$0xff]
    %v244 = vld [vmem:[#allocation14 + $0x1e0] sm:$0xff]
    %v245 = vld [vmem:[#allocation14 + $0x1e8] sm:$0xff]
    %v246 = vld [vmem:[#allocation14 + $0x1f0] sm:$0xff]
    %v247 = vld [vmem:[#allocation14 + $0x1f8] sm:$0xff]
    %v248 = vld [vmem:[#allocation14 + $0x200] sm:$0xff]
    %v249 = vld [vmem:[#allocation14 + $0x208] sm:$0xff]
    %v250 = vld [vmem:[#allocation14 + $0x210] sm:$0xff]
    %v251 = vld [vmem:[#allocation14 + $0x218] sm:$0xff]
    %v252 = vld [vmem:[#allocation14 + $0x220] sm:$0xff]
    %v253 = vld [vmem:[#allocation14 + $0x228] sm:$0xff]
    %v254 = vld [vmem:[#allocation14 + $0x230] sm:$0xff]
    %v255 = vld [vmem:[#allocation14 + $0x238] sm:$0xff]
    %v256 = vld [vmem:[#allocation14 + $0x240] sm:$0xff]
    %v257 = vld [vmem:[#allocation14 + $0x248] sm:$0xff]
    %v258 = vld [vmem:[#allocation14 + $0x250] sm:$0xff]
    %v259 = vld [vmem:[#allocation14 + $0x258] sm:$0xff]
    %v260 = vld [vmem:[#allocation14 + $0x260] sm:$0xff]
    %v261 = vld [vmem:[#allocation14 + $0x268] sm:$0xff]
    %v262 = vld [vmem:[#allocation14 + $0x270] sm:$0xff]
    %v263 = vld [vmem:[#allocation14 + $0x278] sm:$0xff]
    %v264 = vld [vmem:[#allocation14 + $0x280] sm:$0xff]
    %v265 = vld [vmem:[#allocation14 + $0x288] sm:$0xff]
    %v266 = vld [vmem:[#allocation14 + $0x290] sm:$0xff]
    %v267 = vld [vmem:[#allocation14 + $0x298] sm:$0xff]
    %v268 = vld [vmem:[#allocation14 + $0x2a0] sm:$0xff]
    %v269 = vld [vmem:[#allocation14 + $0x2a8] sm:$0xff]
    %v270 = vld [vmem:[#allocation14 + $0x2b0] sm:$0xff]
    %v271 = vld [vmem:[#allocation14 + $0x2b8] sm:$0xff]
    %v272 = vld [vmem:[#allocation14 + $0x2c0] sm:$0xff]
    %v273 = vld [vmem:[#allocation14 + $0x2c8] sm:$0xff]
    %v274 = vld [vmem:[#allocation14 + $0x2d0] sm:$0xff]
    %v275 = vld [vmem:[#allocation14 + $0x2d8] sm:$0xff]
    %v276 = vld [vmem:[#allocation14 + $0x2e0] sm:$0xff]
    %v277 = vld [vmem:[#allocation14 + $0x2e8] sm:$0xff]
    %v278 = vld [vmem:[#allocation14 + $0x2f0] sm:$0xff]
    %v279 = vld [vmem:[#allocation14 + $0x2f8] sm:$0xff]
    %v280 = vld [vmem:[#allocation14 + $0x300] sm:$0xff]
    %v281 = vld [vmem:[#allocation14 + $0x308] sm:$0xff]
    %v282 = vld [vmem:[#allocation14 + $0x310] sm:$0xff]
    %v283 = vld [vmem:[#allocation14 + $0x318] sm:$0xff]
    %v284 = vld [vmem:[#allocation14 + $0x320] sm:$0xff]
    %v285 = vld [vmem:[#allocation14 + $0x328] sm:$0xff]
    %v286 = vld [vmem:[#allocation14 + $0x330] sm:$0xff]
    %v287 = vld [vmem:[#allocation14 + $0x338] sm:$0xff]
    %v288 = vld [vmem:[#allocation14 + $0x340] sm:$0xff]
    %v289 = vld [vmem:[#allocation14 + $0x348] sm:$0xff]
    %v290 = vld [vmem:[#allocation14 + $0x350] sm:$0xff]
    %v291 = vld [vmem:[#allocation14 + $0x358] sm:$0xff]
    %v292 = vld [vmem:[#allocation14 + $0x360] sm:$0xff]
    %v293 = vld [vmem:[#allocation14 + $0x368] sm:$0xff]
    %v294 = vld [vmem:[#allocation14 + $0x370] sm:$0xff]
    %v295 = vld [vmem:[#allocation14 + $0x378] sm:$0xff]
    %v296 = vld [vmem:[#allocation14 + $0x380] sm:$0xff]
    %v297 = vld [vmem:[#allocation14 + $0x388] sm:$0xff]
    %v298 = vld [vmem:[#allocation14 + $0x390] sm:$0xff]
    %v299 = vld [vmem:[#allocation14 + $0x398] sm:$0xff]
    %v300 = vld [vmem:[#allocation14 + $0x3a0] sm:$0xff]
    %v301 = vld [vmem:[#allocation14 + $0x3a8] sm:$0xff]
    %v302 = vld [vmem:[#allocation14 + $0x3b0] sm:$0xff]
    %v303 = vld [vmem:[#allocation14 + $0x3b8] sm:$0xff]
    %v304 = vld [vmem:[#allocation14 + $0x3c0] sm:$0xff]
    %v305 = vld [vmem:[#allocation14 + $0x3c8] sm:$0xff]
    %v306 = vld [vmem:[#allocation14 + $0x3d0] sm:$0xff]
    %v307 = vld [vmem:[#allocation14 + $0x3d8] sm:$0xff]
    %v308 = vld [vmem:[#allocation14 + $0x3e0] sm:$0xff]
    %v309 = vld [vmem:[#allocation14 + $0x3e8] sm:$0xff]
    %v310 = vld [vmem:[#allocation14 + $0x3f0] sm:$0xff]
    %v311 = vld [vmem:[#allocation14 + $0x3f8] sm:$0xff]
    %v312 = vld [vmem:[#allocation15] sm:$0xff]
    %v313 = vld [vmem:[#allocation15 + $0x8] sm:$0xff]
    %v314 = vld [vmem:[#allocation15 + $0x10] sm:$0xff]
    %v315 = vld [vmem:[#allocation15 + $0x18] sm:$0xff]
    %v316 = vld [vmem:[#allocation15 + $0x20] sm:$0xff]
    %v317 = vld [vmem:[#allocation15 + $0x28] sm:$0xff]
    %v318 = vld [vmem:[#allocation15 + $0x30] sm:$0xff]
    %v319 = vld [vmem:[#allocation15 + $0x38] sm:$0xff]
    %v320 = vld [vmem:[#allocation15 + $0x40] sm:$0xff]
    %v321 = vld [vmem:[#allocation15 + $0x48] sm:$0xff]
    %v322 = vld [vmem:[#allocation15 + $0x50] sm:$0xff]
    %v323 = vld [vmem:[#allocation15 + $0x58] sm:$0xff]
    %v324 = vld [vmem:[#allocation15 + $0x60] sm:$0xff]
    %v325 = vld [vmem:[#allocation15 + $0x68] sm:$0xff]
    %v326 = vld [vmem:[#allocation15 + $0x70] sm:$0xff]
    %v327 = vld [vmem:[#allocation15 + $0x78] sm:$0xff]
    %v328 = vld [vmem:[%s7] sm:$0xf]
    %v330 = vlaneseq
    %v331 = vshrl.u32 %v330, 7
    %v332 = vsub.s32 0, %v331
    %v333 = vrot.slane %v328, %v332
    %v334 = vlaneseq
    %v335 = vshrl.u32 %v334, 7
    %v336 = vsub.s32 1, %v335
    %v337 = vrot.slane %v328, %v336
    %v338 = vlaneseq
    %v339 = vshrl.u32 %v338, 7
    %v340 = vsub.s32 2, %v339
    %v341 = vrot.slane %v328, %v340
    %v342 = vlaneseq
    %v343 = vshrl.u32 %v342, 7
    %v344 = vsub.s32 3, %v343
    %v345 = vrot.slane %v328, %v344
    %v350 = vld [vmem:[%s9] sm:$0x1]
    %v352 = vlaneseq
    %v353 = vshrl.u32 %v352, 7
    %v354 = vsub.s32 0, %v353
    %v355 = vrot.slane %v350, %v354
    %v357 = vld [vmem:[#allocation6] sm:$0xff]
    %v358 = vld [vmem:[#allocation6 + $0x8] sm:$0xff]
    %v359 = vld [vmem:[#allocation6 + $0x10] sm:$0xff]
    %v360 = vld [vmem:[#allocation6 + $0x18] sm:$0xff]
    %v361 = vld [vmem:[#allocation6 + $0x20] sm:$0xff]
    %v362 = vld [vmem:[#allocation6 + $0x28] sm:$0xff]
    %v363 = vld [vmem:[#allocation6 + $0x30] sm:$0xff]
    %v364 = vld [vmem:[#allocation6 + $0x38] sm:$0xff]
    %v365 = vld [vmem:[#allocation11] sm:$0xff]
    %v366 = vld [vmem:[#allocation11 + $0x8] sm:$0xff]
    %v367 = vld [vmem:[#allocation11 + $0x10] sm:$0xff]
    %v368 = vld [vmem:[#allocation11 + $0x18] sm:$0xff]
    %v369 = vld [vmem:[#allocation11 + $0x20] sm:$0xff]
    %v370 = vld [vmem:[#allocation11 + $0x28] sm:$0xff]
    %v371 = vld [vmem:[#allocation11 + $0x30] sm:$0xff]
    %v372 = vld [vmem:[#allocation11 + $0x38] sm:$0xff]
    %v373 = vld [vmem:[#allocation11 + $0x40] sm:$0xff]
    %v374 = vld [vmem:[#allocation11 + $0x48] sm:$0xff]
    %v375 = vld [vmem:[#allocation11 + $0x50] sm:$0xff]
    %v376 = vld [vmem:[#allocation11 + $0x58] sm:$0xff]
    %v377 = vld [vmem:[#allocation11 + $0x60] sm:$0xff]
    %v378 = vld [vmem:[#allocation11 + $0x68] sm:$0xff]
    %v379 = vld [vmem:[#allocation11 + $0x70] sm:$0xff]
    %v380 = vld [vmem:[#allocation11 + $0x78] sm:$0xff]
    %v381 = vld [vmem:[#allocation11 + $0x80] sm:$0xff]
    %v382 = vld [vmem:[#allocation11 + $0x88] sm:$0xff]
    %v383 = vld [vmem:[#allocation11 + $0x90] sm:$0xff]
    %v384 = vld [vmem:[#allocation11 + $0x98] sm:$0xff]
    %v385 = vld [vmem:[#allocation11 + $0xa0] sm:$0xff]
    %v386 = vld [vmem:[#allocation11 + $0xa8] sm:$0xff]
    %v387 = vld [vmem:[#allocation11 + $0xb0] sm:$0xff]
    %v388 = vld [vmem:[#allocation11 + $0xb8] sm:$0xff]
    %v389 = vld [vmem:[#allocation11 + $0xc0] sm:$0xff]
    %v390 = vld [vmem:[#allocation11 + $0xc8] sm:$0xff]
    %v391 = vld [vmem:[#allocation11 + $0xd0] sm:$0xff]
    %v392 = vld [vmem:[#allocation11 + $0xd8] sm:$0xff]
    %v393 = vld [vmem:[#allocation11 + $0xe0] sm:$0xff]
    %v394 = vld [vmem:[#allocation11 + $0xe8] sm:$0xff]
    %v395 = vld [vmem:[#allocation11 + $0xf0] sm:$0xff]
    %v396 = vld [vmem:[#allocation11 + $0xf8] sm:$0xff]
    %v397 = vld [vmem:[#allocation11 + $0x100] sm:$0xff]
    %v398 = vld [vmem:[#allocation11 + $0x108] sm:$0xff]
    %v399 = vld [vmem:[#allocation11 + $0x110] sm:$0xff]
    %v400 = vld [vmem:[#allocation11 + $0x118] sm:$0xff]
    %v401 = vld [vmem:[#allocation11 + $0x120] sm:$0xff]
    %v402 = vld [vmem:[#allocation11 + $0x128] sm:$0xff]
    %v403 = vld [vmem:[#allocation11 + $0x130] sm:$0xff]
    %v404 = vld [vmem:[#allocation11 + $0x138] sm:$0xff]
    %v405 = vld [vmem:[#allocation11 + $0x140] sm:$0xff]
    %v406 = vld [vmem:[#allocation11 + $0x148] sm:$0xff]
    %v407 = vld [vmem:[#allocation11 + $0x150] sm:$0xff]
    %v408 = vld [vmem:[#allocation11 + $0x158] sm:$0xff]
    %v409 = vld [vmem:[#allocation11 + $0x160] sm:$0xff]
    %v410 = vld [vmem:[#allocation11 + $0x168] sm:$0xff]
    %v411 = vld [vmem:[#allocation11 + $0x170] sm:$0xff]
    %v412 = vld [vmem:[#allocation11 + $0x178] sm:$0xff]
    %v413 = vld [vmem:[#allocation11 + $0x180] sm:$0xff]
    %v414 = vld [vmem:[#allocation11 + $0x188] sm:$0xff]
    %v415 = vld [vmem:[#allocation11 + $0x190] sm:$0xff]
    %v416 = vld [vmem:[#allocation11 + $0x198] sm:$0xff]
    %v417 = vld [vmem:[#allocation11 + $0x1a0] sm:$0xff]
    %v418 = vld [vmem:[#allocation11 + $0x1a8] sm:$0xff]
    %v419 = vld [vmem:[#allocation11 + $0x1b0] sm:$0xff]
    %v420 = vld [vmem:[#allocation11 + $0x1b8] sm:$0xff]
    %v421 = vld [vmem:[#allocation11 + $0x1c0] sm:$0xff]
    %v422 = vld [vmem:[#allocation11 + $0x1c8] sm:$0xff]
    %v423 = vld [vmem:[#allocation11 + $0x1d0] sm:$0xff]
    %v424 = vld [vmem:[#allocation11 + $0x1d8] sm:$0xff]
    %v425 = vld [vmem:[#allocation11 + $0x1e0] sm:$0xff]
    %v426 = vld [vmem:[#allocation11 + $0x1e8] sm:$0xff]
    %v427 = vld [vmem:[#allocation11 + $0x1f0] sm:$0xff]
    %v428 = vld [vmem:[#allocation11 + $0x1f8] sm:$0xff]
    %v429 = vld [vmem:[%s5] sm:$0xf]
    %v431 = vlaneseq
    %v432 = vshrl.u32 %v431, 7
    %v433 = vsub.s32 0, %v432
    %v434 = vrot.slane %v429, %v433
    %v435 = vlaneseq
    %v436 = vshrl.u32 %v435, 7
    %v437 = vsub.s32 1, %v436
    %v438 = vrot.slane %v429, %v437
    %v439 = vlaneseq
    %v440 = vshrl.u32 %v439, 7
    %v441 = vsub.s32 2, %v440
    %v442 = vrot.slane %v429, %v441
    %v443 = vlaneseq
    %v444 = vshrl.u32 %v443, 7
    %v445 = vsub.s32 3, %v444
    %v446 = vrot.slane %v429, %v445
    %451 = vmatprep.subr.mxu0 %v366
    %452 = vmatpush1.msra.mxu0 %v365
    %453 = vmatprep.subr.mxu0 %v370
    %454 = vmatpush1.msra.mxu0 %v369
    %455 = vmatprep.subr.mxu0 %v374
    %456 = vmatpush1.msra.mxu0 %v373
    %457 = vmatprep.subr.mxu0 %v378
    %458 = vmatpush1.msra.mxu0 %v377
    %459 = vmatprep.subr.mxu0 %v382
    %460 = vmatpush1.msra.mxu0 %v381
    %461 = vmatprep.subr.mxu0 %v386
    %462 = vmatpush1.msra.mxu0 %v385
    %463 = vmatprep.subr.mxu0 %v390
    %464 = vmatpush1.msra.mxu0 %v389
    %465 = vmatprep.subr.mxu0 %v394
    %466 = vmatpush1.msra.mxu0 %v393
    %467 = vmatprep.subr.mxu0 %v398
    %468 = vmatpush1.msra.mxu0 %v397
    %469 = vmatprep.subr.mxu0 %v402
    %470 = vmatpush1.msra.mxu0 %v401
    %471 = vmatprep.subr.mxu0 %v406
    %472 = vmatpush1.msra.mxu0 %v405
    %473 = vmatprep.subr.mxu0 %v410
    %474 = vmatpush1.msra.mxu0 %v409
    %475 = vmatprep.subr.mxu0 %v414
    %476 = vmatpush1.msra.mxu0 %v413
    %477 = vmatprep.subr.mxu0 %v418
    %478 = vmatpush1.msra.mxu0 %v417
    %479 = vmatprep.subr.mxu0 %v422
    %480 = vmatpush1.msra.mxu0 %v421
    %481 = vmatprep.subr.mxu0 %v426
    %482 = vmatpush1.msra.mxu0 %v425
    %483 = vmatprep.subr.mxu0 0.0
    %484 = vmatpush1.msra.mxu0 0.0
    %485 = vmatprep.subr.mxu0 0.0
    %486 = vmatpush1.msra.mxu0 0.0
    %487 = vmatprep.subr.mxu0 0.0
    %488 = vmatpush1.msra.mxu0 0.0
    %489 = vmatprep.subr.mxu0 0.0
    %490 = vmatpush1.msra.mxu0 0.0
    %491 = vmatprep.subr.mxu0 0.0
    %492 = vmatpush1.msra.mxu0 0.0
    %493 = vmatprep.subr.mxu0 0.0
    %494 = vmatpush1.msra.mxu0 0.0
    %495 = vmatprep.subr.mxu0 0.0
    %496 = vmatpush1.msra.mxu0 0.0
    %497 = vmatprep.subr.mxu0 0.0
    %498 = vmatpush1.msra.mxu0 0.0
    %499 = vmatprep.subr.mxu0 0.0
    %500 = vmatpush1.msra.mxu0 0.0
    %501 = vmatprep.subr.mxu0 0.0
    %502 = vmatpush1.msra.mxu0 0.0
    %503 = vmatprep.subr.mxu0 0.0
    %504 = vmatpush1.msra.mxu0 0.0
    %505 = vmatprep.subr.mxu0 0.0
    %506 = vmatpush1.msra.mxu0 0.0
    %507 = vmatprep.subr.mxu0 0.0
    %508 = vmatpush1.msra.mxu0 0.0
    %509 = vmatprep.subr.mxu0 0.0
    %510 = vmatpush1.msra.mxu0 0.0
    %511 = vmatprep.subr.mxu0 0.0
    %512 = vmatpush1.msra.mxu0 0.0
    %513 = vmatprep.subr.mxu0 0.0
    %514 = vmatpush1.msra.mxu0 0.0
    %515 = vmatprep.mubr.f32.mxu0 0.0
    %516 = vmatmul.mubr.f32.gmra.mrb[0].mxu0 %v357
    %v517 = vpop.f32.mrb[0].mxu0
    %v518 = vadd.f32 %v434, %v517
    %v519 = vpop.f32.mrb[0].mxu0
    %v520 = vadd.f32 %v438, %v519
    %521 = vmatprep.mubr.f32.mxu0 0.0
    %522 = vmatmul.mubr.f32.gmra.mrb[0].mxu0 %v358
    %v523 = vpop.f32.mrb[0].mxu0
    %v524 = vadd.f32 %v434, %v523
    %v525 = vpop.f32.mrb[0].mxu0
    %v526 = vadd.f32 %v438, %v525
    %527 = vmatprep.mubr.f32.mxu0 0.0
    %528 = vmatmul.mubr.f32.gmra.mrb[0].mxu0 %v359
    %v529 = vpop.f32.mrb[0].mxu0
    %v530 = vadd.f32 %v434, %v529
    %v531 = vpop.f32.mrb[0].mxu0
    %v532 = vadd.f32 %v438, %v531
    %533 = vmatprep.mubr.f32.mxu0 0.0
    %534 = vmatmul.mubr.f32.gmra.mrb[0].mxu0 %v360
    %v535 = vpop.f32.mrb[0].mxu0
    %v536 = vadd.f32 %v434, %v535
    %v537 = vpop.f32.mrb[0].mxu0
    %v538 = vadd.f32 %v438, %v537
    %539 = vmatprep.mubr.f32.mxu0 0.0
    %540 = vmatmul.mubr.f32.gmra.mrb[0].mxu0 %v361
    %v541 = vpop.f32.mrb[0].mxu0
    %v542 = vadd.f32 %v434, %v541
    %v543 = vpop.f32.mrb[0].mxu0
    %v544 = vadd.f32 %v438, %v543
    %545 = vmatprep.mubr.f32.mxu0 0.0
    %546 = vmatmul.mubr.f32.gmra.mrb[0].mxu0 %v362
    %v547 = vpop.f32.mrb[0].mxu0
    %v548 = vadd.f32 %v434, %v547
    %v549 = vpop.f32.mrb[0].mxu0
    %v550 = vadd.f32 %v438, %v549
    %551 = vmatprep.mubr.f32.mxu0 0.0
    %552 = vmatmul.mubr.f32.gmra.mrb[0].mxu0 %v363
    %v553 = vpop.f32.mrb[0].mxu0
    %v554 = vadd.f32 %v434, %v553
    %v555 = vpop.f32.mrb[0].mxu0
    %v556 = vadd.f32 %v438, %v555
    %557 = vmatprep.mubr.f32.mxu0 0.0
    %558 = vmatmul.mubr.f32.gmra.mrb[0].mxu0 %v364
    %v559 = vpop.f32.mrb[0].mxu0
    %v560 = vadd.f32 %v434, %v559
    %v561 = vpop.f32.mrb[0].mxu0
    %v562 = vadd.f32 %v438, %v561
    %563 = vdwg.mxu0
    %564 = vmatprep.subr.mxu0 %v368
    %565 = vmatpush1.msra.mxu0 %v367
    %566 = vmatprep.subr.mxu0 %v372
    %567 = vmatpush1.msra.mxu0 %v371
    %568 = vmatprep.subr.mxu0 %v376
    %569 = vmatpush1.msra.mxu0 %v375
    %570 = vmatprep.subr.mxu0 %v380
    %571 = vmatpush1.msra.mxu0 %v379
    %572 = vmatprep.subr.mxu0 %v384
    %573 = vmatpush1.msra.mxu0 %v383
    %574 = vmatprep.subr.mxu0 %v388
    %575 = vmatpush1.msra.mxu0 %v387
    %576 = vmatprep.subr.mxu0 %v392
    %577 = vmatpush1.msra.mxu0 %v391
    %578 = vmatprep.subr.mxu0 %v396
    %579 = vmatpush1.msra.mxu0 %v395
    %580 = vmatprep.subr.mxu0 %v400
    %581 = vmatpush1.msra.mxu0 %v399
    %582 = vmatprep.subr.mxu0 %v404
    %583 = vmatpush1.msra.mxu0 %v403
    %584 = vmatprep.subr.mxu0 %v408
    %585 = vmatpush1.msra.mxu0 %v407
    %586 = vmatprep.subr.mxu0 %v412
    %587 = vmatpush1.msra.mxu0 %v411
    %588 = vmatprep.subr.mxu0 %v416
    %589 = vmatpush1.msra.mxu0 %v415
    %590 = vmatprep.subr.mxu0 %v420
    %591 = vmatpush1.msra.mxu0 %v419
    %592 = vmatprep.subr.mxu0 %v424
    %593 = vmatpush1.msra.mxu0 %v423
    %594 = vmatprep.subr.mxu0 %v428
    %595 = vmatpush1.msra.mxu0 %v427
    %596 = vmatprep.subr.mxu0 0.0
    %597 = vmatpush1.msra.mxu0 0.0
    %598 = vmatprep.subr.mxu0 0.0
    %599 = vmatpush1.msra.mxu0 0.0
    %600 = vmatprep.subr.mxu0 0.0
    %601 = vmatpush1.msra.mxu0 0.0
    %602 = vmatprep.subr.mxu0 0.0
    %603 = vmatpush1.msra.mxu0 0.0
    %604 = vmatprep.subr.mxu0 0.0
    %605 = vmatpush1.msra.mxu0 0.0
    %606 = vmatprep.subr.mxu0 0.0
    %607 = vmatpush1.msra.mxu0 0.0
    %608 = vmatprep.subr.mxu0 0.0
    %609 = vmatpush1.msra.mxu0 0.0
    %610 = vmatprep.subr.mxu0 0.0
    %611 = vmatpush1.msra.mxu0 0.0
    %612 = vmatprep.subr.mxu0 0.0
    %613 = vmatpush1.msra.mxu0 0.0
    %614 = vmatprep.subr.mxu0 0.0
    %615 = vmatpush1.msra.mxu0 0.0
    %616 = vmatprep.subr.mxu0 0.0
    %617 = vmatpush1.msra.mxu0 0.0
    %618 = vmatprep.subr.mxu0 0.0
    %619 = vmatpush1.msra.mxu0 0.0
    %620 = vmatprep.subr.mxu0 0.0
    %621 = vmatpush1.msra.mxu0 0.0
    %622 = vmatprep.subr.mxu0 0.0
    %623 = vmatpush1.msra.mxu0 0.0
    %624 = vmatprep.subr.mxu0 0.0
    %625 = vmatpush1.msra.mxu0 0.0
    %626 = vmatprep.subr.mxu0 0.0
    %627 = vmatpush1.msra.mxu0 0.0
    %628 = vmatprep.mubr.f32.mxu0 0.0
    %629 = vmatmul.mubr.f32.gmra.mrb[0].mxu0 %v357
    %v630 = vpop.f32.mrb[0].mxu0
    %v631 = vadd.f32 %v442, %v630
    %v632 = vpop.f32.mrb[0].mxu0
    %v633 = vadd.f32 %v446, %v632
    %634 = vmatprep.mubr.f32.mxu0 0.0
    %635 = vmatmul.mubr.f32.gmra.mrb[0].mxu0 %v358
    %v636 = vpop.f32.mrb[0].mxu0
    %v637 = vadd.f32 %v442, %v636
    %v638 = vpop.f32.mrb[0].mxu0
    %v639 = vadd.f32 %v446, %v638
    %640 = vmatprep.mubr.f32.mxu0 0.0
    %641 = vmatmul.mubr.f32.gmra.mrb[0].mxu0 %v359
    %v642 = vpop.f32.mrb[0].mxu0
    %v643 = vadd.f32 %v442, %v642
    %v644 = vpop.f32.mrb[0].mxu0
    %v645 = vadd.f32 %v446, %v644
    %646 = vmatprep.mubr.f32.mxu0 0.0
    %647 = vmatmul.mubr.f32.gmra.mrb[0].mxu0 %v360
    %v648 = vpop.f32.mrb[0].mxu0
    %v649 = vadd.f32 %v442, %v648
    %v650 = vpop.f32.mrb[0].mxu0
    %v651 = vadd.f32 %v446, %v650
    %652 = vmatprep.mubr.f32.mxu0 0.0
    %653 = vmatmul.mubr.f32.gmra.mrb[0].mxu0 %v361
    %v654 = vpop.f32.mrb[0].mxu0
    %v655 = vadd.f32 %v442, %v654
    %v656 = vpop.f32.mrb[0].mxu0
    %v657 = vadd.f32 %v446, %v656
    %658 = vmatprep.mubr.f32.mxu0 0.0
    %659 = vmatmul.mubr.f32.gmra.mrb[0].mxu0 %v362
    %v660 = vpop.f32.mrb[0].mxu0
    %v661 = vadd.f32 %v442, %v660
    %v662 = vpop.f32.mrb[0].mxu0
    %v663 = vadd.f32 %v446, %v662
    %664 = vmatprep.mubr.f32.mxu0 0.0
    %665 = vmatmul.mubr.f32.gmra.mrb[0].mxu0 %v363
    %v666 = vpop.f32.mrb[0].mxu0
    %v667 = vadd.f32 %v442, %v666
    %v668 = vpop.f32.mrb[0].mxu0
    %v669 = vadd.f32 %v446, %v668
    %670 = vmatprep.mubr.f32.mxu0 0.0
    %671 = vmatmul.mubr.f32.gmra.mrb[0].mxu0 %v364
    %v672 = vpop.f32.mrb[0].mxu0
    %v673 = vadd.f32 %v442, %v672
    %v674 = vpop.f32.mrb[0].mxu0
    %v675 = vadd.f32 %v446, %v674
    %676 = vdwg.mxu0
    %677 = vst [vmem:[#allocation2] sm:$0xff] %v518
    %678 = vst [vmem:[#allocation2 + $0x8] sm:$0xff] %v520
    %679 = vst [vmem:[#allocation2 + $0x10] sm:$0xff] %v631
    %680 = vst [vmem:[#allocation2 + $0x18] sm:$0xff] %v633
    %681 = vst [vmem:[#allocation2 + $0x20] sm:$0xff] %v524
    %682 = vst [vmem:[#allocation2 + $0x28] sm:$0xff] %v526
    %683 = vst [vmem:[#allocation2 + $0x30] sm:$0xff] %v637
    %684 = vst [vmem:[#allocation2 + $0x38] sm:$0xff] %v639
    %685 = vst [vmem:[#allocation2 + $0x40] sm:$0xff] %v530
    %686 = vst [vmem:[#allocation2 + $0x48] sm:$0xff] %v532
    %687 = vst [vmem:[#allocation2 + $0x50] sm:$0xff] %v643
    %688 = vst [vmem:[#allocation2 + $0x58] sm:$0xff] %v645
    %689 = vst [vmem:[#allocation2 + $0x60] sm:$0xff] %v536
    %690 = vst [vmem:[#allocation2 + $0x68] sm:$0xff] %v538
    %691 = vst [vmem:[#allocation2 + $0x70] sm:$0xff] %v649
    %692 = vst [vmem:[#allocation2 + $0x78] sm:$0xff] %v651
    %693 = vst [vmem:[#allocation2 + $0x80] sm:$0xff] %v542
    %694 = vst [vmem:[#allocation2 + $0x88] sm:$0xff] %v544
    %695 = vst [vmem:[#allocation2 + $0x90] sm:$0xff] %v655
    %696 = vst [vmem:[#allocation2 + $0x98] sm:$0xff] %v657
    %697 = vst [vmem:[#allocation2 + $0xa0] sm:$0xff] %v548
    %698 = vst [vmem:[#allocation2 + $0xa8] sm:$0xff] %v550
    %699 = vst [vmem:[#allocation2 + $0xb0] sm:$0xff] %v661
    %700 = vst [vmem:[#allocation2 + $0xb8] sm:$0xff] %v663
    %701 = vst [vmem:[#allocation2 + $0xc0] sm:$0xff] %v554
    %702 = vst [vmem:[#allocation2 + $0xc8] sm:$0xff] %v556
    %703 = vst [vmem:[#allocation2 + $0xd0] sm:$0xff] %v667
    %704 = vst [vmem:[#allocation2 + $0xd8] sm:$0xff] %v669
    %705 = vst [vmem:[#allocation2 + $0xe0] sm:$0xff] %v560
    %706 = vst [vmem:[#allocation2 + $0xe8] sm:$0xff] %v562
    %707 = vst [vmem:[#allocation2 + $0xf0] sm:$0xff] %v673
    %708 = vst [vmem:[#allocation2 + $0xf8] sm:$0xff] %v675
    %s709 = smul.u32 0, 4
    %s710 = smul.addr %s709, 8
    %s711 = scalar_lea.vmem [#allocation2], %s710
    %v712 = vld [vmem:[%s711] sm:$0xff]
    %v713 = vld [vmem:[%s711 + $0x8] sm:$0xff]
    %v714 = vld [vmem:[%s711 + $0x10] sm:$0xff]
    %v715 = vld [vmem:[%s711 + $0x18] sm:$0xff]
    %716 = vmatprep.subr.mxu0 %v121
    %717 = vmatpush1.msra.mxu0 %v120
    %718 = vmatprep.subr.mxu0 %v125
    %719 = vmatpush1.msra.mxu0 %v124
    %720 = vmatprep.subr.mxu0 %v129
    %721 = vmatpush1.msra.mxu0 %v128
    %722 = vmatprep.subr.mxu0 %v133
    %723 = vmatpush1.msra.mxu0 %v132
    %724 = vmatprep.subr.mxu0 %v137
    %725 = vmatpush1.msra.mxu0 %v136
    %726 = vmatprep.subr.mxu0 %v141
    %727 = vmatpush1.msra.mxu0 %v140
    %728 = vmatprep.subr.mxu0 %v145
    %729 = vmatpush1.msra.mxu0 %v144
    %730 = vmatprep.subr.mxu0 %v149
    %731 = vmatpush1.msra.mxu0 %v148
    %732 = vmatprep.subr.mxu0 %v153
    %733 = vmatpush1.msra.mxu0 %v152
    %734 = vmatprep.subr.mxu0 %v157
    %735 = vmatpush1.msra.mxu0 %v156
    %736 = vmatprep.subr.mxu0 %v161
    %737 = vmatpush1.msra.mxu0 %v160
    %738 = vmatprep.subr.mxu0 %v165
    %739 = vmatpush1.msra.mxu0 %v164
    %740 = vmatprep.subr.mxu0 %v169
    %741 = vmatpush1.msra.mxu0 %v168
    %742 = vmatprep.subr.mxu0 %v173
    %743 = vmatpush1.msra.mxu0 %v172
    %744 = vmatprep.subr.mxu0 %v177
    %745 = vmatpush1.msra.mxu0 %v176
    %746 = vmatprep.subr.mxu0 %v181
    %747 = vmatpush1.msra.mxu0 %v180
    %748 = vmatprep.subr.mxu0 0.0
    %749 = vmatpush1.msra.mxu0 0.0
    %750 = vmatprep.subr.mxu0 0.0
    %751 = vmatpush1.msra.mxu0 0.0
    %752 = vmatprep.subr.mxu0 0.0
    %753 = vmatpush1.msra.mxu0 0.0
    %754 = vmatprep.subr.mxu0 0.0
    %755 = vmatpush1.msra.mxu0 0.0
    %756 = vmatprep.subr.mxu0 0.0
    %757 = vmatpush1.msra.mxu0 0.0
    %758 = vmatprep.subr.mxu0 0.0
    %759 = vmatpush1.msra.mxu0 0.0
    %760 = vmatprep.subr.mxu0 0.0
    %761 = vmatpush1.msra.mxu0 0.0
    %762 = vmatprep.subr.mxu0 0.0
    %763 = vmatpush1.msra.mxu0 0.0
    %764 = vmatprep.subr.mxu0 0.0
    %765 = vmatpush1.msra.mxu0 0.0
    %766 = vmatprep.subr.mxu0 0.0
    %767 = vmatpush1.msra.mxu0 0.0
    %768 = vmatprep.subr.mxu0 0.0
    %769 = vmatpush1.msra.mxu0 0.0
    %770 = vmatprep.subr.mxu0 0.0
    %771 = vmatpush1.msra.mxu0 0.0
    %772 = vmatprep.subr.mxu0 0.0
    %773 = vmatpush1.msra.mxu0 0.0
    %774 = vmatprep.subr.mxu0 0.0
    %775 = vmatpush1.msra.mxu0 0.0
    %776 = vmatprep.subr.mxu0 0.0
    %777 = vmatpush1.msra.mxu0 0.0
    %778 = vmatprep.subr.mxu0 0.0
    %779 = vmatpush1.msra.mxu0 0.0
    %780 = vmatprep.mubr.f32.mxu0 0.0
    %781 = vmatmul.mubr.f32.gmra.mrb[0].mxu0 0.0
    %v782 = vpop.f32.mrb[0].mxu0
    %v783 = vadd.f32 0.0, %v782
    %v784 = vpop.f32.mrb[0].mxu0
    %v785 = vadd.f32 0.0, %v784
    %786 = vdwg.mxu0
    %787 = vmatprep.subr.mxu0 %v123
    %788 = vmatpush1.msra.mxu0 %v122
    %789 = vmatprep.subr.mxu0 %v127
    %790 = vmatpush1.msra.mxu0 %v126
    %791 = vmatprep.subr.mxu0 %v131
    %792 = vmatpush1.msra.mxu0 %v130
    %793 = vmatprep.subr.mxu0 %v135
    %794 = vmatpush1.msra.mxu0 %v134
    %795 = vmatprep.subr.mxu0 %v139
    %796 = vmatpush1.msra.mxu0 %v138
    %797 = vmatprep.subr.mxu0 %v143
    %798 = vmatpush1.msra.mxu0 %v142
    %799 = vmatprep.subr.mxu0 %v147
    %800 = vmatpush1.msra.mxu0 %v146
    %801 = vmatprep.subr.mxu0 %v151
    %802 = vmatpush1.msra.mxu0 %v150
    %803 = vmatprep.subr.mxu0 %v155
    %804 = vmatpush1.msra.mxu0 %v154
    %805 = vmatprep.subr.mxu0 %v159
    %806 = vmatpush1.msra.mxu0 %v158
    %807 = vmatprep.subr.mxu0 %v163
    %808 = vmatpush1.msra.mxu0 %v162
    %809 = vmatprep.subr.mxu0 %v167
    %810 = vmatpush1.msra.mxu0 %v166
    %811 = vmatprep.subr.mxu0 %v171
    %812 = vmatpush1.msra.mxu0 %v170
    %813 = vmatprep.subr.mxu0 %v175
    %814 = vmatpush1.msra.mxu0 %v174
    %815 = vmatprep.subr.mxu0 %v179
    %816 = vmatpush1.msra.mxu0 %v178
    %817 = vmatprep.subr.mxu0 %v183
    %818 = vmatpush1.msra.mxu0 %v182
    %819 = vmatprep.subr.mxu0 0.0
    %820 = vmatpush1.msra.mxu0 0.0
    %821 = vmatprep.subr.mxu0 0.0
    %822 = vmatpush1.msra.mxu0 0.0
    %823 = vmatprep.subr.mxu0 0.0
    %824 = vmatpush1.msra.mxu0 0.0
    %825 = vmatprep.subr.mxu0 0.0
    %826 = vmatpush1.msra.mxu0 0.0
    %827 = vmatprep.subr.mxu0 0.0
    %828 = vmatpush1.msra.mxu0 0.0
    %829 = vmatprep.subr.mxu0 0.0
    %830 = vmatpush1.msra.mxu0 0.0
    %831 = vmatprep.subr.mxu0 0.0
    %832 = vmatpush1.msra.mxu0 0.0
    %833 = vmatprep.subr.mxu0 0.0
    %834 = vmatpush1.msra.mxu0 0.0
    %835 = vmatprep.subr.mxu0 0.0
    %836 = vmatpush1.msra.mxu0 0.0
    %837 = vmatprep.subr.mxu0 0.0
    %838 = vmatpush1.msra.mxu0 0.0
    %839 = vmatprep.subr.mxu0 0.0
    %840 = vmatpush1.msra.mxu0 0.0
    %841 = vmatprep.subr.mxu0 0.0
    %842 = vmatpush1.msra.mxu0 0.0
    %843 = vmatprep.subr.mxu0 0.0
    %844 = vmatpush1.msra.mxu0 0.0
    %845 = vmatprep.subr.mxu0 0.0
    %846 = vmatpush1.msra.mxu0 0.0
    %847 = vmatprep.subr.mxu0 0.0
    %848 = vmatpush1.msra.mxu0 0.0
    %849 = vmatprep.subr.mxu0 0.0
    %850 = vmatpush1.msra.mxu0 0.0
    %851 = vmatprep.mubr.f32.mxu0 0.0
    %852 = vmatmul.mubr.f32.gmra.mrb[0].mxu0 0.0
    %v853 = vpop.f32.mrb[0].mxu0
    %v854 = vadd.f32 0.0, %v853
    %v855 = vpop.f32.mrb[0].mxu0
    %v856 = vadd.f32 0.0, %v855
    %857 = vdwg.mxu0
    %v858 = vadd.f32 %v712, %v783
    %v859 = vadd.f32 %v713, %v785
    %v860 = vadd.f32 %v714, %v854
    %v861 = vadd.f32 %v715, %v856
    %v862 = vxor.u32 %v858, 2147483648
    %v863 = vmul.f32 %v862, 1.442695
    %v864 = vpow.pop %v863
    %v865 = vadd.f32 %v864, 1.0
    %v866 = vrcp.pop %v865
    %v867 = vmul.f32 1.0, %v866
    %v868 = vxor.u32 %v859, 2147483648
    %v869 = vmul.f32 %v868, 1.442695
    %v870 = vpow.pop %v869
    %v871 = vadd.f32 %v870, 1.0
    %v872 = vrcp.pop %v871
    %v873 = vmul.f32 1.0, %v872
    %v874 = vtanh.pop %v860
    %v875 = vxor.u32 %v861, 2147483648
    %v876 = vmul.f32 %v875, 1.442695
    %v877 = vpow.pop %v876
    %v878 = vadd.f32 %v877, 1.0
    %v879 = vrcp.pop %v878
    %v880 = vmul.f32 1.0, %v879
    %v881 = vmul.f32 %v873, 0.0
    %v882 = vmul.f32 %v867, %v874
    %v883 = vadd.f32 %v881, %v882
    %v884 = vtanh.pop %v883
    %v885 = vmul.f32 %v880, %v884
    %s886 = smul.u32 1, 4
    %s887 = smul.addr %s886, 8
    %s888 = scalar_lea.vmem [#allocation2], %s887
    %v889 = vld [vmem:[%s888] sm:$0xff]
    %v890 = vld [vmem:[%s888 + $0x8] sm:$0xff]
    %v891 = vld [vmem:[%s888 + $0x10] sm:$0xff]
    %v892 = vld [vmem:[%s888 + $0x18] sm:$0xff]
    %893 = vmatprep.subr.mxu0 %v121
    %894 = vmatpush1.msra.mxu0 %v120
    %895 = vmatprep.subr.mxu0 %v125
    %896 = vmatpush1.msra.mxu0 %v124
    %897 = vmatprep.subr.mxu0 %v129
    %898 = vmatpush1.msra.mxu0 %v128
    %899 = vmatprep.subr.mxu0 %v133
    %900 = vmatpush1.msra.mxu0 %v132
    %901 = vmatprep.subr.mxu0 %v137
    %902 = vmatpush1.msra.mxu0 %v136
    %903 = vmatprep.subr.mxu0 %v141
    %904 = vmatpush1.msra.mxu0 %v140
    %905 = vmatprep.subr.mxu0 %v145
    %906 = vmatpush1.msra.mxu0 %v144
    %907 = vmatprep.subr.mxu0 %v149
    %908 = vmatpush1.msra.mxu0 %v148
    %909 = vmatprep.subr.mxu0 %v153
    %910 = vmatpush1.msra.mxu0 %v152
    %911 = vmatprep.subr.mxu0 %v157
    %912 = vmatpush1.msra.mxu0 %v156
    %913 = vmatprep.subr.mxu0 %v161
    %914 = vmatpush1.msra.mxu0 %v160
    %915 = vmatprep.subr.mxu0 %v165
    %916 = vmatpush1.msra.mxu0 %v164
    %917 = vmatprep.subr.mxu0 %v169
    %918 = vmatpush1.msra.mxu0 %v168
    %919 = vmatprep.subr.mxu0 %v173
    %920 = vmatpush1.msra.mxu0 %v172
    %921 = vmatprep.subr.mxu0 %v177
    %922 = vmatpush1.msra.mxu0 %v176
    %923 = vmatprep.subr.mxu0 %v181
    %924 = vmatpush1.msra.mxu0 %v180
    %925 = vmatprep.subr.mxu0 0.0
    %926 = vmatpush1.msra.mxu0 0.0
    %927 = vmatprep.subr.mxu0 0.0
    %928 = vmatpush1.msra.mxu0 0.0
    %929 = vmatprep.subr.mxu0 0.0
    %930 = vmatpush1.msra.mxu0 0.0
    %931 = vmatprep.subr.mxu0 0.0
    %932 = vmatpush1.msra.mxu0 0.0
    %933 = vmatprep.subr.mxu0 0.0
    %934 = vmatpush1.msra.mxu0 0.0
    %935 = vmatprep.subr.mxu0 0.0
    %936 = vmatpush1.msra.mxu0 0.0
    %937 = vmatprep.subr.mxu0 0.0
    %938 = vmatpush1.msra.mxu0 0.0
    %939 = vmatprep.subr.mxu0 0.0
    %940 = vmatpush1.msra.mxu0 0.0
    %941 = vmatprep.subr.mxu0 0.0
    %942 = vmatpush1.msra.mxu0 0.0
    %943 = vmatprep.subr.mxu0 0.0
    %944 = vmatpush1.msra.mxu0 0.0
    %945 = vmatprep.subr.mxu0 0.0
    %946 = vmatpush1.msra.mxu0 0.0
    %947 = vmatprep.subr.mxu0 0.0
    %948 = vmatpush1.msra.mxu0 0.0
    %949 = vmatprep.subr.mxu0 0.0
    %950 = vmatpush1.msra.mxu0 0.0
    %951 = vmatprep.subr.mxu0 0.0
    %952 = vmatpush1.msra.mxu0 0.0
    %953 = vmatprep.subr.mxu0 0.0
    %954 = vmatpush1.msra.mxu0 0.0
    %955 = vmatprep.subr.mxu0 0.0
    %956 = vmatpush1.msra.mxu0 0.0
    %957 = vmatprep.mubr.f32.mxu0 0.0
    %958 = vmatmul.mubr.f32.gmra.mrb[0].mxu0 %v885
    %v959 = vpop.f32.mrb[0].mxu0
    %v960 = vadd.f32 0.0, %v959
    %v961 = vpop.f32.mrb[0].mxu0
    %v962 = vadd.f32 0.0, %v961
    %963 = vdwg.mxu0
    %964 = vmatprep.subr.mxu0 %v123
    %965 = vmatpush1.msra.mxu0 %v122
    %966 = vmatprep.subr.mxu0 %v127
    %967 = vmatpush1.msra.mxu0 %v126
    %968 = vmatprep.subr.mxu0 %v131
    %969 = vmatpush1.msra.mxu0 %v130
    %970 = vmatprep.subr.mxu0 %v135
    %971 = vmatpush1.msra.mxu0 %v134
    %972 = vmatprep.subr.mxu0 %v139
    %973 = vmatpush1.msra.mxu0 %v138
    %974 = vmatprep.subr.mxu0 %v143
    %975 = vmatpush1.msra.mxu0 %v142
    %976 = vmatprep.subr.mxu0 %v147
    %977 = vmatpush1.msra.mxu0 %v146
    %978 = vmatprep.subr.mxu0 %v151
    %979 = vmatpush1.msra.mxu0 %v150
    %980 = vmatprep.subr.mxu0 %v155
    %981 = vmatpush1.msra.mxu0 %v154
    %982 = vmatprep.subr.mxu0 %v159
    %983 = vmatpush1.msra.mxu0 %v158
    %984 = vmatprep.subr.mxu0 %v163
    %985 = vmatpush1.msra.mxu0 %v162
    %986 = vmatprep.subr.mxu0 %v167
    %987 = vmatpush1.msra.mxu0 %v166
    %988 = vmatprep.subr.mxu0 %v171
    %989 = vmatpush1.msra.mxu0 %v170
    %990 = vmatprep.subr.mxu0 %v175
    %991 = vmatpush1.msra.mxu0 %v174
    %992 = vmatprep.subr.mxu0 %v179
    %993 = vmatpush1.msra.mxu0 %v178
    %994 = vmatprep.subr.mxu0 %v183
    %995 = vmatpush1.msra.mxu0 %v182
    %996 = vmatprep.subr.mxu0 0.0
    %997 = vmatpush1.msra.mxu0 0.0
    %998 = vmatprep.subr.mxu0 0.0
    %999 = vmatpush1.msra.mxu0 0.0
    %1000 = vmatprep.subr.mxu0 0.0
    %1001 = vmatpush1.msra.mxu0 0.0
    %1002 = vmatprep.subr.mxu0 0.0
    %1003 = vmatpush1.msra.mxu0 0.0
    %1004 = vmatprep.subr.mxu0 0.0
    %1005 = vmatpush1.msra.mxu0 0.0
    %1006 = vmatprep.subr.mxu0 0.0
    %1007 = vmatpush1.msra.mxu0 0.0
    %1008 = vmatprep.subr.mxu0 0.0
    %1009 = vmatpush1.msra.mxu0 0.0
    %1010 = vmatprep.subr.mxu0 0.0
    %1011 = vmatpush1.msra.mxu0 0.0
    %1012 = vmatprep.subr.mxu0 0.0
    %1013 = vmatpush1.msra.mxu0 0.0
    %1014 = vmatprep.subr.mxu0 0.0
    %1015 = vmatpush1.msra.mxu0 0.0
    %1016 = vmatprep.subr.mxu0 0.0
    %1017 = vmatpush1.msra.mxu0 0.0
    %1018 = vmatprep.subr.mxu0 0.0
    %1019 = vmatpush1.msra.mxu0 0.0
    %1020 = vmatprep.subr.mxu0 0.0
    %1021 = vmatpush1.msra.mxu0 0.0
    %1022 = vmatprep.subr.mxu0 0.0
    %1023 = vmatpush1.msra.mxu0 0.0
    %1024 = vmatprep.subr.mxu0 0.0
    %1025 = vmatpush1.msra.mxu0 0.0
    %1026 = vmatprep.subr.mxu0 0.0
    %1027 = vmatpush1.msra.mxu0 0.0
    %1028 = vmatprep.mubr.f32.mxu0 0.0
    %1029 = vmatmul.mubr.f32.gmra.mrb[0].mxu0 %v885
    %v1030 = vpop.f32.mrb[0].mxu0
    %v1031 = vadd.f32 0.0, %v1030
    %v1032 = vpop.f32.mrb[0].mxu0
    %v1033 = vadd.f32 0.0, %v1032
    %1034 = vdwg.mxu0
    %v1035 = vadd.f32 %v889, %v960
    %v1036 = vadd.f32 %v890, %v962
    %v1037 = vadd.f32 %v891, %v1031
    %v1038 = vadd.f32 %v892, %v1033
    %v1039 = vxor.u32 %v1035, 2147483648
    %v1040 = vmul.f32 %v1039, 1.442695
    %v1041 = vpow.pop %v1040
    %v1042 = vadd.f32 %v1041, 1.0
    %v1043 = vrcp.pop %v1042
    %v1044 = vmul.f32 1.0, %v1043
    %v1045 = vxor.u32 %v1036, 2147483648
    %v1046 = vmul.f32 %v1045, 1.442695
    %v1047 = vpow.pop %v1046
    %v1048 = vadd.f32 %v1047, 1.0
    %v1049 = vrcp.pop %v1048
    %v1050 = vmul.f32 1.0, %v1049
    %v1051 = vtanh.pop %v1037
    %v1052 = vxor.u32 %v1038, 2147483648
    %v1053 = vmul.f32 %v1052, 1.442695
    %v1054 = vpow.pop %v1053
    %v1055 = vadd.f32 %v1054, 1.0
    %v1056 = vrcp.pop %v1055
    %v1057 = vmul.f32 1.0, %v1056
    %v1058 = vmul.f32 %v1050, %v883
    %v1059 = vmul.f32 %v1044, %v1051
    %v1060 = vadd.f32 %v1058, %v1059
    %v1061 = vtanh.pop %v1060
    %v1062 = vmul.f32 %v1057, %v1061
    %s1063 = smul.u32 2, 4
    %s1064 = smul.addr %s1063, 8
    %s1065 = scalar_lea.vmem [#allocation2], %s1064
    %v1066 = vld [vmem:[%s1065] sm:$0xff]
    %v1067 = vld [vmem:[%s1065 + $0x8] sm:$0xff]
    %v1068 = vld [vmem:[%s1065 + $0x10] sm:$0xff]
    %v1069 = vld [vmem:[%s1065 + $0x18] sm:$0xff]
    %1070 = vmatprep.subr.mxu0 %v121
    %1071 = vmatpush1.msra.mxu0 %v120
    %1072 = vmatprep.subr.mxu0 %v125
    %1073 = vmatpush1.msra.mxu0 %v124
    %1074 = vmatprep.subr.mxu0 %v129
    %1075 = vmatpush1.msra.mxu0 %v128
    %1076 = vmatprep.subr.mxu0 %v133
    %1077 = vmatpush1.msra.mxu0 %v132
    %1078 = vmatprep.subr.mxu0 %v137
    %1079 = vmatpush1.msra.mxu0 %v136
    %1080 = vmatprep.subr.mxu0 %v141
    %1081 = vmatpush1.msra.mxu0 %v140
    %1082 = vmatprep.subr.mxu0 %v145
    %1083 = vmatpush1.msra.mxu0 %v144
    %1084 = vmatprep.subr.mxu0 %v149
    %1085 = vmatpush1.msra.mxu0 %v148
    %1086 = vmatprep.subr.mxu0 %v153
    %1087 = vmatpush1.msra.mxu0 %v152
    %1088 = vmatprep.subr.mxu0 %v157
    %1089 = vmatpush1.msra.mxu0 %v156
    %1090 = vmatprep.subr.mxu0 %v161
    %1091 = vmatpush1.msra.mxu0 %v160
    %1092 = vmatprep.subr.mxu0 %v165
    %1093 = vmatpush1.msra.mxu0 %v164
    %1094 = vmatprep.subr.mxu0 %v169
    %1095 = vmatpush1.msra.mxu0 %v168
    %1096 = vmatprep.subr.mxu0 %v173
    %1097 = vmatpush1.msra.mxu0 %v172
    %1098 = vmatprep.subr.mxu0 %v177
    %1099 = vmatpush1.msra.mxu0 %v176
    %1100 = vmatprep.subr.mxu0 %v181
    %1101 = vmatpush1.msra.mxu0 %v180
    %1102 = vmatprep.subr.mxu0 0.0
    %1103 = vmatpush1.msra.mxu0 0.0
    %1104 = vmatprep.subr.mxu0 0.0
    %1105 = vmatpush1.msra.mxu0 0.0
    %1106 = vmatprep.subr.mxu0 0.0
    %1107 = vmatpush1.msra.mxu0 0.0
    %1108 = vmatprep.subr.mxu0 0.0
    %1109 = vmatpush1.msra.mxu0 0.0
    %1110 = vmatprep.subr.mxu0 0.0
    %1111 = vmatpush1.msra.mxu0 0.0
    %1112 = vmatprep.subr.mxu0 0.0
    %1113 = vmatpush1.msra.mxu0 0.0
    %1114 = vmatprep.subr.mxu0 0.0
    %1115 = vmatpush1.msra.mxu0 0.0
    %1116 = vmatprep.subr.mxu0 0.0
    %1117 = vmatpush1.msra.mxu0 0.0
    %1118 = vmatprep.subr.mxu0 0.0
    %1119 = vmatpush1.msra.mxu0 0.0
    %1120 = vmatprep.subr.mxu0 0.0
    %1121 = vmatpush1.msra.mxu0 0.0
    %1122 = vmatprep.subr.mxu0 0.0
    %1123 = vmatpush1.msra.mxu0 0.0
    %1124 = vmatprep.subr.mxu0 0.0
    %1125 = vmatpush1.msra.mxu0 0.0
    %1126 = vmatprep.subr.mxu0 0.0
    %1127 = vmatpush1.msra.mxu0 0.0
    %1128 = vmatprep.subr.mxu0 0.0
    %1129 = vmatpush1.msra.mxu0 0.0
    %1130 = vmatprep.subr.mxu0 0.0
    %1131 = vmatpush1.msra.mxu0 0.0
    %1132 = vmatprep.subr.mxu0 0.0
    %1133 = vmatpush1.msra.mxu0 0.0
    %1134 = vmatprep.mubr.f32.mxu0 0.0
    %1135 = vmatmul.mubr.f32.gmra.mrb[0].mxu0 %v1062
    %v1136 = vpop.f32.mrb[0].mxu0
    %v1137 = vadd.f32 0.0, %v1136
    %v1138 = vpop.f32.mrb[0].mxu0
    %v1139 = vadd.f32 0.0, %v1138
    %1140 = vdwg.mxu0
    %1141 = vmatprep.subr.mxu0 %v123
    %1142 = vmatpush1.msra.mxu0 %v122
    %1143 = vmatprep.subr.mxu0 %v127
    %1144 = vmatpush1.msra.mxu0 %v126
    %1145 = vmatprep.subr.mxu0 %v131
    %1146 = vmatpush1.msra.mxu0 %v130
    %1147 = vmatprep.subr.mxu0 %v135
    %1148 = vmatpush1.msra.mxu0 %v134
    %1149 = vmatprep.subr.mxu0 %v139
    %1150 = vmatpush1.msra.mxu0 %v138
    %1151 = vmatprep.subr.mxu0 %v143
    %1152 = vmatpush1.msra.mxu0 %v142
    %1153 = vmatprep.subr.mxu0 %v147
    %1154 = vmatpush1.msra.mxu0 %v146
    %1155 = vmatprep.subr.mxu0 %v151
    %1156 = vmatpush1.msra.mxu0 %v150
    %1157 = vmatprep.subr.mxu0 %v155
    %1158 = vmatpush1.msra.mxu0 %v154
    %1159 = vmatprep.subr.mxu0 %v159
    %1160 = vmatpush1.msra.mxu0 %v158
    %1161 = vmatprep.subr.mxu0 %v163
    %1162 = vmatpush1.msra.mxu0 %v162
    %1163 = vmatprep.subr.mxu0 %v167
    %1164 = vmatpush1.msra.mxu0 %v166
    %1165 = vmatprep.subr.mxu0 %v171
    %1166 = vmatpush1.msra.mxu0 %v170
    %1167 = vmatprep.subr.mxu0 %v175
    %1168 = vmatpush1.msra.mxu0 %v174
    %1169 = vmatprep.subr.mxu0 %v179
    %1170 = vmatpush1.msra.mxu0 %v178
    %1171 = vmatprep.subr.mxu0 %v183
    %1172 = vmatpush1.msra.mxu0 %v182
    %1173 = vmatprep.subr.mxu0 0.0
    %1174 = vmatpush1.msra.mxu0 0.0
    %1175 = vmatprep.subr.mxu0 0.0
    %1176 = vmatpush1.msra.mxu0 0.0
    %1177 = vmatprep.subr.mxu0 0.0
    %1178 = vmatpush1.msra.mxu0 0.0
    %1179 = vmatprep.subr.mxu0 0.0
    %1180 = vmatpush1.msra.mxu0 0.0
    %1181 = vmatprep.subr.mxu0 0.0
    %1182 = vmatpush1.msra.mxu0 0.0
    %1183 = vmatprep.subr.mxu0 0.0
    %1184 = vmatpush1.msra.mxu0 0.0
    %1185 = vmatprep.subr.mxu0 0.0
    %1186 = vmatpush1.msra.mxu0 0.0
    %1187 = vmatprep.subr.mxu0 0.0
    %1188 = vmatpush1.msra.mxu0 0.0
    %1189 = vmatprep.subr.mxu0 0.0
    %1190 = vmatpush1.msra.mxu0 0.0
    %1191 = vmatprep.subr.mxu0 0.0
    %1192 = vmatpush1.msra.mxu0 0.0
    %1193 = vmatprep.subr.mxu0 0.0
    %1194 = vmatpush1.msra.mxu0 0.0
    %1195 = vmatprep.subr.mxu0 0.0
    %1196 = vmatpush1.msra.mxu0 0.0
    %1197 = vmatprep.subr.mxu0 0.0
    %1198 = vmatpush1.msra.mxu0 0.0
    %1199 = vmatprep.subr.mxu0 0.0
    %1200 = vmatpush1.msra.mxu0 0.0
    %1201 = vmatprep.subr.mxu0 0.0
    %1202 = vmatpush1.msra.mxu0 0.0
    %1203 = vmatprep.subr.mxu0 0.0
    %1204 = vmatpush1.msra.mxu0 0.0
    %1205 = vmatprep.mubr.f32.mxu0 0.0
    %1206 = vmatmul.mubr.f32.gmra.mrb[0].mxu0 %v1062
    %v1207 = vpop.f32.mrb[0].mxu0
    %v1208 = vadd.f32 0.0, %v1207
    %v1209 = vpop.f32.mrb[0].mxu0
    %v1210 = vadd.f32 0.0, %v1209
    %1211 = vdwg.mxu0
    %v1212 = vadd.f32 %v1066, %v1137
    %v1213 = vadd.f32 %v1067, %v1139
    %v1214 = vadd.f32 %v1068, %v1208
    %v1215 = vadd.f32 %v1069, %v1210
    %v1216 = vxor.u32 %v1212, 2147483648
    %v1217 = vmul.f32 %v1216, 1.442695
    %v1218 = vpow.pop %v1217
    %v1219 = vadd.f32 %v1218, 1.0
    %v1220 = vrcp.pop %v1219
    %v1221 = vmul.f32 1.0, %v1220
    %v1222 = vxor.u32 %v1213, 2147483648
    %v1223 = vmul.f32 %v1222, 1.442695
    %v1224 = vpow.pop %v1223
    %v1225 = vadd.f32 %v1224, 1.0
    %v1226 = vrcp.pop %v1225
    %v1227 = vmul.f32 1.0, %v1226
    %v1228 = vtanh.pop %v1214
    %v1229 = vxor.u32 %v1215, 2147483648
    %v1230 = vmul.f32 %v1229, 1.442695
    %v1231 = vpow.pop %v1230
    %v1232 = vadd.f32 %v1231, 1.0
    %v1233 = vrcp.pop %v1232
    %v1234 = vmul.f32 1.0, %v1233
    %v1235 = vmul.f32 %v1227, %v1060
    %v1236 = vmul.f32 %v1221, %v1228
    %v1237 = vadd.f32 %v1235, %v1236
    %v1238 = vtanh.pop %v1237
    %v1239 = vmul.f32 %v1234, %v1238
    %s1240 = smul.u32 3, 4
    %s1241 = smul.addr %s1240, 8
    %s1242 = scalar_lea.vmem [#allocation2], %s1241
    %v1243 = vld [vmem:[%s1242] sm:$0xff]
    %v1244 = vld [vmem:[%s1242 + $0x8] sm:$0xff]
    %v1245 = vld [vmem:[%s1242 + $0x10] sm:$0xff]
    %v1246 = vld [vmem:[%s1242 + $0x18] sm:$0xff]
    %1247 = vmatprep.subr.mxu0 %v121
    %1248 = vmatpush1.msra.mxu0 %v120
    %1249 = vmatprep.subr.mxu0 %v125
    %1250 = vmatpush1.msra.mxu0 %v124
    %1251 = vmatprep.subr.mxu0 %v129
    %1252 = vmatpush1.msra.mxu0 %v128
    %1253 = vmatprep.subr.mxu0 %v133
    %1254 = vmatpush1.msra.mxu0 %v132
    %1255 = vmatprep.subr.mxu0 %v137
    %1256 = vmatpush1.msra.mxu0 %v136
    %1257 = vmatprep.subr.mxu0 %v141
    %1258 = vmatpush1.msra.mxu0 %v140
    %1259 = vmatprep.subr.mxu0 %v145
    %1260 = vmatpush1.msra.mxu0 %v144
    %1261 = vmatprep.subr.mxu0 %v149
    %1262 = vmatpush1.msra.mxu0 %v148
    %1263 = vmatprep.subr.mxu0 %v153
    %1264 = vmatpush1.msra.mxu0 %v152
    %1265 = vmatprep.subr.mxu0 %v157
    %1266 = vmatpush1.msra.mxu0 %v156
    %1267 = vmatprep.subr.mxu0 %v161
    %1268 = vmatpush1.msra.mxu0 %v160
    %1269 = vmatprep.subr.mxu0 %v165
    %1270 = vmatpush1.msra.mxu0 %v164
    %1271 = vmatprep.subr.mxu0 %v169
    %1272 = vmatpush1.msra.mxu0 %v168
    %1273 = vmatprep.subr.mxu0 %v173
    %1274 = vmatpush1.msra.mxu0 %v172
    %1275 = vmatprep.subr.mxu0 %v177
    %1276 = vmatpush1.msra.mxu0 %v176
    %1277 = vmatprep.subr.mxu0 %v181
    %1278 = vmatpush1.msra.mxu0 %v180
    %1279 = vmatprep.subr.mxu0 0.0
    %1280 = vmatpush1.msra.mxu0 0.0
    %1281 = vmatprep.subr.mxu0 0.0
    %1282 = vmatpush1.msra.mxu0 0.0
    %1283 = vmatprep.subr.mxu0 0.0
    %1284 = vmatpush1.msra.mxu0 0.0
    %1285 = vmatprep.subr.mxu0 0.0
    %1286 = vmatpush1.msra.mxu0 0.0
    %1287 = vmatprep.subr.mxu0 0.0
    %1288 = vmatpush1.msra.mxu0 0.0
    %1289 = vmatprep.subr.mxu0 0.0
    %1290 = vmatpush1.msra.mxu0 0.0
    %1291 = vmatprep.subr.mxu0 0.0
    %1292 = vmatpush1.msra.mxu0 0.0
    %1293 = vmatprep.subr.mxu0 0.0
    %1294 = vmatpush1.msra.mxu0 0.0
    %1295 = vmatprep.subr.mxu0 0.0
    %1296 = vmatpush1.msra.mxu0 0.0
    %1297 = vmatprep.subr.mxu0 0.0
    %1298 = vmatpush1.msra.mxu0 0.0
    %1299 = vmatprep.subr.mxu0 0.0
    %1300 = vmatpush1.msra.mxu0 0.0
    %1301 = vmatprep.subr.mxu0 0.0
    %1302 = vmatpush1.msra.mxu0 0.0
    %1303 = vmatprep.subr.mxu0 0.0
    %1304 = vmatpush1.msra.mxu0 0.0
    %1305 = vmatprep.subr.mxu0 0.0
    %1306 = vmatpush1.msra.mxu0 0.0
    %1307 = vmatprep.subr.mxu0 0.0
    %1308 = vmatpush1.msra.mxu0 0.0
    %1309 = vmatprep.subr.mxu0 0.0
    %1310 = vmatpush1.msra.mxu0 0.0
    %1311 = vmatprep.mubr.f32.mxu0 0.0
    %1312 = vmatmul.mubr.f32.gmra.mrb[0].mxu0 %v1239
    %v1313 = vpop.f32.mrb[0].mxu0
    %v1314 = vadd.f32 0.0, %v1313
    %v1315 = vpop.f32.mrb[0].mxu0
    %v1316 = vadd.f32 0.0, %v1315
    %1317 = vdwg.mxu0
    %1318 = vmatprep.subr.mxu0 %v123
    %1319 = vmatpush1.msra.mxu0 %v122
    %1320 = vmatprep.subr.mxu0 %v127
    %1321 = vmatpush1.msra.mxu0 %v126
    %1322 = vmatprep.subr.mxu0 %v131
    %1323 = vmatpush1.msra.mxu0 %v130
    %1324 = vmatprep.subr.mxu0 %v135
    %1325 = vmatpush1.msra.mxu0 %v134
    %1326 = vmatprep.subr.mxu0 %v139
    %1327 = vmatpush1.msra.mxu0 %v138
    %1328 = vmatprep.subr.mxu0 %v143
    %1329 = vmatpush1.msra.mxu0 %v142
    %1330 = vmatprep.subr.mxu0 %v147
    %1331 = vmatpush1.msra.mxu0 %v146
    %1332 = vmatprep.subr.mxu0 %v151
    %1333 = vmatpush1.msra.mxu0 %v150
    %1334 = vmatprep.subr.mxu0 %v155
    %1335 = vmatpush1.msra.mxu0 %v154
    %1336 = vmatprep.subr.mxu0 %v159
    %1337 = vmatpush1.msra.mxu0 %v158
    %1338 = vmatprep.subr.mxu0 %v163
    %1339 = vmatpush1.msra.mxu0 %v162
    %1340 = vmatprep.subr.mxu0 %v167
    %1341 = vmatpush1.msra.mxu0 %v166
    %1342 = vmatprep.subr.mxu0 %v171
    %1343 = vmatpush1.msra.mxu0 %v170
    %1344 = vmatprep.subr.mxu0 %v175
    %1345 = vmatpush1.msra.mxu0 %v174
    %1346 = vmatprep.subr.mxu0 %v179
    %1347 = vmatpush1.msra.mxu0 %v178
    %1348 = vmatprep.subr.mxu0 %v183
    %1349 = vmatpush1.msra.mxu0 %v182
    %1350 = vmatprep.subr.mxu0 0.0
    %1351 = vmatpush1.msra.mxu0 0.0
    %1352 = vmatprep.subr.mxu0 0.0
    %1353 = vmatpush1.msra.mxu0 0.0
    %1354 = vmatprep.subr.mxu0 0.0
    %1355 = vmatpush1.msra.mxu0 0.0
    %1356 = vmatprep.subr.mxu0 0.0
    %1357 = vmatpush1.msra.mxu0 0.0
    %1358 = vmatprep.subr.mxu0 0.0
    %1359 = vmatpush1.msra.mxu0 0.0
    %1360 = vmatprep.subr.mxu0 0.0
    %1361 = vmatpush1.msra.mxu0 0.0
    %1362 = vmatprep.subr.mxu0 0.0
    %1363 = vmatpush1.msra.mxu0 0.0
    %1364 = vmatprep.subr.mxu0 0.0
    %1365 = vmatpush1.msra.mxu0 0.0
    %1366 = vmatprep.subr.mxu0 0.0
    %1367 = vmatpush1.msra.mxu0 0.0
    %1368 = vmatprep.subr.mxu0 0.0
    %1369 = vmatpush1.msra.mxu0 0.0
    %1370 = vmatprep.subr.mxu0 0.0
    %1371 = vmatpush1.msra.mxu0 0.0
    %1372 = vmatprep.subr.mxu0 0.0
    %1373 = vmatpush1.msra.mxu0 0.0
    %1374 = vmatprep.subr.mxu0 0.0
    %1375 = vmatpush1.msra.mxu0 0.0
    %1376 = vmatprep.subr.mxu0 0.0
    %1377 = vmatpush1.msra.mxu0 0.0
    %1378 = vmatprep.subr.mxu0 0.0
    %1379 = vmatpush1.msra.mxu0 0.0
    %1380 = vmatprep.subr.mxu0 0.0
    %1381 = vmatpush1.msra.mxu0 0.0
    %1382 = vmatprep.mubr.f32.mxu0 0.0
    %1383 = vmatmul.mubr.f32.gmra.mrb[0].mxu0 %v1239
    %v1384 = vpop.f32.mrb[0].mxu0
    %v1385 = vadd.f32 0.0, %v1384
    %v1386 = vpop.f32.mrb[0].mxu0
    %v1387 = vadd.f32 0.0, %v1386
    %1388 = vdwg.mxu0
    %v1389 = vadd.f32 %v1243, %v1314
    %v1390 = vadd.f32 %v1244, %v1316
    %v1391 = vadd.f32 %v1245, %v1385
    %v1392 = vadd.f32 %v1246, %v1387
    %v1393 = vxor.u32 %v1389, 2147483648
    %v1394 = vmul.f32 %v1393, 1.442695
    %v1395 = vpow.pop %v1394
    %v1396 = vadd.f32 %v1395, 1.0
    %v1397 = vrcp.pop %v1396
    %v1398 = vmul.f32 1.0, %v1397
    %v1399 = vxor.u32 %v1390, 2147483648
    %v1400 = vmul.f32 %v1399, 1.442695
    %v1401 = vpow.pop %v1400
    %v1402 = vadd.f32 %v1401, 1.0
    %v1403 = vrcp.pop %v1402
    %v1404 = vmul.f32 1.0, %v1403
    %v1405 = vtanh.pop %v1391
    %v1406 = vxor.u32 %v1392, 2147483648
    %v1407 = vmul.f32 %v1406, 1.442695
    %v1408 = vpow.pop %v1407
    %v1409 = vadd.f32 %v1408, 1.0
    %v1410 = vrcp.pop %v1409
    %v1411 = vmul.f32 1.0, %v1410
    %v1412 = vmul.f32 %v1404, %v1237
    %v1413 = vmul.f32 %v1398, %v1405
    %v1414 = vadd.f32 %v1412, %v1413
    %v1415 = vtanh.pop %v1414
    %v1416 = vmul.f32 %v1411, %v1415
    %s1417 = smul.u32 4, 4
    %s1418 = smul.addr %s1417, 8
    %s1419 = scalar_lea.vmem [#allocation2], %s1418
    %v1420 = vld [vmem:[%s1419] sm:$0xff]
    %v1421 = vld [vmem:[%s1419 + $0x8] sm:$0xff]
    %v1422 = vld [vmem:[%s1419 + $0x10] sm:$0xff]
    %v1423 = vld [vmem:[%s1419 + $0x18] sm:$0xff]
    %1424 = vmatprep.subr.mxu0 %v121
    %1425 = vmatpush1.msra.mxu0 %v120
    %1426 = vmatprep.subr.mxu0 %v125
    %1427 = vmatpush1.msra.mxu0 %v124
    %1428 = vmatprep.subr.mxu0 %v129
    %1429 = vmatpush1.msra.mxu0 %v128
    %1430 = vmatprep.subr.mxu0 %v133
    %1431 = vmatpush1.msra.mxu0 %v132
    %1432 = vmatprep.subr.mxu0 %v137
    %1433 = vmatpush1.msra.mxu0 %v136
    %1434 = vmatprep.subr.mxu0 %v141
    %1435 = vmatpush1.msra.mxu0 %v140
    %1436 = vmatprep.subr.mxu0 %v145
    %1437 = vmatpush1.msra.mxu0 %v144
    %1438 = vmatprep.subr.mxu0 %v149
    %1439 = vmatpush1.msra.mxu0 %v148
    %1440 = vmatprep.subr.mxu0 %v153
    %1441 = vmatpush1.msra.mxu0 %v152
    %1442 = vmatprep.subr.mxu0 %v157
    %1443 = vmatpush1.msra.mxu0 %v156
    %1444 = vmatprep.subr.mxu0 %v161
    %1445 = vmatpush1.msra.mxu0 %v160
    %1446 = vmatprep.subr.mxu0 %v165
    %1447 = vmatpush1.msra.mxu0 %v164
    %1448 = vmatprep.subr.mxu0 %v169
    %1449 = vmatpush1.msra.mxu0 %v168
    %1450 = vmatprep.subr.mxu0 %v173
    %1451 = vmatpush1.msra.mxu0 %v172
    %1452 = vmatprep.subr.mxu0 %v177
    %1453 = vmatpush1.msra.mxu0 %v176
    %1454 = vmatprep.subr.mxu0 %v181
    %1455 = vmatpush1.msra.mxu0 %v180
    %1456 = vmatprep.subr.mxu0 0.0
    %1457 = vmatpush1.msra.mxu0 0.0
    %1458 = vmatprep.subr.mxu0 0.0
    %1459 = vmatpush1.msra.mxu0 0.0
    %1460 = vmatprep.subr.mxu0 0.0
    %1461 = vmatpush1.msra.mxu0 0.0
    %1462 = vmatprep.subr.mxu0 0.0
    %1463 = vmatpush1.msra.mxu0 0.0
    %1464 = vmatprep.subr.mxu0 0.0
    %1465 = vmatpush1.msra.mxu0 0.0
    %1466 = vmatprep.subr.mxu0 0.0
    %1467 = vmatpush1.msra.mxu0 0.0
    %1468 = vmatprep.subr.mxu0 0.0
    %1469 = vmatpush1.msra.mxu0 0.0
    %1470 = vmatprep.subr.mxu0 0.0
    %1471 = vmatpush1.msra.mxu0 0.0
    %1472 = vmatprep.subr.mxu0 0.0
    %1473 = vmatpush1.msra.mxu0 0.0
    %1474 = vmatprep.subr.mxu0 0.0
    %1475 = vmatpush1.msra.mxu0 0.0
    %1476 = vmatprep.subr.mxu0 0.0
    %1477 = vmatpush1.msra.mxu0 0.0
    %1478 = vmatprep.subr.mxu0 0.0
    %1479 = vmatpush1.msra.mxu0 0.0
    %1480 = vmatprep.subr.mxu0 0.0
    %1481 = vmatpush1.msra.mxu0 0.0
    %1482 = vmatprep.subr.mxu0 0.0
    %1483 = vmatpush1.msra.mxu0 0.0
    %1484 = vmatprep.subr.mxu0 0.0
    %1485 = vmatpush1.msra.mxu0 0.0
    %1486 = vmatprep.subr.mxu0 0.0
    %1487 = vmatpush1.msra.mxu0 0.0
    %1488 = vmatprep.mubr.f32.mxu0 0.0
    %1489 = vmatmul.mubr.f32.gmra.mrb[0].mxu0 %v1416
    %v1490 = vpop.f32.mrb[0].mxu0
    %v1491 = vadd.f32 0.0, %v1490
    %v1492 = vpop.f32.mrb[0].mxu0
    %v1493 = vadd.f32 0.0, %v1492
    %1494 = vdwg.mxu0
    %1495 = vmatprep.subr.mxu0 %v123
    %1496 = vmatpush1.msra.mxu0 %v122
    %1497 = vmatprep.subr.mxu0 %v127
    %1498 = vmatpush1.msra.mxu0 %v126
    %1499 = vmatprep.subr.mxu0 %v131
    %1500 = vmatpush1.msra.mxu0 %v130
    %1501 = vmatprep.subr.mxu0 %v135
    %1502 = vmatpush1.msra.mxu0 %v134
    %1503 = vmatprep.subr.mxu0 %v139
    %1504 = vmatpush1.msra.mxu0 %v138
    %1505 = vmatprep.subr.mxu0 %v143
    %1506 = vmatpush1.msra.mxu0 %v142
    %1507 = vmatprep.subr.mxu0 %v147
    %1508 = vmatpush1.msra.mxu0 %v146
    %1509 = vmatprep.subr.mxu0 %v151
    %1510 = vmatpush1.msra.mxu0 %v150
    %1511 = vmatprep.subr.mxu0 %v155
    %1512 = vmatpush1.msra.mxu0 %v154
    %1513 = vmatprep.subr.mxu0 %v159
    %1514 = vmatpush1.msra.mxu0 %v158
    %1515 = vmatprep.subr.mxu0 %v163
    %1516 = vmatpush1.msra.mxu0 %v162
    %1517 = vmatprep.subr.mxu0 %v167
    %1518 = vmatpush1.msra.mxu0 %v166
    %1519 = vmatprep.subr.mxu0 %v171
    %1520 = vmatpush1.msra.mxu0 %v170
    %1521 = vmatprep.subr.mxu0 %v175
    %1522 = vmatpush1.msra.mxu0 %v174
    %1523 = vmatprep.subr.mxu0 %v179
    %1524 = vmatpush1.msra.mxu0 %v178
    %1525 = vmatprep.subr.mxu0 %v183
    %1526 = vmatpush1.msra.mxu0 %v182
    %1527 = vmatprep.subr.mxu0 0.0
    %1528 = vmatpush1.msra.mxu0 0.0
    %1529 = vmatprep.subr.mxu0 0.0
    %1530 = vmatpush1.msra.mxu0 0.0
    %1531 = vmatprep.subr.mxu0 0.0
    %1532 = vmatpush1.msra.mxu0 0.0
    %1533 = vmatprep.subr.mxu0 0.0
    %1534 = vmatpush1.msra.mxu0 0.0
    %1535 = vmatprep.subr.mxu0 0.0
    %1536 = vmatpush1.msra.mxu0 0.0
    %1537 = vmatprep.subr.mxu0 0.0
    %1538 = vmatpush1.msra.mxu0 0.0
    %1539 = vmatprep.subr.mxu0 0.0
    %1540 = vmatpush1.msra.mxu0 0.0
    %1541 = vmatprep.subr.mxu0 0.0
    %1542 = vmatpush1.msra.mxu0 0.0
    %1543 = vmatprep.subr.mxu0 0.0
    %1544 = vmatpush1.msra.mxu0 0.0
    %1545 = vmatprep.subr.mxu0 0.0
    %1546 = vmatpush1.msra.mxu0 0.0
    %1547 = vmatprep.subr.mxu0 0.0
    %1548 = vmatpush1.msra.mxu0 0.0
    %1549 = vmatprep.subr.mxu0 0.0
    %1550 = vmatpush1.msra.mxu0 0.0
    %1551 = vmatprep.subr.mxu0 0.0
    %1552 = vmatpush1.msra.mxu0 0.0
    %1553 = vmatprep.subr.mxu0 0.0
    %1554 = vmatpush1.msra.mxu0 0.0
    %1555 = vmatprep.subr.mxu0 0.0
    %1556 = vmatpush1.msra.mxu0 0.0
    %1557 = vmatprep.subr.mxu0 0.0
    %1558 = vmatpush1.msra.mxu0 0.0
    %1559 = vmatprep.mubr.f32.mxu0 0.0
    %1560 = vmatmul.mubr.f32.gmra.mrb[0].mxu0 %v1416
    %v1561 = vpop.f32.mrb[0].mxu0
    %v1562 = vadd.f32 0.0, %v1561
    %v1563 = vpop.f32.mrb[0].mxu0
    %v1564 = vadd.f32 0.0, %v1563
    %1565 = vdwg.mxu0
    %v1566 = vadd.f32 %v1420, %v1491
    %v1567 = vadd.f32 %v1421, %v1493
    %v1568 = vadd.f32 %v1422, %v1562
    %v1569 = vadd.f32 %v1423, %v1564
    %v1570 = vxor.u32 %v1566, 2147483648
    %v1571 = vmul.f32 %v1570, 1.442695
    %v1572 = vpow.pop %v1571
    %v1573 = vadd.f32 %v1572, 1.0
    %v1574 = vrcp.pop %v1573
    %v1575 = vmul.f32 1.0, %v1574
    %v1576 = vxor.u32 %v1567, 2147483648
    %v1577 = vmul.f32 %v1576, 1.442695
    %v1578 = vpow.pop %v1577
    %v1579 = vadd.f32 %v1578, 1.0
    %v1580 = vrcp.pop %v1579
    %v1581 = vmul.f32 1.0, %v1580
    %v1582 = vtanh.pop %v1568
    %v1583 = vxor.u32 %v1569, 2147483648
    %v1584 = vmul.f32 %v1583, 1.442695
    %v1585 = vpow.pop %v1584
    %v1586 = vadd.f32 %v1585, 1.0
    %v1587 = vrcp.pop %v1586
    %v1588 = vmul.f32 1.0, %v1587
    %v1589 = vmul.f32 %v1581, %v1414
    %v1590 = vmul.f32 %v1575, %v1582
    %v1591 = vadd.f32 %v1589, %v1590
    %v1592 = vtanh.pop %v1591
    %v1593 = vmul.f32 %v1588, %v1592
    %s1594 = smul.u32 5, 4
    %s1595 = smul.addr %s1594, 8
    %s1596 = scalar_lea.vmem [#allocation2], %s1595
    %v1597 = vld [vmem:[%s1596] sm:$0xff]
    %v1598 = vld [vmem:[%s1596 + $0x8] sm:$0xff]
    %v1599 = vld [vmem:[%s1596 + $0x10] sm:$0xff]
    %v1600 = vld [vmem:[%s1596 + $0x18] sm:$0xff]
    %1601 = vmatprep.subr.mxu0 %v121
    %1602 = vmatpush1.msra.mxu0 %v120
    %1603 = vmatprep.subr.mxu0 %v125
    %1604 = vmatpush1.msra.mxu0 %v124
    %1605 = vmatprep.subr.mxu0 %v129
    %1606 = vmatpush1.msra.mxu0 %v128
    %1607 = vmatprep.subr.mxu0 %v133
    %1608 = vmatpush1.msra.mxu0 %v132
    %1609 = vmatprep.subr.mxu0 %v137
    %1610 = vmatpush1.msra.mxu0 %v136
    %1611 = vmatprep.subr.mxu0 %v141
    %1612 = vmatpush1.msra.mxu0 %v140
    %1613 = vmatprep.subr.mxu0 %v145
    %1614 = vmatpush1.msra.mxu0 %v144
    %1615 = vmatprep.subr.mxu0 %v149
    %1616 = vmatpush1.msra.mxu0 %v148
    %1617 = vmatprep.subr.mxu0 %v153
    %1618 = vmatpush1.msra.mxu0 %v152
    %1619 = vmatprep.subr.mxu0 %v157
    %1620 = vmatpush1.msra.mxu0 %v156
    %1621 = vmatprep.subr.mxu0 %v161
    %1622 = vmatpush1.msra.mxu0 %v160
    %1623 = vmatprep.subr.mxu0 %v165
    %1624 = vmatpush1.msra.mxu0 %v164
    %1625 = vmatprep.subr.mxu0 %v169
    %1626 = vmatpush1.msra.mxu0 %v168
    %1627 = vmatprep.subr.mxu0 %v173
    %1628 = vmatpush1.msra.mxu0 %v172
    %1629 = vmatprep.subr.mxu0 %v177
    %1630 = vmatpush1.msra.mxu0 %v176
    %1631 = vmatprep.subr.mxu0 %v181
    %1632 = vmatpush1.msra.mxu0 %v180
    %1633 = vmatprep.subr.mxu0 0.0
    %1634 = vmatpush1.msra.mxu0 0.0
    %1635 = vmatprep.subr.mxu0 0.0
    %1636 = vmatpush1.msra.mxu0 0.0
    %1637 = vmatprep.subr.mxu0 0.0
    %1638 = vmatpush1.msra.mxu0 0.0
    %1639 = vmatprep.subr.mxu0 0.0
    %1640 = vmatpush1.msra.mxu0 0.0
    %1641 = vmatprep.subr.mxu0 0.0
    %1642 = vmatpush1.msra.mxu0 0.0
    %1643 = vmatprep.subr.mxu0 0.0
    %1644 = vmatpush1.msra.mxu0 0.0
    %1645 = vmatprep.subr.mxu0 0.0
    %1646 = vmatpush1.msra.mxu0 0.0
    %1647 = vmatprep.subr.mxu0 0.0
    %1648 = vmatpush1.msra.mxu0 0.0
    %1649 = vmatprep.subr.mxu0 0.0
    %1650 = vmatpush1.msra.mxu0 0.0
    %1651 = vmatprep.subr.mxu0 0.0
    %1652 = vmatpush1.msra.mxu0 0.0
    %1653 = vmatprep.subr.mxu0 0.0
    %1654 = vmatpush1.msra.mxu0 0.0
    %1655 = vmatprep.subr.mxu0 0.0
    %1656 = vmatpush1.msra.mxu0 0.0
    %1657 = vmatprep.subr.mxu0 0.0
    %1658 = vmatpush1.msra.mxu0 0.0
    %1659 = vmatprep.subr.mxu0 0.0
    %1660 = vmatpush1.msra.mxu0 0.0
    %1661 = vmatprep.subr.mxu0 0.0
    %1662 = vmatpush1.msra.mxu0 0.0
    %1663 = vmatprep.subr.mxu0 0.0
    %1664 = vmatpush1.msra.mxu0 0.0
    %1665 = vmatprep.mubr.f32.mxu0 0.0
    %1666 = vmatmul.mubr.f32.gmra.mrb[0].mxu0 %v1593
    %v1667 = vpop.f32.mrb[0].mxu0
    %v1668 = vadd.f32 0.0, %v1667
    %v1669 = vpop.f32.mrb[0].mxu0
    %v1670 = vadd.f32 0.0, %v1669
    %1671 = vdwg.mxu0
    %1672 = vmatprep.subr.mxu0 %v123
    %1673 = vmatpush1.msra.mxu0 %v122
    %1674 = vmatprep.subr.mxu0 %v127
    %1675 = vmatpush1.msra.mxu0 %v126
    %1676 = vmatprep.subr.mxu0 %v131
    %1677 = vmatpush1.msra.mxu0 %v130
    %1678 = vmatprep.subr.mxu0 %v135
    %1679 = vmatpush1.msra.mxu0 %v134
    %1680 = vmatprep.subr.mxu0 %v139
    %1681 = vmatpush1.msra.mxu0 %v138
    %1682 = vmatprep.subr.mxu0 %v143
    %1683 = vmatpush1.msra.mxu0 %v142
    %1684 = vmatprep.subr.mxu0 %v147
    %1685 = vmatpush1.msra.mxu0 %v146
    %1686 = vmatprep.subr.mxu0 %v151
    %1687 = vmatpush1.msra.mxu0 %v150
    %1688 = vmatprep.subr.mxu0 %v155
    %1689 = vmatpush1.msra.mxu0 %v154
    %1690 = vmatprep.subr.mxu0 %v159
    %1691 = vmatpush1.msra.mxu0 %v158
    %1692 = vmatprep.subr.mxu0 %v163
    %1693 = vmatpush1.msra.mxu0 %v162
    %1694 = vmatprep.subr.mxu0 %v167
    %1695 = vmatpush1.msra.mxu0 %v166
    %1696 = vmatprep.subr.mxu0 %v171
    %1697 = vmatpush1.msra.mxu0 %v170
    %1698 = vmatprep.subr.mxu0 %v175
    %1699 = vmatpush1.msra.mxu0 %v174
    %1700 = vmatprep.subr.mxu0 %v179
    %1701 = vmatpush1.msra.mxu0 %v178
    %1702 = vmatprep.subr.mxu0 %v183
    %1703 = vmatpush1.msra.mxu0 %v182
    %1704 = vmatprep.subr.mxu0 0.0
    %1705 = vmatpush1.msra.mxu0 0.0
    %1706 = vmatprep.subr.mxu0 0.0
    %1707 = vmatpush1.msra.mxu0 0.0
    %1708 = vmatprep.subr.mxu0 0.0
    %1709 = vmatpush1.msra.mxu0 0.0
    %1710 = vmatprep.subr.mxu0 0.0
    %1711 = vmatpush1.msra.mxu0 0.0
    %1712 = vmatprep.subr.mxu0 0.0
    %1713 = vmatpush1.msra.mxu0 0.0
    %1714 = vmatprep.subr.mxu0 0.0
    %1715 = vmatpush1.msra.mxu0 0.0
    %1716 = vmatprep.subr.mxu0 0.0
    %1717 = vmatpush1.msra.mxu0 0.0
    %1718 = vmatprep.subr.mxu0 0.0
    %1719 = vmatpush1.msra.mxu0 0.0
    %1720 = vmatprep.subr.mxu0 0.0
    %1721 = vmatpush1.msra.mxu0 0.0
    %1722 = vmatprep.subr.mxu0 0.0
    %1723 = vmatpush1.msra.mxu0 0.0
    %1724 = vmatprep.subr.mxu0 0.0
    %1725 = vmatpush1.msra.mxu0 0.0
    %1726 = vmatprep.subr.mxu0 0.0
    %1727 = vmatpush1.msra.mxu0 0.0
    %1728 = vmatprep.subr.mxu0 0.0
    %1729 = vmatpush1.msra.mxu0 0.0
    %1730 = vmatprep.subr.mxu0 0.0
    %1731 = vmatpush1.msra.mxu0 0.0
    %1732 = vmatprep.subr.mxu0 0.0
    %1733 = vmatpush1.msra.mxu0 0.0
    %1734 = vmatprep.subr.mxu0 0.0
    %1735 = vmatpush1.msra.mxu0 0.0
    %1736 = vmatprep.mubr.f32.mxu0 0.0
    %1737 = vmatmul.mubr.f32.gmra.mrb[0].mxu0 %v1593
    %v1738 = vpop.f32.mrb[0].mxu0
    %v1739 = vadd.f32 0.0, %v1738
    %v1740 = vpop.f32.mrb[0].mxu0
    %v1741 = vadd.f32 0.0, %v1740
    %1742 = vdwg.mxu0
    %v1743 = vadd.f32 %v1597, %v1668
    %v1744 = vadd.f32 %v1598, %v1670
    %v1745 = vadd.f32 %v1599, %v1739
    %v1746 = vadd.f32 %v1600, %v1741
    %v1747 = vxor.u32 %v1743, 2147483648
    %v1748 = vmul.f32 %v1747, 1.442695
    %v1749 = vpow.pop %v1748
    %v1750 = vadd.f32 %v1749, 1.0
    %v1751 = vrcp.pop %v1750
    %v1752 = vmul.f32 1.0, %v1751
    %v1753 = vxor.u32 %v1744, 2147483648
    %v1754 = vmul.f32 %v1753, 1.442695
    %v1755 = vpow.pop %v1754
    %v1756 = vadd.f32 %v1755, 1.0
    %v1757 = vrcp.pop %v1756
    %v1758 = vmul.f32 1.0, %v1757
    %v1759 = vtanh.pop %v1745
    %v1760 = vxor.u32 %v1746, 2147483648
    %v1761 = vmul.f32 %v1760, 1.442695
    %v1762 = vpow.pop %v1761
    %v1763 = vadd.f32 %v1762, 1.0
    %v1764 = vrcp.pop %v1763
    %v1765 = vmul.f32 1.0, %v1764
    %v1766 = vmul.f32 %v1758, %v1591
    %v1767 = vmul.f32 %v1752, %v1759
    %v1768 = vadd.f32 %v1766, %v1767
    %v1769 = vtanh.pop %v1768
    %v1770 = vmul.f32 %v1765, %v1769
    %s1771 = smul.u32 6, 4
    %s1772 = smul.addr %s1771, 8
    %s1773 = scalar_lea.vmem [#allocation2], %s1772
    %v1774 = vld [vmem:[%s1773] sm:$0xff]
    %v1775 = vld [vmem:[%s1773 + $0x8] sm:$0xff]
    %v1776 = vld [vmem:[%s1773 + $0x10] sm:$0xff]
    %v1777 = vld [vmem:[%s1773 + $0x18] sm:$0xff]
    %1778 = vmatprep.subr.mxu0 %v121
    %1779 = vmatpush1.msra.mxu0 %v120
    %1780 = vmatprep.subr.mxu0 %v125
    %1781 = vmatpush1.msra.mxu0 %v124
    %1782 = vmatprep.subr.mxu0 %v129
    %1783 = vmatpush1.msra.mxu0 %v128
    %1784 = vmatprep.subr.mxu0 %v133
    %1785 = vmatpush1.msra.mxu0 %v132
    %1786 = vmatprep.subr.mxu0 %v137
    %1787 = vmatpush1.msra.mxu0 %v136
    %1788 = vmatprep.subr.mxu0 %v141
    %1789 = vmatpush1.msra.mxu0 %v140
    %1790 = vmatprep.subr.mxu0 %v145
    %1791 = vmatpush1.msra.mxu0 %v144
    %1792 = vmatprep.subr.mxu0 %v149
    %1793 = vmatpush1.msra.mxu0 %v148
    %1794 = vmatprep.subr.mxu0 %v153
    %1795 = vmatpush1.msra.mxu0 %v152
    %1796 = vmatprep.subr.mxu0 %v157
    %1797 = vmatpush1.msra.mxu0 %v156
    %1798 = vmatprep.subr.mxu0 %v161
    %1799 = vmatpush1.msra.mxu0 %v160
    %1800 = vmatprep.subr.mxu0 %v165
    %1801 = vmatpush1.msra.mxu0 %v164
    %1802 = vmatprep.subr.mxu0 %v169
    %1803 = vmatpush1.msra.mxu0 %v168
    %1804 = vmatprep.subr.mxu0 %v173
    %1805 = vmatpush1.msra.mxu0 %v172
    %1806 = vmatprep.subr.mxu0 %v177
    %1807 = vmatpush1.msra.mxu0 %v176
    %1808 = vmatprep.subr.mxu0 %v181
    %1809 = vmatpush1.msra.mxu0 %v180
    %1810 = vmatprep.subr.mxu0 0.0
    %1811 = vmatpush1.msra.mxu0 0.0
    %1812 = vmatprep.subr.mxu0 0.0
    %1813 = vmatpush1.msra.mxu0 0.0
    %1814 = vmatprep.subr.mxu0 0.0
    %1815 = vmatpush1.msra.mxu0 0.0
    %1816 = vmatprep.subr.mxu0 0.0
    %1817 = vmatpush1.msra.mxu0 0.0
    %1818 = vmatprep.subr.mxu0 0.0
    %1819 = vmatpush1.msra.mxu0 0.0
    %1820 = vmatprep.subr.mxu0 0.0
    %1821 = vmatpush1.msra.mxu0 0.0
    %1822 = vmatprep.subr.mxu0 0.0
    %1823 = vmatpush1.msra.mxu0 0.0
    %1824 = vmatprep.subr.mxu0 0.0
    %1825 = vmatpush1.msra.mxu0 0.0
    %1826 = vmatprep.subr.mxu0 0.0
    %1827 = vmatpush1.msra.mxu0 0.0
    %1828 = vmatprep.subr.mxu0 0.0
    %1829 = vmatpush1.msra.mxu0 0.0
    %1830 = vmatprep.subr.mxu0 0.0
    %1831 = vmatpush1.msra.mxu0 0.0
    %1832 = vmatprep.subr.mxu0 0.0
    %1833 = vmatpush1.msra.mxu0 0.0
    %1834 = vmatprep.subr.mxu0 0.0
    %1835 = vmatpush1.msra.mxu0 0.0
    %1836 = vmatprep.subr.mxu0 0.0
    %1837 = vmatpush1.msra.mxu0 0.0
    %1838 = vmatprep.subr.mxu0 0.0
    %1839 = vmatpush1.msra.mxu0 0.0
    %1840 = vmatprep.subr.mxu0 0.0
    %1841 = vmatpush1.msra.mxu0 0.0
    %1842 = vmatprep.mubr.f32.mxu0 0.0
    %1843 = vmatmul.mubr.f32.gmra.mrb[0].mxu0 %v1770
    %v1844 = vpop.f32.mrb[0].mxu0
    %v1845 = vadd.f32 0.0, %v1844
    %v1846 = vpop.f32.mrb[0].mxu0
    %v1847 = vadd.f32 0.0, %v1846
    %1848 = vdwg.mxu0
    %1849 = vmatprep.subr.mxu0 %v123
    %1850 = vmatpush1.msra.mxu0 %v122
    %1851 = vmatprep.subr.mxu0 %v127
    %1852 = vmatpush1.msra.mxu0 %v126
    %1853 = vmatprep.subr.mxu0 %v131
    %1854 = vmatpush1.msra.mxu0 %v130
    %1855 = vmatprep.subr.mxu0 %v135
    %1856 = vmatpush1.msra.mxu0 %v134
    %1857 = vmatprep.subr.mxu0 %v139
    %1858 = vmatpush1.msra.mxu0 %v138
    %1859 = vmatprep.subr.mxu0 %v143
    %1860 = vmatpush1.msra.mxu0 %v142
    %1861 = vmatprep.subr.mxu0 %v147
    %1862 = vmatpush1.msra.mxu0 %v146
    %1863 = vmatprep.subr.mxu0 %v151
    %1864 = vmatpush1.msra.mxu0 %v150
    %1865 = vmatprep.subr.mxu0 %v155
    %1866 = vmatpush1.msra.mxu0 %v154
    %1867 = vmatprep.subr.mxu0 %v159
    %1868 = vmatpush1.msra.mxu0 %v158
    %1869 = vmatprep.subr.mxu0 %v163
    %1870 = vmatpush1.msra.mxu0 %v162
    %1871 = vmatprep.subr.mxu0 %v167
    %1872 = vmatpush1.msra.mxu0 %v166
    %1873 = vmatprep.subr.mxu0 %v171
    %1874 = vmatpush1.msra.mxu0 %v170
    %1875 = vmatprep.subr.mxu0 %v175
    %1876 = vmatpush1.msra.mxu0 %v174
    %1877 = vmatprep.subr.mxu0 %v179
    %1878 = vmatpush1.msra.mxu0 %v178
    %1879 = vmatprep.subr.mxu0 %v183
    %1880 = vmatpush1.msra.mxu0 %v182
    %1881 = vmatprep.subr.mxu0 0.0
    %1882 = vmatpush1.msra.mxu0 0.0
    %1883 = vmatprep.subr.mxu0 0.0
    %1884 = vmatpush1.msra.mxu0 0.0
    %1885 = vmatprep.subr.mxu0 0.0
    %1886 = vmatpush1.msra.mxu0 0.0
    %1887 = vmatprep.subr.mxu0 0.0
    %1888 = vmatpush1.msra.mxu0 0.0
    %1889 = vmatprep.subr.mxu0 0.0
    %1890 = vmatpush1.msra.mxu0 0.0
    %1891 = vmatprep.subr.mxu0 0.0
    %1892 = vmatpush1.msra.mxu0 0.0
    %1893 = vmatprep.subr.mxu0 0.0
    %1894 = vmatpush1.msra.mxu0 0.0
    %1895 = vmatprep.subr.mxu0 0.0
    %1896 = vmatpush1.msra.mxu0 0.0
    %1897 = vmatprep.subr.mxu0 0.0
    %1898 = vmatpush1.msra.mxu0 0.0
    %1899 = vmatprep.subr.mxu0 0.0
    %1900 = vmatpush1.msra.mxu0 0.0
    %1901 = vmatprep.subr.mxu0 0.0
    %1902 = vmatpush1.msra.mxu0 0.0
    %1903 = vmatprep.subr.mxu0 0.0
    %1904 = vmatpush1.msra.mxu0 0.0
    %1905 = vmatprep.subr.mxu0 0.0
    %1906 = vmatpush1.msra.mxu0 0.0
    %1907 = vmatprep.subr.mxu0 0.0
    %1908 = vmatpush1.msra.mxu0 0.0
    %1909 = vmatprep.subr.mxu0 0.0
    %1910 = vmatpush1.msra.mxu0 0.0
    %1911 = vmatprep.subr.mxu0 0.0
    %1912 = vmatpush1.msra.mxu0 0.0
    %1913 = vmatprep.mubr.f32.mxu0 0.0
    %1914 = vmatmul.mubr.f32.gmra.mrb[0].mxu0 %v1770
    %v1915 = vpop.f32.mrb[0].mxu0
    %v1916 = vadd.f32 0.0, %v1915
    %v1917 = vpop.f32.mrb[0].mxu0
    %v1918 = vadd.f32 0.0, %v1917
    %1919 = vdwg.mxu0
    %v1920 = vadd.f32 %v1774, %v1845
    %v1921 = vadd.f32 %v1775, %v1847
    %v1922 = vadd.f32 %v1776, %v1916
    %v1923 = vadd.f32 %v1777, %v1918
    %v1924 = vxor.u32 %v1920, 2147483648
    %v1925 = vmul.f32 %v1924, 1.442695
    %v1926 = vpow.pop %v1925
    %v1927 = vadd.f32 %v1926, 1.0
    %v1928 = vrcp.pop %v1927
    %v1929 = vmul.f32 1.0, %v1928
    %v1930 = vxor.u32 %v1921, 2147483648
    %v1931 = vmul.f32 %v1930, 1.442695
    %v1932 = vpow.pop %v1931
    %v1933 = vadd.f32 %v1932, 1.0
    %v1934 = vrcp.pop %v1933
    %v1935 = vmul.f32 1.0, %v1934
    %v1936 = vtanh.pop %v1922
    %v1937 = vxor.u32 %v1923, 2147483648
    %v1938 = vmul.f32 %v1937, 1.442695
    %v1939 = vpow.pop %v1938
    %v1940 = vadd.f32 %v1939, 1.0
    %v1941 = vrcp.pop %v1940
    %v1942 = vmul.f32 1.0, %v1941
    %v1943 = vmul.f32 %v1935, %v1768
    %v1944 = vmul.f32 %v1929, %v1936
    %v1945 = vadd.f32 %v1943, %v1944
    %v1946 = vtanh.pop %v1945
    %v1947 = vmul.f32 %v1942, %v1946
    %s1948 = smul.u32 7, 4
    %s1949 = smul.addr %s1948, 8
    %s1950 = scalar_lea.vmem [#allocation2], %s1949
    %v1951 = vld [vmem:[%s1950] sm:$0xff]
    %v1952 = vld [vmem:[%s1950 + $0x8] sm:$0xff]
    %v1953 = vld [vmem:[%s1950 + $0x10] sm:$0xff]
    %v1954 = vld [vmem:[%s1950 + $0x18] sm:$0xff]
    %1955 = vmatprep.subr.mxu0 %v121
    %1956 = vmatpush1.msra.mxu0 %v120
    %1957 = vmatprep.subr.mxu0 %v125
    %1958 = vmatpush1.msra.mxu0 %v124
    %1959 = vmatprep.subr.mxu0 %v129
    %1960 = vmatpush1.msra.mxu0 %v128
    %1961 = vmatprep.subr.mxu0 %v133
    %1962 = vmatpush1.msra.mxu0 %v132
    %1963 = vmatprep.subr.mxu0 %v137
    %1964 = vmatpush1.msra.mxu0 %v136
    %1965 = vmatprep.subr.mxu0 %v141
    %1966 = vmatpush1.msra.mxu0 %v140
    %1967 = vmatprep.subr.mxu0 %v145
    %1968 = vmatpush1.msra.mxu0 %v144
    %1969 = vmatprep.subr.mxu0 %v149
    %1970 = vmatpush1.msra.mxu0 %v148
    %1971 = vmatprep.subr.mxu0 %v153
    %1972 = vmatpush1.msra.mxu0 %v152
    %1973 = vmatprep.subr.mxu0 %v157
    %1974 = vmatpush1.msra.mxu0 %v156
    %1975 = vmatprep.subr.mxu0 %v161
    %1976 = vmatpush1.msra.mxu0 %v160
    %1977 = vmatprep.subr.mxu0 %v165
    %1978 = vmatpush1.msra.mxu0 %v164
    %1979 = vmatprep.subr.mxu0 %v169
    %1980 = vmatpush1.msra.mxu0 %v168
    %1981 = vmatprep.subr.mxu0 %v173
    %1982 = vmatpush1.msra.mxu0 %v172
    %1983 = vmatprep.subr.mxu0 %v177
    %1984 = vmatpush1.msra.mxu0 %v176
    %1985 = vmatprep.subr.mxu0 %v181
    %1986 = vmatpush1.msra.mxu0 %v180
    %1987 = vmatprep.subr.mxu0 0.0
    %1988 = vmatpush1.msra.mxu0 0.0
    %1989 = vmatprep.subr.mxu0 0.0
    %1990 = vmatpush1.msra.mxu0 0.0
    %1991 = vmatprep.subr.mxu0 0.0
    %1992 = vmatpush1.msra.mxu0 0.0
    %1993 = vmatprep.subr.mxu0 0.0
    %1994 = vmatpush1.msra.mxu0 0.0
    %1995 = vmatprep.subr.mxu0 0.0
    %1996 = vmatpush1.msra.mxu0 0.0
    %1997 = vmatprep.subr.mxu0 0.0
    %1998 = vmatpush1.msra.mxu0 0.0
    %1999 = vmatprep.subr.mxu0 0.0
    %2000 = vmatpush1.msra.mxu0 0.0
    %2001 = vmatprep.subr.mxu0 0.0
    %2002 = vmatpush1.msra.mxu0 0.0
    %2003 = vmatprep.subr.mxu0 0.0
    %2004 = vmatpush1.msra.mxu0 0.0
    %2005 = vmatprep.subr.mxu0 0.0
    %2006 = vmatpush1.msra.mxu0 0.0
    %2007 = vmatprep.subr.mxu0 0.0
    %2008 = vmatpush1.msra.mxu0 0.0
    %2009 = vmatprep.subr.mxu0 0.0
    %2010 = vmatpush1.msra.mxu0 0.0
    %2011 = vmatprep.subr.mxu0 0.0
    %2012 = vmatpush1.msra.mxu0 0.0
    %2013 = vmatprep.subr.mxu0 0.0
    %2014 = vmatpush1.msra.mxu0 0.0
    %2015 = vmatprep.subr.mxu0 0.0
    %2016 = vmatpush1.msra.mxu0 0.0
    %2017 = vmatprep.subr.mxu0 0.0
    %2018 = vmatpush1.msra.mxu0 0.0
    %2019 = vmatprep.mubr.f32.mxu0 0.0
    %2020 = vmatmul.mubr.f32.gmra.mrb[0].mxu0 %v1947
    %v2021 = vpop.f32.mrb[0].mxu0
    %v2022 = vadd.f32 0.0, %v2021
    %v2023 = vpop.f32.mrb[0].mxu0
    %v2024 = vadd.f32 0.0, %v2023
    %2025 = vdwg.mxu0
    %2026 = vmatprep.subr.mxu0 %v123
    %2027 = vmatpush1.msra.mxu0 %v122
    %2028 = vmatprep.subr.mxu0 %v127
    %2029 = vmatpush1.msra.mxu0 %v126
    %2030 = vmatprep.subr.mxu0 %v131
    %2031 = vmatpush1.msra.mxu0 %v130
    %2032 = vmatprep.subr.mxu0 %v135
    %2033 = vmatpush1.msra.mxu0 %v134
    %2034 = vmatprep.subr.mxu0 %v139
    %2035 = vmatpush1.msra.mxu0 %v138
    %2036 = vmatprep.subr.mxu0 %v143
    %2037 = vmatpush1.msra.mxu0 %v142
    %2038 = vmatprep.subr.mxu0 %v147
    %2039 = vmatpush1.msra.mxu0 %v146
    %2040 = vmatprep.subr.mxu0 %v151
    %2041 = vmatpush1.msra.mxu0 %v150
    %2042 = vmatprep.subr.mxu0 %v155
    %2043 = vmatpush1.msra.mxu0 %v154
    %2044 = vmatprep.subr.mxu0 %v159
    %2045 = vmatpush1.msra.mxu0 %v158
    %2046 = vmatprep.subr.mxu0 %v163
    %2047 = vmatpush1.msra.mxu0 %v162
    %2048 = vmatprep.subr.mxu0 %v167
    %2049 = vmatpush1.msra.mxu0 %v166
    %2050 = vmatprep.subr.mxu0 %v171
    %2051 = vmatpush1.msra.mxu0 %v170
    %2052 = vmatprep.subr.mxu0 %v175
    %2053 = vmatpush1.msra.mxu0 %v174
    %2054 = vmatprep.subr.mxu0 %v179
    %2055 = vmatpush1.msra.mxu0 %v178
    %2056 = vmatprep.subr.mxu0 %v183
    %2057 = vmatpush1.msra.mxu0 %v182
    %2058 = vmatprep.subr.mxu0 0.0
    %2059 = vmatpush1.msra.mxu0 0.0
    %2060 = vmatprep.subr.mxu0 0.0
    %2061 = vmatpush1.msra.mxu0 0.0
    %2062 = vmatprep.subr.mxu0 0.0
    %2063 = vmatpush1.msra.mxu0 0.0
    %2064 = vmatprep.subr.mxu0 0.0
    %2065 = vmatpush1.msra.mxu0 0.0
    %2066 = vmatprep.subr.mxu0 0.0
    %2067 = vmatpush1.msra.mxu0 0.0
    %2068 = vmatprep.subr.mxu0 0.0
    %2069 = vmatpush1.msra.mxu0 0.0
    %2070 = vmatprep.subr.mxu0 0.0
    %2071 = vmatpush1.msra.mxu0 0.0
    %2072 = vmatprep.subr.mxu0 0.0
    %2073 = vmatpush1.msra.mxu0 0.0
    %2074 = vmatprep.subr.mxu0 0.0
    %2075 = vmatpush1.msra.mxu0 0.0
    %2076 = vmatprep.subr.mxu0 0.0
    %2077 = vmatpush1.msra.mxu0 0.0
    %2078 = vmatprep.subr.mxu0 0.0
    %2079 = vmatpush1.msra.mxu0 0.0
    %2080 = vmatprep.subr.mxu0 0.0
    %2081 = vmatpush1.msra.mxu0 0.0
    %2082 = vmatprep.subr.mxu0 0.0
    %2083 = vmatpush1.msra.mxu0 0.0
    %2084 = vmatprep.subr.mxu0 0.0
    %2085 = vmatpush1.msra.mxu0 0.0
    %2086 = vmatprep.subr.mxu0 0.0
    %2087 = vmatpush1.msra.mxu0 0.0
    %2088 = vmatprep.subr.mxu0 0.0
    %2089 = vmatpush1.msra.mxu0 0.0
    %2090 = vmatprep.mubr.f32.mxu0 0.0
    %2091 = vmatmul.mubr.f32.gmra.mrb[0].mxu0 %v1947
    %v2092 = vpop.f32.mrb[0].mxu0
    %v2093 = vadd.f32 0.0, %v2092
    %v2094 = vpop.f32.mrb[0].mxu0
    %v2095 = vadd.f32 0.0, %v2094
    %2096 = vdwg.mxu0
    %v2097 = vadd.f32 %v1951, %v2022
    %v2098 = vadd.f32 %v1952, %v2024
    %v2099 = vadd.f32 %v1953, %v2093
    %v2100 = vadd.f32 %v1954, %v2095
    %v2101 = vxor.u32 %v2097, 2147483648
    %v2102 = vmul.f32 %v2101, 1.442695
    %v2103 = vpow.pop %v2102
    %v2104 = vadd.f32 %v2103, 1.0
    %v2105 = vrcp.pop %v2104
    %v2106 = vmul.f32 1.0, %v2105
    %v2107 = vxor.u32 %v2098, 2147483648
    %v2108 = vmul.f32 %v2107, 1.442695
    %v2109 = vpow.pop %v2108
    %v2110 = vadd.f32 %v2109, 1.0
    %v2111 = vrcp.pop %v2110
    %v2112 = vmul.f32 1.0, %v2111
    %v2113 = vtanh.pop %v2099
    %v2114 = vxor.u32 %v2100, 2147483648
    %v2115 = vmul.f32 %v2114, 1.442695
    %v2116 = vpow.pop %v2115
    %v2117 = vadd.f32 %v2116, 1.0
    %v2118 = vrcp.pop %v2117
    %v2119 = vmul.f32 1.0, %v2118
    %v2120 = vmul.f32 %v2112, %v1945
    %v2121 = vmul.f32 %v2106, %v2113
    %v2122 = vadd.f32 %v2120, %v2121
    %v2123 = vtanh.pop %v2122
    %v2124 = vmul.f32 %v2119, %v2123
    %2125 = vst [vmem:[#allocation17] sm:$0xff] 0.0
    %v2126 = vlaneseq
    %v2127 = vand.u32 %v2126, 127
    %v2128 = vld [vmem:[#allocation9] sm:$0xff]
    %2129 = vst [vmem:[#allocation3] sm:$0xff] %v2128
    %2130 = vst [vmem:[#allocation3 + $0x8] sm:$0xff] %v2124
    %v2131 = vld [vmem:[#allocation3] sm:$0xff]
    %v2132 = vld [vmem:[#allocation3 + $0x8] sm:$0xff]
    %2133 = vmatprep.subr.mxu0 %v185
    %2134 = vmatpush1.msra.mxu0 %v184
    %2135 = vmatprep.subr.mxu0 %v189
    %2136 = vmatpush1.msra.mxu0 %v188
    %2137 = vmatprep.subr.mxu0 %v193
    %2138 = vmatpush1.msra.mxu0 %v192
    %2139 = vmatprep.subr.mxu0 %v197
    %2140 = vmatpush1.msra.mxu0 %v196
    %2141 = vmatprep.subr.mxu0 %v201
    %2142 = vmatpush1.msra.mxu0 %v200
    %2143 = vmatprep.subr.mxu0 %v205
    %2144 = vmatpush1.msra.mxu0 %v204
    %2145 = vmatprep.subr.mxu0 %v209
    %2146 = vmatpush1.msra.mxu0 %v208
    %2147 = vmatprep.subr.mxu0 %v213
    %2148 = vmatpush1.msra.mxu0 %v212
    %2149 = vmatprep.subr.mxu0 %v217
    %2150 = vmatpush1.msra.mxu0 %v216
    %2151 = vmatprep.subr.mxu0 %v221
    %2152 = vmatpush1.msra.mxu0 %v220
    %2153 = vmatprep.subr.mxu0 %v225
    %2154 = vmatpush1.msra.mxu0 %v224
    %2155 = vmatprep.subr.mxu0 %v229
    %2156 = vmatpush1.msra.mxu0 %v228
    %2157 = vmatprep.subr.mxu0 %v233
    %2158 = vmatpush1.msra.mxu0 %v232
    %2159 = vmatprep.subr.mxu0 %v237
    %2160 = vmatpush1.msra.mxu0 %v236
    %2161 = vmatprep.subr.mxu0 %v241
    %2162 = vmatpush1.msra.mxu0 %v240
    %2163 = vmatprep.subr.mxu0 %v245
    %2164 = vmatpush1.msra.mxu0 %v244
    %2165 = vmatprep.subr.mxu0 %v249
    %2166 = vmatpush1.msra.mxu0 %v248
    %2167 = vmatprep.subr.mxu0 %v253
    %2168 = vmatpush1.msra.mxu0 %v252
    %2169 = vmatprep.subr.mxu0 %v257
    %2170 = vmatpush1.msra.mxu0 %v256
    %2171 = vmatprep.subr.mxu0 %v261
    %2172 = vmatpush1.msra.mxu0 %v260
    %2173 = vmatprep.subr.mxu0 %v265
    %2174 = vmatpush1.msra.mxu0 %v264
    %2175 = vmatprep.subr.mxu0 %v269
    %2176 = vmatpush1.msra.mxu0 %v268
    %2177 = vmatprep.subr.mxu0 %v273
    %2178 = vmatpush1.msra.mxu0 %v272
    %2179 = vmatprep.subr.mxu0 %v277
    %2180 = vmatpush1.msra.mxu0 %v276
    %2181 = vmatprep.subr.mxu0 %v281
    %2182 = vmatpush1.msra.mxu0 %v280
    %2183 = vmatprep.subr.mxu0 %v285
    %2184 = vmatpush1.msra.mxu0 %v284
    %2185 = vmatprep.subr.mxu0 %v289
    %2186 = vmatpush1.msra.mxu0 %v288
    %2187 = vmatprep.subr.mxu0 %v293
    %2188 = vmatpush1.msra.mxu0 %v292
    %2189 = vmatprep.subr.mxu0 %v297
    %2190 = vmatpush1.msra.mxu0 %v296
    %2191 = vmatprep.subr.mxu0 %v301
    %2192 = vmatpush1.msra.mxu0 %v300
    %2193 = vmatprep.subr.mxu0 %v305
    %2194 = vmatpush1.msra.mxu0 %v304
    %2195 = vmatprep.subr.mxu0 %v309
    %2196 = vmatpush1.msra.mxu0 %v308
    %2197 = vmatprep.mubr.f32.mxu0 %v2132
    %2198 = vmatmul.mubr.f32.gmra.mrb[0].mxu0 %v2131
    %v2199 = vpop.f32.mrb[0].mxu0
    %v2200 = vadd.f32 %v333, %v2199
    %v2201 = vpop.f32.mrb[0].mxu0
    %v2202 = vadd.f32 %v337, %v2201
    %2203 = vdwg.mxu0
    %2204 = vmatprep.subr.mxu0 %v187
    %2205 = vmatpush1.msra.mxu0 %v186
    %2206 = vmatprep.subr.mxu0 %v191
    %2207 = vmatpush1.msra.mxu0 %v190
    %2208 = vmatprep.subr.mxu0 %v195
    %2209 = vmatpush1.msra.mxu0 %v194
    %2210 = vmatprep.subr.mxu0 %v199
    %2211 = vmatpush1.msra.mxu0 %v198
    %2212 = vmatprep.subr.mxu0 %v203
    %2213 = vmatpush1.msra.mxu0 %v202
    %2214 = vmatprep.subr.mxu0 %v207
    %2215 = vmatpush1.msra.mxu0 %v206
    %2216 = vmatprep.subr.mxu0 %v211
    %2217 = vmatpush1.msra.mxu0 %v210
    %2218 = vmatprep.subr.mxu0 %v215
    %2219 = vmatpush1.msra.mxu0 %v214
    %2220 = vmatprep.subr.mxu0 %v219
    %2221 = vmatpush1.msra.mxu0 %v218
    %2222 = vmatprep.subr.mxu0 %v223
    %2223 = vmatpush1.msra.mxu0 %v222
    %2224 = vmatprep.subr.mxu0 %v227
    %2225 = vmatpush1.msra.mxu0 %v226
    %2226 = vmatprep.subr.mxu0 %v231
    %2227 = vmatpush1.msra.mxu0 %v230
    %2228 = vmatprep.subr.mxu0 %v235
    %2229 = vmatpush1.msra.mxu0 %v234
    %2230 = vmatprep.subr.mxu0 %v239
    %2231 = vmatpush1.msra.mxu0 %v238
    %2232 = vmatprep.subr.mxu0 %v243
    %2233 = vmatpush1.msra.mxu0 %v242
    %2234 = vmatprep.subr.mxu0 %v247
    %2235 = vmatpush1.msra.mxu0 %v246
    %2236 = vmatprep.subr.mxu0 %v251
    %2237 = vmatpush1.msra.mxu0 %v250
    %2238 = vmatprep.subr.mxu0 %v255
    %2239 = vmatpush1.msra.mxu0 %v254
    %2240 = vmatprep.subr.mxu0 %v259
    %2241 = vmatpush1.msra.mxu0 %v258
    %2242 = vmatprep.subr.mxu0 %v263
    %2243 = vmatpush1.msra.mxu0 %v262
    %2244 = vmatprep.subr.mxu0 %v267
    %2245 = vmatpush1.msra.mxu0 %v266
    %2246 = vmatprep.subr.mxu0 %v271
    %2247 = vmatpush1.msra.mxu0 %v270
    %2248 = vmatprep.subr.mxu0 %v275
    %2249 = vmatpush1.msra.mxu0 %v274
    %2250 = vmatprep.subr.mxu0 %v279
    %2251 = vmatpush1.msra.mxu0 %v278
    %2252 = vmatprep.subr.mxu0 %v283
    %2253 = vmatpush1.msra.mxu0 %v282
    %2254 = vmatprep.subr.mxu0 %v287
    %2255 = vmatpush1.msra.mxu0 %v286
    %2256 = vmatprep.subr.mxu0 %v291
    %2257 = vmatpush1.msra.mxu0 %v290
    %2258 = vmatprep.subr.mxu0 %v295
    %2259 = vmatpush1.msra.mxu0 %v294
    %2260 = vmatprep.subr.mxu0 %v299
    %2261 = vmatpush1.msra.mxu0 %v298
    %2262 = vmatprep.subr.mxu0 %v303
    %2263 = vmatpush1.msra.mxu0 %v302
    %2264 = vmatprep.subr.mxu0 %v307
    %2265 = vmatpush1.msra.mxu0 %v306
    %2266 = vmatprep.subr.mxu0 %v311
    %2267 = vmatpush1.msra.mxu0 %v310
    %2268 = vmatprep.mubr.f32.mxu0 %v2132
    %2269 = vmatmul.mubr.f32.gmra.mrb[0].mxu0 %v2131
    %v2270 = vpop.f32.mrb[0].mxu0
    %v2271 = vadd.f32 %v341, %v2270
    %v2272 = vpop.f32.mrb[0].mxu0
    %v2273 = vadd.f32 %v345, %v2272
    %2274 = vdwg.mxu0
    %v2275 = vxor.u32 %v2200, 2147483648
    %v2276 = vmul.f32 %v2275, 1.442695
    %v2277 = vpow.pop %v2276
    %v2278 = vadd.f32 %v2277, 1.0
    %v2279 = vrcp.pop %v2278
    %v2280 = vmul.f32 1.0, %v2279
    %v2281 = vxor.u32 %v2202, 2147483648
    %v2282 = vmul.f32 %v2281, 1.442695
    %v2283 = vpow.pop %v2282
    %v2284 = vadd.f32 %v2283, 1.0
    %v2285 = vrcp.pop %v2284
    %v2286 = vmul.f32 1.0, %v2285
    %v2287 = vtanh.pop %v2271
    %v2288 = vxor.u32 %v2273, 2147483648
    %v2289 = vmul.f32 %v2288, 1.442695
    %v2290 = vpow.pop %v2289
    %v2291 = vadd.f32 %v2290, 1.0
    %v2292 = vrcp.pop %v2291
    %v2293 = vmul.f32 1.0, %v2292
    %v2294 = vmul.f32 %v2286, %v2122
    %v2295 = vmul.f32 %v2280, %v2287
    %v2296 = vadd.f32 %v2294, %v2295
    %v2297 = vtanh.pop %v2296
    %v2298 = vmul.f32 %v2293, %v2297
    %2299 = vmatprep.subr.mxu0 0.0
    %2300 = vmatpush1.msra.mxu0 %v312
    %2301 = vmatprep.subr.mxu0 0.0
    %2302 = vmatpush1.msra.mxu0 %v313
    %2303 = vmatprep.subr.mxu0 0.0
    %2304 = vmatpush1.msra.mxu0 %v314
    %2305 = vmatprep.subr.mxu0 0.0
    %2306 = vmatpush1.msra.mxu0 %v315
    %2307 = vmatprep.subr.mxu0 0.0
    %2308 = vmatpush1.msra.mxu0 %v316
    %2309 = vmatprep.subr.mxu0 0.0
    %2310 = vmatpush1.msra.mxu0 %v317
    %2311 = vmatprep.subr.mxu0 0.0
    %2312 = vmatpush1.msra.mxu0 %v318
    %2313 = vmatprep.subr.mxu0 0.0
    %2314 = vmatpush1.msra.mxu0 %v319
    %2315 = vmatprep.subr.mxu0 0.0
    %2316 = vmatpush1.msra.mxu0 %v320
    %2317 = vmatprep.subr.mxu0 0.0
    %2318 = vmatpush1.msra.mxu0 %v321
    %2319 = vmatprep.subr.mxu0 0.0
    %2320 = vmatpush1.msra.mxu0 %v322
    %2321 = vmatprep.subr.mxu0 0.0
    %2322 = vmatpush1.msra.mxu0 %v323
    %2323 = vmatprep.subr.mxu0 0.0
    %2324 = vmatpush1.msra.mxu0 %v324
    %2325 = vmatprep.subr.mxu0 0.0
    %2326 = vmatpush1.msra.mxu0 %v325
    %2327 = vmatprep.subr.mxu0 0.0
    %2328 = vmatpush1.msra.mxu0 %v326
    %2329 = vmatprep.subr.mxu0 0.0
    %2330 = vmatpush1.msra.mxu0 %v327
    %2331 = vmatprep.subr.mxu0 0.0
    %2332 = vmatpush1.msra.mxu0 0.0
    %2333 = vmatprep.subr.mxu0 0.0
    %2334 = vmatpush1.msra.mxu0 0.0
    %2335 = vmatprep.subr.mxu0 0.0
    %2336 = vmatpush1.msra.mxu0 0.0
    %2337 = vmatprep.subr.mxu0 0.0
    %2338 = vmatpush1.msra.mxu0 0.0
    %2339 = vmatprep.subr.mxu0 0.0
    %2340 = vmatpush1.msra.mxu0 0.0
    %2341 = vmatprep.subr.mxu0 0.0
    %2342 = vmatpush1.msra.mxu0 0.0
    %2343 = vmatprep.subr.mxu0 0.0
    %2344 = vmatpush1.msra.mxu0 0.0
    %2345 = vmatprep.subr.mxu0 0.0
    %2346 = vmatpush1.msra.mxu0 0.0
    %2347 = vmatprep.subr.mxu0 0.0
    %2348 = vmatpush1.msra.mxu0 0.0
    %2349 = vmatprep.subr.mxu0 0.0
    %2350 = vmatpush1.msra.mxu0 0.0
    %2351 = vmatprep.subr.mxu0 0.0
    %2352 = vmatpush1.msra.mxu0 0.0
    %2353 = vmatprep.subr.mxu0 0.0
    %2354 = vmatpush1.msra.mxu0 0.0
    %2355 = vmatprep.subr.mxu0 0.0
    %2356 = vmatpush1.msra.mxu0 0.0
    %2357 = vmatprep.subr.mxu0 0.0
    %2358 = vmatpush1.msra.mxu0 0.0
    %2359 = vmatprep.subr.mxu0 0.0
    %2360 = vmatpush1.msra.mxu0 0.0
    %2361 = vmatprep.subr.mxu0 0.0
    %2362 = vmatpush1.msra.mxu0 0.0
    %2363 = vmatprep.mubr.f32.mxu0 0.0
    %2364 = vmatmul.mubr.f32.gmra.mrb[0].mxu0 %v2298
    %v2365 = vpop.f32.mrb[0].mxu0
    %v2366 = vadd.f32 %v355, %v2365
    %v2367 = vpop.f32.mrb[0].mxu0
    %2368 = vdwg.mxu0
    %s2369 = scalar_lea.vmem [#allocation17], 8
    %2370 = vst [vmem:[%s2369] sm:$0xff] %v2366
    %2371 = vmax.xlane.f32.xlu0 %v2366
    %v2372 = vpop.xlane.xlu0 %2371
    %vm2373 = vcmp.eq.f32.partialorder %v2366, %v2372
    %v2374 = vsel %vm2373, %v2127, 128
    %v2375 = vand.u32 %v2374, 65535
    %v2376 = vshra.s32 %v2374, 16
    %v2377 = vcvt.s32.f32 %v2375
    %v2378 = vcvt.s32.f32 %v2376
    %2379 = vmin.xlane.f32.xlu0 %v2378
    %v2380 = vpop.xlane.xlu0 %2379
    %vm2381 = vcmp.eq.f32.partialorder %v2378, %v2380
    %v2382 = vsel %vm2381, %v2377, inf
    %2383 = vmin.xlane.f32.xlu0 %v2382
    %v2384 = vpop.xlane.xlu0 %2383
    %v2385 = vcvt.f32.s32 %v2384
    %v2386 = vcvt.f32.s32 %v2380
    %v2387 = vshll.u32 %v2386, 16
    %v2388 = vadd.s32 %v2387, %v2385
    %vm2389 = vcmp.eq.s32.totalorder %v2127, %v2388
    %v2390 = vsel %vm2389, 1, 0
    %v2391 = vcvt.s32.f32 %v2390
    %s2392 = sld [smem:[#allocation5]]
    %p2393 = scmp.eq.s32.totalorder %s2392, 1
    %s2394 = scalar_lea.vmem [#allocation9], 8
    %v2395 = vld [vmem:[%s2394] sm:$0xff]
    %s2396 = scalar_select %p2393, 1, 0
    %v2397 = vstv %s2396
    %vm2398 = vcmp.eq.s32.totalorder %v2397, 1
    %v2399 = vsel %vm2398, %v2395, %v2391
    %2400 = vst [vmem:[#allocation3] sm:$0xff] %v2399
    %2401 = vst [vmem:[#allocation3 + $0x8] sm:$0xff] %v2298
    %v2402 = vld [vmem:[#allocation3] sm:$0xff]
    %v2403 = vld [vmem:[#allocation3 + $0x8] sm:$0xff]
    %2404 = vmatprep.subr.mxu0 %v185
    %2405 = vmatpush1.msra.mxu0 %v184
    %2406 = vmatprep.subr.mxu0 %v189
    %2407 = vmatpush1.msra.mxu0 %v188
    %2408 = vmatprep.subr.mxu0 %v193
    %2409 = vmatpush1.msra.mxu0 %v192
    %2410 = vmatprep.subr.mxu0 %v197
    %2411 = vmatpush1.msra.mxu0 %v196
    %2412 = vmatprep.subr.mxu0 %v201
    %2413 = vmatpush1.msra.mxu0 %v200
    %2414 = vmatprep.subr.mxu0 %v205
    %2415 = vmatpush1.msra.mxu0 %v204
    %2416 = vmatprep.subr.mxu0 %v209
    %2417 = vmatpush1.msra.mxu0 %v208
    %2418 = vmatprep.subr.mxu0 %v213
    %2419 = vmatpush1.msra.mxu0 %v212
    %2420 = vmatprep.subr.mxu0 %v217
    %2421 = vmatpush1.msra.mxu0 %v216
    %2422 = vmatprep.subr.mxu0 %v221
    %2423 = vmatpush1.msra.mxu0 %v220
    %2424 = vmatprep.subr.mxu0 %v225
    %2425 = vmatpush1.msra.mxu0 %v224
    %2426 = vmatprep.subr.mxu0 %v229
    %2427 = vmatpush1.msra.mxu0 %v228
    %2428 = vmatprep.subr.mxu0 %v233
    %2429 = vmatpush1.msra.mxu0 %v232
    %2430 = vmatprep.subr.mxu0 %v237
    %2431 = vmatpush1.msra.mxu0 %v236
    %2432 = vmatprep.subr.mxu0 %v241
    %2433 = vmatpush1.msra.mxu0 %v240
    %2434 = vmatprep.subr.mxu0 %v245
    %2435 = vmatpush1.msra.mxu0 %v244
    %2436 = vmatprep.subr.mxu0 %v249
    %2437 = vmatpush1.msra.mxu0 %v248
    %2438 = vmatprep.subr.mxu0 %v253
    %2439 = vmatpush1.msra.mxu0 %v252
    %2440 = vmatprep.subr.mxu0 %v257
    %2441 = vmatpush1.msra.mxu0 %v256
    %2442 = vmatprep.subr.mxu0 %v261
    %2443 = vmatpush1.msra.mxu0 %v260
    %2444 = vmatprep.subr.mxu0 %v265
    %2445 = vmatpush1.msra.mxu0 %v264
    %2446 = vmatprep.subr.mxu0 %v269
    %2447 = vmatpush1.msra.mxu0 %v268
    %2448 = vmatprep.subr.mxu0 %v273
    %2449 = vmatpush1.msra.mxu0 %v272
    %2450 = vmatprep.subr.mxu0 %v277
    %2451 = vmatpush1.msra.mxu0 %v276
    %2452 = vmatprep.subr.mxu0 %v281
    %2453 = vmatpush1.msra.mxu0 %v280
    %2454 = vmatprep.subr.mxu0 %v285
    %2455 = vmatpush1.msra.mxu0 %v284
    %2456 = vmatprep.subr.mxu0 %v289
    %2457 = vmatpush1.msra.mxu0 %v288
    %2458 = vmatprep.subr.mxu0 %v293
    %2459 = vmatpush1.msra.mxu0 %v292
    %2460 = vmatprep.subr.mxu0 %v297
    %2461 = vmatpush1.msra.mxu0 %v296
    %2462 = vmatprep.subr.mxu0 %v301
    %2463 = vmatpush1.msra.mxu0 %v300
    %2464 = vmatprep.subr.mxu0 %v305
    %2465 = vmatpush1.msra.mxu0 %v304
    %2466 = vmatprep.subr.mxu0 %v309
    %2467 = vmatpush1.msra.mxu0 %v308
    %2468 = vmatprep.mubr.f32.mxu0 %v2403
    %2469 = vmatmul.mubr.f32.gmra.mrb[0].mxu0 %v2402
    %v2470 = vpop.f32.mrb[0].mxu0
    %v2471 = vadd.f32 %v333, %v2470
    %v2472 = vpop.f32.mrb[0].mxu0
    %v2473 = vadd.f32 %v337, %v2472
    %2474 = vdwg.mxu0
    %2475 = vmatprep.subr.mxu0 %v187
    %2476 = vmatpush1.msra.mxu0 %v186
    %2477 = vmatprep.subr.mxu0 %v191
    %2478 = vmatpush1.msra.mxu0 %v190
    %2479 = vmatprep.subr.mxu0 %v195
    %2480 = vmatpush1.msra.mxu0 %v194
    %2481 = vmatprep.subr.mxu0 %v199
    %2482 = vmatpush1.msra.mxu0 %v198
    %2483 = vmatprep.subr.mxu0 %v203
    %2484 = vmatpush1.msra.mxu0 %v202
    %2485 = vmatprep.subr.mxu0 %v207
    %2486 = vmatpush1.msra.mxu0 %v206
    %2487 = vmatprep.subr.mxu0 %v211
    %2488 = vmatpush1.msra.mxu0 %v210
    %2489 = vmatprep.subr.mxu0 %v215
    %2490 = vmatpush1.msra.mxu0 %v214
    %2491 = vmatprep.subr.mxu0 %v219
    %2492 = vmatpush1.msra.mxu0 %v218
    %2493 = vmatprep.subr.mxu0 %v223
    %2494 = vmatpush1.msra.mxu0 %v222
    %2495 = vmatprep.subr.mxu0 %v227
    %2496 = vmatpush1.msra.mxu0 %v226
    %2497 = vmatprep.subr.mxu0 %v231
    %2498 = vmatpush1.msra.mxu0 %v230
    %2499 = vmatprep.subr.mxu0 %v235
    %2500 = vmatpush1.msra.mxu0 %v234
    %2501 = vmatprep.subr.mxu0 %v239
    %2502 = vmatpush1.msra.mxu0 %v238
    %2503 = vmatprep.subr.mxu0 %v243
    %2504 = vmatpush1.msra.mxu0 %v242
    %2505 = vmatprep.subr.mxu0 %v247
    %2506 = vmatpush1.msra.mxu0 %v246
    %2507 = vmatprep.subr.mxu0 %v251
    %2508 = vmatpush1.msra.mxu0 %v250
    %2509 = vmatprep.subr.mxu0 %v255
    %2510 = vmatpush1.msra.mxu0 %v254
    %2511 = vmatprep.subr.mxu0 %v259
    %2512 = vmatpush1.msra.mxu0 %v258
    %2513 = vmatprep.subr.mxu0 %v263
    %2514 = vmatpush1.msra.mxu0 %v262
    %2515 = vmatprep.subr.mxu0 %v267
    %2516 = vmatpush1.msra.mxu0 %v266
    %2517 = vmatprep.subr.mxu0 %v271
    %2518 = vmatpush1.msra.mxu0 %v270
    %2519 = vmatprep.subr.mxu0 %v275
    %2520 = vmatpush1.msra.mxu0 %v274
    %2521 = vmatprep.subr.mxu0 %v279
    %2522 = vmatpush1.msra.mxu0 %v278
    %2523 = vmatprep.subr.mxu0 %v283
    %2524 = vmatpush1.msra.mxu0 %v282
    %2525 = vmatprep.subr.mxu0 %v287
    %2526 = vmatpush1.msra.mxu0 %v286
    %2527 = vmatprep.subr.mxu0 %v291
    %2528 = vmatpush1.msra.mxu0 %v290
    %2529 = vmatprep.subr.mxu0 %v295
    %2530 = vmatpush1.msra.mxu0 %v294
    %2531 = vmatprep.subr.mxu0 %v299
    %2532 = vmatpush1.msra.mxu0 %v298
    %2533 = vmatprep.subr.mxu0 %v303
    %2534 = vmatpush1.msra.mxu0 %v302
    %2535 = vmatprep.subr.mxu0 %v307
    %2536 = vmatpush1.msra.mxu0 %v306
    %2537 = vmatprep.subr.mxu0 %v311
    %2538 = vmatpush1.msra.mxu0 %v310
    %2539 = vmatprep.mubr.f32.mxu0 %v2403
    %2540 = vmatmul.mubr.f32.gmra.mrb[0].mxu0 %v2402
    %v2541 = vpop.f32.mrb[0].mxu0
    %v2542 = vadd.f32 %v341, %v2541
    %v2543 = vpop.f32.mrb[0].mxu0
    %v2544 = vadd.f32 %v345, %v2543
    %2545 = vdwg.mxu0
    %v2546 = vxor.u32 %v2471, 2147483648
    %v2547 = vmul.f32 %v2546, 1.442695
    %v2548 = vpow.pop %v2547
    %v2549 = vadd.f32 %v2548, 1.0
    %v2550 = vrcp.pop %v2549
    %v2551 = vmul.f32 1.0, %v2550
    %v2552 = vxor.u32 %v2473, 2147483648
    %v2553 = vmul.f32 %v2552, 1.442695
    %v2554 = vpow.pop %v2553
    %v2555 = vadd.f32 %v2554, 1.0
    %v2556 = vrcp.pop %v2555
    %v2557 = vmul.f32 1.0, %v2556
    %v2558 = vtanh.pop %v2542
    %v2559 = vxor.u32 %v2544, 2147483648
    %v2560 = vmul.f32 %v2559, 1.442695
    %v2561 = vpow.pop %v2560
    %v2562 = vadd.f32 %v2561, 1.0
    %v2563 = vrcp.pop %v2562
    %v2564 = vmul.f32 1.0, %v2563
    %v2565 = vmul.f32 %v2557, %v2296
    %v2566 = vmul.f32 %v2551, %v2558
    %v2567 = vadd.f32 %v2565, %v2566
    %v2568 = vtanh.pop %v2567
    %v2569 = vmul.f32 %v2564, %v2568
    %2570 = vmatprep.subr.mxu0 0.0
    %2571 = vmatpush1.msra.mxu0 %v312
    %2572 = vmatprep.subr.mxu0 0.0
    %2573 = vmatpush1.msra.mxu0 %v313
    %2574 = vmatprep.subr.mxu0 0.0
    %2575 = vmatpush1.msra.mxu0 %v314
    %2576 = vmatprep.subr.mxu0 0.0
    %2577 = vmatpush1.msra.mxu0 %v315
    %2578 = vmatprep.subr.mxu0 0.0
    %2579 = vmatpush1.msra.mxu0 %v316
    %2580 = vmatprep.subr.mxu0 0.0
    %2581 = vmatpush1.msra.mxu0 %v317
    %2582 = vmatprep.subr.mxu0 0.0
    %2583 = vmatpush1.msra.mxu0 %v318
    %2584 = vmatprep.subr.mxu0 0.0
    %2585 = vmatpush1.msra.mxu0 %v319
    %2586 = vmatprep.subr.mxu0 0.0
    %2587 = vmatpush1.msra.mxu0 %v320
    %2588 = vmatprep.subr.mxu0 0.0
    %2589 = vmatpush1.msra.mxu0 %v321
    %2590 = vmatprep.subr.mxu0 0.0
    %2591 = vmatpush1.msra.mxu0 %v322
    %2592 = vmatprep.subr.mxu0 0.0
    %2593 = vmatpush1.msra.mxu0 %v323
    %2594 = vmatprep.subr.mxu0 0.0
    %2595 = vmatpush1.msra.mxu0 %v324
    %2596 = vmatprep.subr.mxu0 0.0
    %2597 = vmatpush1.msra.mxu0 %v325
    %2598 = vmatprep.subr.mxu0 0.0
    %2599 = vmatpush1.msra.mxu0 %v326
    %2600 = vmatprep.subr.mxu0 0.0
    %2601 = vmatpush1.msra.mxu0 %v327
    %2602 = vmatprep.subr.mxu0 0.0
    %2603 = vmatpush1.msra.mxu0 0.0
    %2604 = vmatprep.subr.mxu0 0.0
    %2605 = vmatpush1.msra.mxu0 0.0
    %2606 = vmatprep.subr.mxu0 0.0
    %2607 = vmatpush1.msra.mxu0 0.0
    %2608 = vmatprep.subr.mxu0 0.0
    %2609 = vmatpush1.msra.mxu0 0.0
    %2610 = vmatprep.subr.mxu0 0.0
    %2611 = vmatpush1.msra.mxu0 0.0
    %2612 = vmatprep.subr.mxu0 0.0
    %2613 = vmatpush1.msra.mxu0 0.0
    %2614 = vmatprep.subr.mxu0 0.0
    %2615 = vmatpush1.msra.mxu0 0.0
    %2616 = vmatprep.subr.mxu0 0.0
    %2617 = vmatpush1.msra.mxu0 0.0
    %2618 = vmatprep.subr.mxu0 0.0
    %2619 = vmatpush1.msra.mxu0 0.0
    %2620 = vmatprep.subr.mxu0 0.0
    %2621 = vmatpush1.msra.mxu0 0.0
    %2622 = vmatprep.subr.mxu0 0.0
    %2623 = vmatpush1.msra.mxu0 0.0
    %2624 = vmatprep.subr.mxu0 0.0
    %2625 = vmatpush1.msra.mxu0 0.0
    %2626 = vmatprep.subr.mxu0 0.0
    %2627 = vmatpush1.msra.mxu0 0.0
    %2628 = vmatprep.subr.mxu0 0.0
    %2629 = vmatpush1.msra.mxu0 0.0
    %2630 = vmatprep.subr.mxu0 0.0
    %2631 = vmatpush1.msra.mxu0 0.0
    %2632 = vmatprep.subr.mxu0 0.0
    %2633 = vmatpush1.msra.mxu0 0.0
    %2634 = vmatprep.mubr.f32.mxu0 0.0
    %2635 = vmatmul.mubr.f32.gmra.mrb[0].mxu0 %v2569
    %v2636 = vpop.f32.mrb[0].mxu0
    %v2637 = vadd.f32 %v355, %v2636
    %v2638 = vpop.f32.mrb[0].mxu0
    %2639 = vdwg.mxu0
    %s2640 = scalar_lea.vmem [#allocation17], 16
    %2641 = vst [vmem:[%s2640] sm:$0xff] %v2637
    %2642 = vmax.xlane.f32.xlu0 %v2637
    %v2643 = vpop.xlane.xlu0 %2642
    %vm2644 = vcmp.eq.f32.partialorder %v2637, %v2643
    %v2645 = vsel %vm2644, %v2127, 128
    %v2646 = vand.u32 %v2645, 65535
    %v2647 = vshra.s32 %v2645, 16
    %v2648 = vcvt.s32.f32 %v2646
    %v2649 = vcvt.s32.f32 %v2647
    %2650 = vmin.xlane.f32.xlu0 %v2649
    %v2651 = vpop.xlane.xlu0 %2650
    %vm2652 = vcmp.eq.f32.partialorder %v2649, %v2651
    %v2653 = vsel %vm2652, %v2648, inf
    %2654 = vmin.xlane.f32.xlu0 %v2653
    %v2655 = vpop.xlane.xlu0 %2654
    %v2656 = vcvt.f32.s32 %v2655
    %v2657 = vcvt.f32.s32 %v2651
    %v2658 = vshll.u32 %v2657, 16
    %v2659 = vadd.s32 %v2658, %v2656
    %vm2660 = vcmp.eq.s32.totalorder %v2127, %v2659
    %v2661 = vsel %vm2660, 1, 0
    %v2662 = vcvt.s32.f32 %v2661
    %s2663 = sld [smem:[#allocation5 + $0x1]]
    %p2664 = scmp.eq.s32.totalorder %s2663, 1
    %s2665 = scalar_lea.vmem [#allocation9], 16
    %v2666 = vld [vmem:[%s2665] sm:$0xff]
    %s2667 = scalar_select %p2664, 1, 0
    %v2668 = vstv %s2667
    %vm2669 = vcmp.eq.s32.totalorder %v2668, 1
    %v2670 = vsel %vm2669, %v2666, %v2662
    %2671 = vst [vmem:[#allocation3] sm:$0xff] %v2670
    %2672 = vst [vmem:[#allocation3 + $0x8] sm:$0xff] %v2569
    %v2673 = vld [vmem:[#allocation3] sm:$0xff]
    %v2674 = vld [vmem:[#allocation3 + $0x8] sm:$0xff]
    %2675 = vmatprep.subr.mxu0 %v185
    %2676 = vmatpush1.msra.mxu0 %v184
    %2677 = vmatprep.subr.mxu0 %v189
    %2678 = vmatpush1.msra.mxu0 %v188
    %2679 = vmatprep.subr.mxu0 %v193
    %2680 = vmatpush1.msra.mxu0 %v192
    %2681 = vmatprep.subr.mxu0 %v197
    %2682 = vmatpush1.msra.mxu0 %v196
    %2683 = vmatprep.subr.mxu0 %v201
    %2684 = vmatpush1.msra.mxu0 %v200
    %2685 = vmatprep.subr.mxu0 %v205
    %2686 = vmatpush1.msra.mxu0 %v204
    %2687 = vmatprep.subr.mxu0 %v209
    %2688 = vmatpush1.msra.mxu0 %v208
    %2689 = vmatprep.subr.mxu0 %v213
    %2690 = vmatpush1.msra.mxu0 %v212
    %2691 = vmatprep.subr.mxu0 %v217
    %2692 = vmatpush1.msra.mxu0 %v216
    %2693 = vmatprep.subr.mxu0 %v221
    %2694 = vmatpush1.msra.mxu0 %v220
    %2695 = vmatprep.subr.mxu0 %v225
    %2696 = vmatpush1.msra.mxu0 %v224
    %2697 = vmatprep.subr.mxu0 %v229
    %2698 = vmatpush1.msra.mxu0 %v228
    %2699 = vmatprep.subr.mxu0 %v233
    %2700 = vmatpush1.msra.mxu0 %v232
    %2701 = vmatprep.subr.mxu0 %v237
    %2702 = vmatpush1.msra.mxu0 %v236
    %2703 = vmatprep.subr.mxu0 %v241
    %2704 = vmatpush1.msra.mxu0 %v240
    %2705 = vmatprep.subr.mxu0 %v245
    %2706 = vmatpush1.msra.mxu0 %v244
    %2707 = vmatprep.subr.mxu0 %v249
    %2708 = vmatpush1.msra.mxu0 %v248
    %2709 = vmatprep.subr.mxu0 %v253
    %2710 = vmatpush1.msra.mxu0 %v252
    %2711 = vmatprep.subr.mxu0 %v257
    %2712 = vmatpush1.msra.mxu0 %v256
    %2713 = vmatprep.subr.mxu0 %v261
    %2714 = vmatpush1.msra.mxu0 %v260
    %2715 = vmatprep.subr.mxu0 %v265
    %2716 = vmatpush1.msra.mxu0 %v264
    %2717 = vmatprep.subr.mxu0 %v269
    %2718 = vmatpush1.msra.mxu0 %v268
    %2719 = vmatprep.subr.mxu0 %v273
    %2720 = vmatpush1.msra.mxu0 %v272
    %2721 = vmatprep.subr.mxu0 %v277
    %2722 = vmatpush1.msra.mxu0 %v276
    %2723 = vmatprep.subr.mxu0 %v281
    %2724 = vmatpush1.msra.mxu0 %v280
    %2725 = vmatprep.subr.mxu0 %v285
    %2726 = vmatpush1.msra.mxu0 %v284
    %2727 = vmatprep.subr.mxu0 %v289
    %2728 = vmatpush1.msra.mxu0 %v288
    %2729 = vmatprep.subr.mxu0 %v293
    %2730 = vmatpush1.msra.mxu0 %v292
    %2731 = vmatprep.subr.mxu0 %v297
    %2732 = vmatpush1.msra.mxu0 %v296
    %2733 = vmatprep.subr.mxu0 %v301
    %2734 = vmatpush1.msra.mxu0 %v300
    %2735 = vmatprep.subr.mxu0 %v305
    %2736 = vmatpush1.msra.mxu0 %v304
    %2737 = vmatprep.subr.mxu0 %v309
    %2738 = vmatpush1.msra.mxu0 %v308
    %2739 = vmatprep.mubr.f32.mxu0 %v2674
    %2740 = vmatmul.mubr.f32.gmra.mrb[0].mxu0 %v2673
    %v2741 = vpop.f32.mrb[0].mxu0
    %v2742 = vadd.f32 %v333, %v2741
    %v2743 = vpop.f32.mrb[0].mxu0
    %v2744 = vadd.f32 %v337, %v2743
    %2745 = vdwg.mxu0
    %2746 = vmatprep.subr.mxu0 %v187
    %2747 = vmatpush1.msra.mxu0 %v186
    %2748 = vmatprep.subr.mxu0 %v191
    %2749 = vmatpush1.msra.mxu0 %v190
    %2750 = vmatprep.subr.mxu0 %v195
    %2751 = vmatpush1.msra.mxu0 %v194
    %2752 = vmatprep.subr.mxu0 %v199
    %2753 = vmatpush1.msra.mxu0 %v198
    %2754 = vmatprep.subr.mxu0 %v203
    %2755 = vmatpush1.msra.mxu0 %v202
    %2756 = vmatprep.subr.mxu0 %v207
    %2757 = vmatpush1.msra.mxu0 %v206
    %2758 = vmatprep.subr.mxu0 %v211
    %2759 = vmatpush1.msra.mxu0 %v210
    %2760 = vmatprep.subr.mxu0 %v215
    %2761 = vmatpush1.msra.mxu0 %v214
    %2762 = vmatprep.subr.mxu0 %v219
    %2763 = vmatpush1.msra.mxu0 %v218
    %2764 = vmatprep.subr.mxu0 %v223
    %2765 = vmatpush1.msra.mxu0 %v222
    %2766 = vmatprep.subr.mxu0 %v227
    %2767 = vmatpush1.msra.mxu0 %v226
    %2768 = vmatprep.subr.mxu0 %v231
    %2769 = vmatpush1.msra.mxu0 %v230
    %2770 = vmatprep.subr.mxu0 %v235
    %2771 = vmatpush1.msra.mxu0 %v234
    %2772 = vmatprep.subr.mxu0 %v239
    %2773 = vmatpush1.msra.mxu0 %v238
    %2774 = vmatprep.subr.mxu0 %v243
    %2775 = vmatpush1.msra.mxu0 %v242
    %2776 = vmatprep.subr.mxu0 %v247
    %2777 = vmatpush1.msra.mxu0 %v246
    %2778 = vmatprep.subr.mxu0 %v251
    %2779 = vmatpush1.msra.mxu0 %v250
    %2780 = vmatprep.subr.mxu0 %v255
    %2781 = vmatpush1.msra.mxu0 %v254
    %2782 = vmatprep.subr.mxu0 %v259
    %2783 = vmatpush1.msra.mxu0 %v258
    %2784 = vmatprep.subr.mxu0 %v263
    %2785 = vmatpush1.msra.mxu0 %v262
    %2786 = vmatprep.subr.mxu0 %v267
    %2787 = vmatpush1.msra.mxu0 %v266
    %2788 = vmatprep.subr.mxu0 %v271
    %2789 = vmatpush1.msra.mxu0 %v270
    %2790 = vmatprep.subr.mxu0 %v275
    %2791 = vmatpush1.msra.mxu0 %v274
    %2792 = vmatprep.subr.mxu0 %v279
    %2793 = vmatpush1.msra.mxu0 %v278
    %2794 = vmatprep.subr.mxu0 %v283
    %2795 = vmatpush1.msra.mxu0 %v282
    %2796 = vmatprep.subr.mxu0 %v287
    %2797 = vmatpush1.msra.mxu0 %v286
    %2798 = vmatprep.subr.mxu0 %v291
    %2799 = vmatpush1.msra.mxu0 %v290
    %2800 = vmatprep.subr.mxu0 %v295
    %2801 = vmatpush1.msra.mxu0 %v294
    %2802 = vmatprep.subr.mxu0 %v299
    %2803 = vmatpush1.msra.mxu0 %v298
    %2804 = vmatprep.subr.mxu0 %v303
    %2805 = vmatpush1.msra.mxu0 %v302
    %2806 = vmatprep.subr.mxu0 %v307
    %2807 = vmatpush1.msra.mxu0 %v306
    %2808 = vmatprep.subr.mxu0 %v311
    %2809 = vmatpush1.msra.mxu0 %v310
    %2810 = vmatprep.mubr.f32.mxu0 %v2674
    %2811 = vmatmul.mubr.f32.gmra.mrb[0].mxu0 %v2673
    %v2812 = vpop.f32.mrb[0].mxu0
    %v2813 = vadd.f32 %v341, %v2812
    %v2814 = vpop.f32.mrb[0].mxu0
    %v2815 = vadd.f32 %v345, %v2814
    %2816 = vdwg.mxu0
    %v2817 = vxor.u32 %v2742, 2147483648
    %v2818 = vmul.f32 %v2817, 1.442695
    %v2819 = vpow.pop %v2818
    %v2820 = vadd.f32 %v2819, 1.0
    %v2821 = vrcp.pop %v2820
    %v2822 = vmul.f32 1.0, %v2821
    %v2823 = vxor.u32 %v2744, 2147483648
    %v2824 = vmul.f32 %v2823, 1.442695
    %v2825 = vpow.pop %v2824
    %v2826 = vadd.f32 %v2825, 1.0
    %v2827 = vrcp.pop %v2826
    %v2828 = vmul.f32 1.0, %v2827
    %v2829 = vtanh.pop %v2813
    %v2830 = vxor.u32 %v2815, 2147483648
    %v2831 = vmul.f32 %v2830, 1.442695
    %v2832 = vpow.pop %v2831
    %v2833 = vadd.f32 %v2832, 1.0
    %v2834 = vrcp.pop %v2833
    %v2835 = vmul.f32 1.0, %v2834
    %v2836 = vmul.f32 %v2828, %v2567
    %v2837 = vmul.f32 %v2822, %v2829
    %v2838 = vadd.f32 %v2836, %v2837
    %v2839 = vtanh.pop %v2838
    %v2840 = vmul.f32 %v2835, %v2839
    %2841 = vmatprep.subr.mxu0 0.0
    %2842 = vmatpush1.msra.mxu0 %v312
    %2843 = vmatprep.subr.mxu0 0.0
    %2844 = vmatpush1.msra.mxu0 %v313
    %2845 = vmatprep.subr.mxu0 0.0
    %2846 = vmatpush1.msra.mxu0 %v314
    %2847 = vmatprep.subr.mxu0 0.0
    %2848 = vmatpush1.msra.mxu0 %v315
    %2849 = vmatprep.subr.mxu0 0.0
    %2850 = vmatpush1.msra.mxu0 %v316
    %2851 = vmatprep.subr.mxu0 0.0
    %2852 = vmatpush1.msra.mxu0 %v317
    %2853 = vmatprep.subr.mxu0 0.0
    %2854 = vmatpush1.msra.mxu0 %v318
    %2855 = vmatprep.subr.mxu0 0.0
    %2856 = vmatpush1.msra.mxu0 %v319
    %2857 = vmatprep.subr.mxu0 0.0
    %2858 = vmatpush1.msra.mxu0 %v320
    %2859 = vmatprep.subr.mxu0 0.0
    %2860 = vmatpush1.msra.mxu0 %v321
    %2861 = vmatprep.subr.mxu0 0.0
    %2862 = vmatpush1.msra.mxu0 %v322
    %2863 = vmatprep.subr.mxu0 0.0
    %2864 = vmatpush1.msra.mxu0 %v323
    %2865 = vmatprep.subr.mxu0 0.0
    %2866 = vmatpush1.msra.mxu0 %v324
    %2867 = vmatprep.subr.mxu0 0.0
    %2868 = vmatpush1.msra.mxu0 %v325
    %2869 = vmatprep.subr.mxu0 0.0
    %2870 = vmatpush1.msra.mxu0 %v326
    %2871 = vmatprep.subr.mxu0 0.0
    %2872 = vmatpush1.msra.mxu0 %v327
    %2873 = vmatprep.subr.mxu0 0.0
    %2874 = vmatpush1.msra.mxu0 0.0
    %2875 = vmatprep.subr.mxu0 0.0
    %2876 = vmatpush1.msra.mxu0 0.0
    %2877 = vmatprep.subr.mxu0 0.0
    %2878 = vmatpush1.msra.mxu0 0.0
    %2879 = vmatprep.subr.mxu0 0.0
    %2880 = vmatpush1.msra.mxu0 0.0
    %2881 = vmatprep.subr.mxu0 0.0
    %2882 = vmatpush1.msra.mxu0 0.0
    %2883 = vmatprep.subr.mxu0 0.0
    %2884 = vmatpush1.msra.mxu0 0.0
    %2885 = vmatprep.subr.mxu0 0.0
    %2886 = vmatpush1.msra.mxu0 0.0
    %2887 = vmatprep.subr.mxu0 0.0
    %2888 = vmatpush1.msra.mxu0 0.0
    %2889 = vmatprep.subr.mxu0 0.0
    %2890 = vmatpush1.msra.mxu0 0.0
    %2891 = vmatprep.subr.mxu0 0.0
    %2892 = vmatpush1.msra.mxu0 0.0
    %2893 = vmatprep.subr.mxu0 0.0
    %2894 = vmatpush1.msra.mxu0 0.0
    %2895 = vmatprep.subr.mxu0 0.0
    %2896 = vmatpush1.msra.mxu0 0.0
    %2897 = vmatprep.subr.mxu0 0.0
    %2898 = vmatpush1.msra.mxu0 0.0
    %2899 = vmatprep.subr.mxu0 0.0
    %2900 = vmatpush1.msra.mxu0 0.0
    %2901 = vmatprep.subr.mxu0 0.0
    %2902 = vmatpush1.msra.mxu0 0.0
    %2903 = vmatprep.subr.mxu0 0.0
    %2904 = vmatpush1.msra.mxu0 0.0
    %2905 = vmatprep.mubr.f32.mxu0 0.0
    %2906 = vmatmul.mubr.f32.gmra.mrb[0].mxu0 %v2840
    %v2907 = vpop.f32.mrb[0].mxu0
    %v2908 = vadd.f32 %v355, %v2907
    %v2909 = vpop.f32.mrb[0].mxu0
    %2910 = vdwg.mxu0
    %s2911 = scalar_lea.vmem [#allocation17], 24
    %2912 = vst [vmem:[%s2911] sm:$0xff] %v2908
    %2913 = vmax.xlane.f32.xlu0 %v2908
    %v2914 = vpop.xlane.xlu0 %2913
    %vm2915 = vcmp.eq.f32.partialorder %v2908, %v2914
    %v2916 = vsel %vm2915, %v2127, 128
    %v2917 = vand.u32 %v2916, 65535
    %v2918 = vshra.s32 %v2916, 16
    %v2919 = vcvt.s32.f32 %v2917
    %v2920 = vcvt.s32.f32 %v2918
    %2921 = vmin.xlane.f32.xlu0 %v2920
    %v2922 = vpop.xlane.xlu0 %2921
    %vm2923 = vcmp.eq.f32.partialorder %v2920, %v2922
    %v2924 = vsel %vm2923, %v2919, inf
    %2925 = vmin.xlane.f32.xlu0 %v2924
    %v2926 = vpop.xlane.xlu0 %2925
    %v2927 = vcvt.f32.s32 %v2926
    %v2928 = vcvt.f32.s32 %v2922
    %v2929 = vshll.u32 %v2928, 16
    %v2930 = vadd.s32 %v2929, %v2927
    %vm2931 = vcmp.eq.s32.totalorder %v2127, %v2930
    %v2932 = vsel %vm2931, 1, 0
    %v2933 = vcvt.s32.f32 %v2932
    %s2934 = sld [smem:[#allocation5 + $0x2]]
    %p2935 = scmp.eq.s32.totalorder %s2934, 1
    %s2936 = scalar_lea.vmem [#allocation9], 24
    %v2937 = vld [vmem:[%s2936] sm:$0xff]
    %s2938 = scalar_select %p2935, 1, 0
    %v2939 = vstv %s2938
    %vm2940 = vcmp.eq.s32.totalorder %v2939, 1
    %v2941 = vsel %vm2940, %v2937, %v2933
    %2942 = vst [vmem:[#allocation3] sm:$0xff] %v2941
    %2943 = vst [vmem:[#allocation3 + $0x8] sm:$0xff] %v2840
    %v2944 = vld [vmem:[#allocation3] sm:$0xff]
    %v2945 = vld [vmem:[#allocation3 + $0x8] sm:$0xff]
    %2946 = vmatprep.subr.mxu0 %v185
    %2947 = vmatpush1.msra.mxu0 %v184
    %2948 = vmatprep.subr.mxu0 %v189
    %2949 = vmatpush1.msra.mxu0 %v188
    %2950 = vmatprep.subr.mxu0 %v193
    %2951 = vmatpush1.msra.mxu0 %v192
    %2952 = vmatprep.subr.mxu0 %v197
    %2953 = vmatpush1.msra.mxu0 %v196
    %2954 = vmatprep.subr.mxu0 %v201
    %2955 = vmatpush1.msra.mxu0 %v200
    %2956 = vmatprep.subr.mxu0 %v205
    %2957 = vmatpush1.msra.mxu0 %v204
    %2958 = vmatprep.subr.mxu0 %v209
    %2959 = vmatpush1.msra.mxu0 %v208
    %2960 = vmatprep.subr.mxu0 %v213
    %2961 = vmatpush1.msra.mxu0 %v212
    %2962 = vmatprep.subr.mxu0 %v217
    %2963 = vmatpush1.msra.mxu0 %v216
    %2964 = vmatprep.subr.mxu0 %v221
    %2965 = vmatpush1.msra.mxu0 %v220
    %2966 = vmatprep.subr.mxu0 %v225
    %2967 = vmatpush1.msra.mxu0 %v224
    %2968 = vmatprep.subr.mxu0 %v229
    %2969 = vmatpush1.msra.mxu0 %v228
    %2970 = vmatprep.subr.mxu0 %v233
    %2971 = vmatpush1.msra.mxu0 %v232
    %2972 = vmatprep.subr.mxu0 %v237
    %2973 = vmatpush1.msra.mxu0 %v236
    %2974 = vmatprep.subr.mxu0 %v241
    %2975 = vmatpush1.msra.mxu0 %v240
    %2976 = vmatprep.subr.mxu0 %v245
    %2977 = vmatpush1.msra.mxu0 %v244
    %2978 = vmatprep.subr.mxu0 %v249
    %2979 = vmatpush1.msra.mxu0 %v248
    %2980 = vmatprep.subr.mxu0 %v253
    %2981 = vmatpush1.msra.mxu0 %v252
    %2982 = vmatprep.subr.mxu0 %v257
    %2983 = vmatpush1.msra.mxu0 %v256
    %2984 = vmatprep.subr.mxu0 %v261
    %2985 = vmatpush1.msra.mxu0 %v260
    %2986 = vmatprep.subr.mxu0 %v265
    %2987 = vmatpush1.msra.mxu0 %v264
    %2988 = vmatprep.subr.mxu0 %v269
    %2989 = vmatpush1.msra.mxu0 %v268
    %2990 = vmatprep.subr.mxu0 %v273
    %2991 = vmatpush1.msra.mxu0 %v272
    %2992 = vmatprep.subr.mxu0 %v277
    %2993 = vmatpush1.msra.mxu0 %v276
    %2994 = vmatprep.subr.mxu0 %v281
    %2995 = vmatpush1.msra.mxu0 %v280
    %2996 = vmatprep.subr.mxu0 %v285
    %2997 = vmatpush1.msra.mxu0 %v284
    %2998 = vmatprep.subr.mxu0 %v289
    %2999 = vmatpush1.msra.mxu0 %v288
    %3000 = vmatprep.subr.mxu0 %v293
    %3001 = vmatpush1.msra.mxu0 %v292
    %3002 = vmatprep.subr.mxu0 %v297
    %3003 = vmatpush1.msra.mxu0 %v296
    %3004 = vmatprep.subr.mxu0 %v301
    %3005 = vmatpush1.msra.mxu0 %v300
    %3006 = vmatprep.subr.mxu0 %v305
    %3007 = vmatpush1.msra.mxu0 %v304
    %3008 = vmatprep.subr.mxu0 %v309
    %3009 = vmatpush1.msra.mxu0 %v308
    %3010 = vmatprep.mubr.f32.mxu0 %v2945
    %3011 = vmatmul.mubr.f32.gmra.mrb[0].mxu0 %v2944
    %v3012 = vpop.f32.mrb[0].mxu0
    %v3013 = vadd.f32 %v333, %v3012
    %v3014 = vpop.f32.mrb[0].mxu0
    %v3015 = vadd.f32 %v337, %v3014
    %3016 = vdwg.mxu0
    %3017 = vmatprep.subr.mxu0 %v187
    %3018 = vmatpush1.msra.mxu0 %v186
    %3019 = vmatprep.subr.mxu0 %v191
    %3020 = vmatpush1.msra.mxu0 %v190
    %3021 = vmatprep.subr.mxu0 %v195
    %3022 = vmatpush1.msra.mxu0 %v194
    %3023 = vmatprep.subr.mxu0 %v199
    %3024 = vmatpush1.msra.mxu0 %v198
    %3025 = vmatprep.subr.mxu0 %v203
    %3026 = vmatpush1.msra.mxu0 %v202
    %3027 = vmatprep.subr.mxu0 %v207
    %3028 = vmatpush1.msra.mxu0 %v206
    %3029 = vmatprep.subr.mxu0 %v211
    %3030 = vmatpush1.msra.mxu0 %v210
    %3031 = vmatprep.subr.mxu0 %v215
    %3032 = vmatpush1.msra.mxu0 %v214
    %3033 = vmatprep.subr.mxu0 %v219
    %3034 = vmatpush1.msra.mxu0 %v218
    %3035 = vmatprep.subr.mxu0 %v223
    %3036 = vmatpush1.msra.mxu0 %v222
    %3037 = vmatprep.subr.mxu0 %v227
    %3038 = vmatpush1.msra.mxu0 %v226
    %3039 = vmatprep.subr.mxu0 %v231
    %3040 = vmatpush1.msra.mxu0 %v230
    %3041 = vmatprep.subr.mxu0 %v235
    %3042 = vmatpush1.msra.mxu0 %v234
    %3043 = vmatprep.subr.mxu0 %v239
    %3044 = vmatpush1.msra.mxu0 %v238
    %3045 = vmatprep.subr.mxu0 %v243
    %3046 = vmatpush1.msra.mxu0 %v242
    %3047 = vmatprep.subr.mxu0 %v247
    %3048 = vmatpush1.msra.mxu0 %v246
    %3049 = vmatprep.subr.mxu0 %v251
    %3050 = vmatpush1.msra.mxu0 %v250
    %3051 = vmatprep.subr.mxu0 %v255
    %3052 = vmatpush1.msra.mxu0 %v254
    %3053 = vmatprep.subr.mxu0 %v259
    %3054 = vmatpush1.msra.mxu0 %v258
    %3055 = vmatprep.subr.mxu0 %v263
    %3056 = vmatpush1.msra.mxu0 %v262
    %3057 = vmatprep.subr.mxu0 %v267
    %3058 = vmatpush1.msra.mxu0 %v266
    %3059 = vmatprep.subr.mxu0 %v271
    %3060 = vmatpush1.msra.mxu0 %v270
    %3061 = vmatprep.subr.mxu0 %v275
    %3062 = vmatpush1.msra.mxu0 %v274
    %3063 = vmatprep.subr.mxu0 %v279
    %3064 = vmatpush1.msra.mxu0 %v278
    %3065 = vmatprep.subr.mxu0 %v283
    %3066 = vmatpush1.msra.mxu0 %v282
    %3067 = vmatprep.subr.mxu0 %v287
    %3068 = vmatpush1.msra.mxu0 %v286
    %3069 = vmatprep.subr.mxu0 %v291
    %3070 = vmatpush1.msra.mxu0 %v290
    %3071 = vmatprep.subr.mxu0 %v295
    %3072 = vmatpush1.msra.mxu0 %v294
    %3073 = vmatprep.subr.mxu0 %v299
    %3074 = vmatpush1.msra.mxu0 %v298
    %3075 = vmatprep.subr.mxu0 %v303
    %3076 = vmatpush1.msra.mxu0 %v302
    %3077 = vmatprep.subr.mxu0 %v307
    %3078 = vmatpush1.msra.mxu0 %v306
    %3079 = vmatprep.subr.mxu0 %v311
    %3080 = vmatpush1.msra.mxu0 %v310
    %3081 = vmatprep.mubr.f32.mxu0 %v2945
    %3082 = vmatmul.mubr.f32.gmra.mrb[0].mxu0 %v2944
    %v3083 = vpop.f32.mrb[0].mxu0
    %v3084 = vadd.f32 %v341, %v3083
    %v3085 = vpop.f32.mrb[0].mxu0
    %v3086 = vadd.f32 %v345, %v3085
    %3087 = vdwg.mxu0
    %v3088 = vxor.u32 %v3013, 2147483648
    %v3089 = vmul.f32 %v3088, 1.442695
    %v3090 = vpow.pop %v3089
    %v3091 = vadd.f32 %v3090, 1.0
    %v3092 = vrcp.pop %v3091
    %v3093 = vmul.f32 1.0, %v3092
    %v3094 = vxor.u32 %v3015, 2147483648
    %v3095 = vmul.f32 %v3094, 1.442695
    %v3096 = vpow.pop %v3095
    %v3097 = vadd.f32 %v3096, 1.0
    %v3098 = vrcp.pop %v3097
    %v3099 = vmul.f32 1.0, %v3098
    %v3100 = vtanh.pop %v3084
    %v3101 = vxor.u32 %v3086, 2147483648
    %v3102 = vmul.f32 %v3101, 1.442695
    %v3103 = vpow.pop %v3102
    %v3104 = vadd.f32 %v3103, 1.0
    %v3105 = vrcp.pop %v3104
    %v3106 = vmul.f32 1.0, %v3105
    %v3107 = vmul.f32 %v3099, %v2838
    %v3108 = vmul.f32 %v3093, %v3100
    %v3109 = vadd.f32 %v3107, %v3108
    %v3110 = vtanh.pop %v3109
    %v3111 = vmul.f32 %v3106, %v3110
    %3112 = vmatprep.subr.mxu0 0.0
    %3113 = vmatpush1.msra.mxu0 %v312
    %3114 = vmatprep.subr.mxu0 0.0
    %3115 = vmatpush1.msra.mxu0 %v313
    %3116 = vmatprep.subr.mxu0 0.0
    %3117 = vmatpush1.msra.mxu0 %v314
    %3118 = vmatprep.subr.mxu0 0.0
    %3119 = vmatpush1.msra.mxu0 %v315
    %3120 = vmatprep.subr.mxu0 0.0
    %3121 = vmatpush1.msra.mxu0 %v316
    %3122 = vmatprep.subr.mxu0 0.0
    %3123 = vmatpush1.msra.mxu0 %v317
    %3124 = vmatprep.subr.mxu0 0.0
    %3125 = vmatpush1.msra.mxu0 %v318
    %3126 = vmatprep.subr.mxu0 0.0
    %3127 = vmatpush1.msra.mxu0 %v319
    %3128 = vmatprep.subr.mxu0 0.0
    %3129 = vmatpush1.msra.mxu0 %v320
    %3130 = vmatprep.subr.mxu0 0.0
    %3131 = vmatpush1.msra.mxu0 %v321
    %3132 = vmatprep.subr.mxu0 0.0
    %3133 = vmatpush1.msra.mxu0 %v322
    %3134 = vmatprep.subr.mxu0 0.0
    %3135 = vmatpush1.msra.mxu0 %v323
    %3136 = vmatprep.subr.mxu0 0.0
    %3137 = vmatpush1.msra.mxu0 %v324
    %3138 = vmatprep.subr.mxu0 0.0
    %3139 = vmatpush1.msra.mxu0 %v325
    %3140 = vmatprep.subr.mxu0 0.0
    %3141 = vmatpush1.msra.mxu0 %v326
    %3142 = vmatprep.subr.mxu0 0.0
    %3143 = vmatpush1.msra.mxu0 %v327
    %3144 = vmatprep.subr.mxu0 0.0
    %3145 = vmatpush1.msra.mxu0 0.0
    %3146 = vmatprep.subr.mxu0 0.0
    %3147 = vmatpush1.msra.mxu0 0.0
    %3148 = vmatprep.subr.mxu0 0.0
    %3149 = vmatpush1.msra.mxu0 0.0
    %3150 = vmatprep.subr.mxu0 0.0
    %3151 = vmatpush1.msra.mxu0 0.0
    %3152 = vmatprep.subr.mxu0 0.0
    %3153 = vmatpush1.msra.mxu0 0.0
    %3154 = vmatprep.subr.mxu0 0.0
    %3155 = vmatpush1.msra.mxu0 0.0
    %3156 = vmatprep.subr.mxu0 0.0
    %3157 = vmatpush1.msra.mxu0 0.0
    %3158 = vmatprep.subr.mxu0 0.0
    %3159 = vmatpush1.msra.mxu0 0.0
    %3160 = vmatprep.subr.mxu0 0.0
    %3161 = vmatpush1.msra.mxu0 0.0
    %3162 = vmatprep.subr.mxu0 0.0
    %3163 = vmatpush1.msra.mxu0 0.0
    %3164 = vmatprep.subr.mxu0 0.0
    %3165 = vmatpush1.msra.mxu0 0.0
    %3166 = vmatprep.subr.mxu0 0.0
    %3167 = vmatpush1.msra.mxu0 0.0
    %3168 = vmatprep.subr.mxu0 0.0
    %3169 = vmatpush1.msra.mxu0 0.0
    %3170 = vmatprep.subr.mxu0 0.0
    %3171 = vmatpush1.msra.mxu0 0.0
    %3172 = vmatprep.subr.mxu0 0.0
    %3173 = vmatpush1.msra.mxu0 0.0
    %3174 = vmatprep.subr.mxu0 0.0
    %3175 = vmatpush1.msra.mxu0 0.0
    %3176 = vmatprep.mubr.f32.mxu0 0.0
    %3177 = vmatmul.mubr.f32.gmra.mrb[0].mxu0 %v3111
    %v3178 = vpop.f32.mrb[0].mxu0
    %v3179 = vadd.f32 %v355, %v3178
    %v3180 = vpop.f32.mrb[0].mxu0
    %3181 = vdwg.mxu0
    %s3182 = scalar_lea.vmem [#allocation17], 32
    %3183 = vst [vmem:[%s3182] sm:$0xff] %v3179
    %3184 = vmax.xlane.f32.xlu0 %v3179
    %v3185 = vpop.xlane.xlu0 %3184
    %vm3186 = vcmp.eq.f32.partialorder %v3179, %v3185
    %v3187 = vsel %vm3186, %v2127, 128
    %v3188 = vand.u32 %v3187, 65535
    %v3189 = vshra.s32 %v3187, 16
    %v3190 = vcvt.s32.f32 %v3188
    %v3191 = vcvt.s32.f32 %v3189
    %3192 = vmin.xlane.f32.xlu0 %v3191
    %v3193 = vpop.xlane.xlu0 %3192
    %vm3194 = vcmp.eq.f32.partialorder %v3191, %v3193
    %v3195 = vsel %vm3194, %v3190, inf
    %3196 = vmin.xlane.f32.xlu0 %v3195
    %v3197 = vpop.xlane.xlu0 %3196
    %v3198 = vcvt.f32.s32 %v3197
    %v3199 = vcvt.f32.s32 %v3193
    %v3200 = vshll.u32 %v3199, 16
    %v3201 = vadd.s32 %v3200, %v3198
    %vm3202 = vcmp.eq.s32.totalorder %v2127, %v3201
    %v3203 = vsel %vm3202, 1, 0
    %v3204 = vcvt.s32.f32 %v3203
    %s3205 = sld [smem:[#allocation5 + $0x3]]
    %p3206 = scmp.eq.s32.totalorder %s3205, 1
    %s3207 = scalar_lea.vmem [#allocation9], 32
    %v3208 = vld [vmem:[%s3207] sm:$0xff]
    %s3209 = scalar_select %p3206, 1, 0
    %v3210 = vstv %s3209
    %vm3211 = vcmp.eq.s32.totalorder %v3210, 1
    %v3212 = vsel %vm3211, %v3208, %v3204
    %3213 = vst [vmem:[#allocation3] sm:$0xff] %v3212
    %3214 = vst [vmem:[#allocation3 + $0x8] sm:$0xff] %v3111
    %v3215 = vld [vmem:[#allocation3] sm:$0xff]
    %v3216 = vld [vmem:[#allocation3 + $0x8] sm:$0xff]
    %3217 = vmatprep.subr.mxu0 %v185
    %3218 = vmatpush1.msra.mxu0 %v184
    %3219 = vmatprep.subr.mxu0 %v189
    %3220 = vmatpush1.msra.mxu0 %v188
    %3221 = vmatprep.subr.mxu0 %v193
    %3222 = vmatpush1.msra.mxu0 %v192
    %3223 = vmatprep.subr.mxu0 %v197
    %3224 = vmatpush1.msra.mxu0 %v196
    %3225 = vmatprep.subr.mxu0 %v201
    %3226 = vmatpush1.msra.mxu0 %v200
    %3227 = vmatprep.subr.mxu0 %v205
    %3228 = vmatpush1.msra.mxu0 %v204
    %3229 = vmatprep.subr.mxu0 %v209
    %3230 = vmatpush1.msra.mxu0 %v208
    %3231 = vmatprep.subr.mxu0 %v213
    %3232 = vmatpush1.msra.mxu0 %v212
    %3233 = vmatprep.subr.mxu0 %v217
    %3234 = vmatpush1.msra.mxu0 %v216
    %3235 = vmatprep.subr.mxu0 %v221
    %3236 = vmatpush1.msra.mxu0 %v220
    %3237 = vmatprep.subr.mxu0 %v225
    %3238 = vmatpush1.msra.mxu0 %v224
    %3239 = vmatprep.subr.mxu0 %v229
    %3240 = vmatpush1.msra.mxu0 %v228
    %3241 = vmatprep.subr.mxu0 %v233
    %3242 = vmatpush1.msra.mxu0 %v232
    %3243 = vmatprep.subr.mxu0 %v237
    %3244 = vmatpush1.msra.mxu0 %v236
    %3245 = vmatprep.subr.mxu0 %v241
    %3246 = vmatpush1.msra.mxu0 %v240
    %3247 = vmatprep.subr.mxu0 %v245
    %3248 = vmatpush1.msra.mxu0 %v244
    %3249 = vmatprep.subr.mxu0 %v249
    %3250 = vmatpush1.msra.mxu0 %v248
    %3251 = vmatprep.subr.mxu0 %v253
    %3252 = vmatpush1.msra.mxu0 %v252
    %3253 = vmatprep.subr.mxu0 %v257
    %3254 = vmatpush1.msra.mxu0 %v256
    %3255 = vmatprep.subr.mxu0 %v261
    %3256 = vmatpush1.msra.mxu0 %v260
    %3257 = vmatprep.subr.mxu0 %v265
    %3258 = vmatpush1.msra.mxu0 %v264
    %3259 = vmatprep.subr.mxu0 %v269
    %3260 = vmatpush1.msra.mxu0 %v268
    %3261 = vmatprep.subr.mxu0 %v273
    %3262 = vmatpush1.msra.mxu0 %v272
    %3263 = vmatprep.subr.mxu0 %v277
    %3264 = vmatpush1.msra.mxu0 %v276
    %3265 = vmatprep.subr.mxu0 %v281
    %3266 = vmatpush1.msra.mxu0 %v280
    %3267 = vmatprep.subr.mxu0 %v285
    %3268 = vmatpush1.msra.mxu0 %v284
    %3269 = vmatprep.subr.mxu0 %v289
    %3270 = vmatpush1.msra.mxu0 %v288
    %3271 = vmatprep.subr.mxu0 %v293
    %3272 = vmatpush1.msra.mxu0 %v292
    %3273 = vmatprep.subr.mxu0 %v297
    %3274 = vmatpush1.msra.mxu0 %v296
    %3275 = vmatprep.subr.mxu0 %v301
    %3276 = vmatpush1.msra.mxu0 %v300
    %3277 = vmatprep.subr.mxu0 %v305
    %3278 = vmatpush1.msra.mxu0 %v304
    %3279 = vmatprep.subr.mxu0 %v309
    %3280 = vmatpush1.msra.mxu0 %v308
    %3281 = vmatprep.mubr.f32.mxu0 %v3216
    %3282 = vmatmul.mubr.f32.gmra.mrb[0].mxu0 %v3215
    %v3283 = vpop.f32.mrb[0].mxu0
    %v3284 = vadd.f32 %v333, %v3283
    %v3285 = vpop.f32.mrb[0].mxu0
    %v3286 = vadd.f32 %v337, %v3285
    %3287 = vdwg.mxu0
    %3288 = vmatprep.subr.mxu0 %v187
    %3289 = vmatpush1.msra.mxu0 %v186
    %3290 = vmatprep.subr.mxu0 %v191
    %3291 = vmatpush1.msra.mxu0 %v190
    %3292 = vmatprep.subr.mxu0 %v195
    %3293 = vmatpush1.msra.mxu0 %v194
    %3294 = vmatprep.subr.mxu0 %v199
    %3295 = vmatpush1.msra.mxu0 %v198
    %3296 = vmatprep.subr.mxu0 %v203
    %3297 = vmatpush1.msra.mxu0 %v202
    %3298 = vmatprep.subr.mxu0 %v207
    %3299 = vmatpush1.msra.mxu0 %v206
    %3300 = vmatprep.subr.mxu0 %v211
    %3301 = vmatpush1.msra.mxu0 %v210
    %3302 = vmatprep.subr.mxu0 %v215
    %3303 = vmatpush1.msra.mxu0 %v214
    %3304 = vmatprep.subr.mxu0 %v219
    %3305 = vmatpush1.msra.mxu0 %v218
    %3306 = vmatprep.subr.mxu0 %v223
    %3307 = vmatpush1.msra.mxu0 %v222
    %3308 = vmatprep.subr.mxu0 %v227
    %3309 = vmatpush1.msra.mxu0 %v226
    %3310 = vmatprep.subr.mxu0 %v231
    %3311 = vmatpush1.msra.mxu0 %v230
    %3312 = vmatprep.subr.mxu0 %v235
    %3313 = vmatpush1.msra.mxu0 %v234
    %3314 = vmatprep.subr.mxu0 %v239
    %3315 = vmatpush1.msra.mxu0 %v238
    %3316 = vmatprep.subr.mxu0 %v243
    %3317 = vmatpush1.msra.mxu0 %v242
    %3318 = vmatprep.subr.mxu0 %v247
    %3319 = vmatpush1.msra.mxu0 %v246
    %3320 = vmatprep.subr.mxu0 %v251
    %3321 = vmatpush1.msra.mxu0 %v250
    %3322 = vmatprep.subr.mxu0 %v255
    %3323 = vmatpush1.msra.mxu0 %v254
    %3324 = vmatprep.subr.mxu0 %v259
    %3325 = vmatpush1.msra.mxu0 %v258
    %3326 = vmatprep.subr.mxu0 %v263
    %3327 = vmatpush1.msra.mxu0 %v262
    %3328 = vmatprep.subr.mxu0 %v267
    %3329 = vmatpush1.msra.mxu0 %v266
    %3330 = vmatprep.subr.mxu0 %v271
    %3331 = vmatpush1.msra.mxu0 %v270
    %3332 = vmatprep.subr.mxu0 %v275
    %3333 = vmatpush1.msra.mxu0 %v274
    %3334 = vmatprep.subr.mxu0 %v279
    %3335 = vmatpush1.msra.mxu0 %v278
    %3336 = vmatprep.subr.mxu0 %v283
    %3337 = vmatpush1.msra.mxu0 %v282
    %3338 = vmatprep.subr.mxu0 %v287
    %3339 = vmatpush1.msra.mxu0 %v286
    %3340 = vmatprep.subr.mxu0 %v291
    %3341 = vmatpush1.msra.mxu0 %v290
    %3342 = vmatprep.subr.mxu0 %v295
    %3343 = vmatpush1.msra.mxu0 %v294
    %3344 = vmatprep.subr.mxu0 %v299
    %3345 = vmatpush1.msra.mxu0 %v298
    %3346 = vmatprep.subr.mxu0 %v303
    %3347 = vmatpush1.msra.mxu0 %v302
    %3348 = vmatprep.subr.mxu0 %v307
    %3349 = vmatpush1.msra.mxu0 %v306
    %3350 = vmatprep.subr.mxu0 %v311
    %3351 = vmatpush1.msra.mxu0 %v310
    %3352 = vmatprep.mubr.f32.mxu0 %v3216
    %3353 = vmatmul.mubr.f32.gmra.mrb[0].mxu0 %v3215
    %v3354 = vpop.f32.mrb[0].mxu0
    %v3355 = vadd.f32 %v341, %v3354
    %v3356 = vpop.f32.mrb[0].mxu0
    %v3357 = vadd.f32 %v345, %v3356
    %3358 = vdwg.mxu0
    %v3359 = vxor.u32 %v3284, 2147483648
    %v3360 = vmul.f32 %v3359, 1.442695
    %v3361 = vpow.pop %v3360
    %v3362 = vadd.f32 %v3361, 1.0
    %v3363 = vrcp.pop %v3362
    %v3364 = vmul.f32 1.0, %v3363
    %v3365 = vxor.u32 %v3286, 2147483648
    %v3366 = vmul.f32 %v3365, 1.442695
    %v3367 = vpow.pop %v3366
    %v3368 = vadd.f32 %v3367, 1.0
    %v3369 = vrcp.pop %v3368
    %v3370 = vmul.f32 1.0, %v3369
    %v3371 = vtanh.pop %v3355
    %v3372 = vxor.u32 %v3357, 2147483648
    %v3373 = vmul.f32 %v3372, 1.442695
    %v3374 = vpow.pop %v3373
    %v3375 = vadd.f32 %v3374, 1.0
    %v3376 = vrcp.pop %v3375
    %v3377 = vmul.f32 1.0, %v3376
    %v3378 = vmul.f32 %v3370, %v3109
    %v3379 = vmul.f32 %v3364, %v3371
    %v3380 = vadd.f32 %v3378, %v3379
    %v3381 = vtanh.pop %v3380
    %v3382 = vmul.f32 %v3377, %v3381
    %3383 = vmatprep.subr.mxu0 0.0
    %3384 = vmatpush1.msra.mxu0 %v312
    %3385 = vmatprep.subr.mxu0 0.0
    %3386 = vmatpush1.msra.mxu0 %v313
    %3387 = vmatprep.subr.mxu0 0.0
    %3388 = vmatpush1.msra.mxu0 %v314
    %3389 = vmatprep.subr.mxu0 0.0
    %3390 = vmatpush1.msra.mxu0 %v315
    %3391 = vmatprep.subr.mxu0 0.0
    %3392 = vmatpush1.msra.mxu0 %v316
    %3393 = vmatprep.subr.mxu0 0.0
    %3394 = vmatpush1.msra.mxu0 %v317
    %3395 = vmatprep.subr.mxu0 0.0
    %3396 = vmatpush1.msra.mxu0 %v318
    %3397 = vmatprep.subr.mxu0 0.0
    %3398 = vmatpush1.msra.mxu0 %v319
    %3399 = vmatprep.subr.mxu0 0.0
    %3400 = vmatpush1.msra.mxu0 %v320
    %3401 = vmatprep.subr.mxu0 0.0
    %3402 = vmatpush1.msra.mxu0 %v321
    %3403 = vmatprep.subr.mxu0 0.0
    %3404 = vmatpush1.msra.mxu0 %v322
    %3405 = vmatprep.subr.mxu0 0.0
    %3406 = vmatpush1.msra.mxu0 %v323
    %3407 = vmatprep.subr.mxu0 0.0
    %3408 = vmatpush1.msra.mxu0 %v324
    %3409 = vmatprep.subr.mxu0 0.0
    %3410 = vmatpush1.msra.mxu0 %v325
    %3411 = vmatprep.subr.mxu0 0.0
    %3412 = vmatpush1.msra.mxu0 %v326
    %3413 = vmatprep.subr.mxu0 0.0
    %3414 = vmatpush1.msra.mxu0 %v327
    %3415 = vmatprep.subr.mxu0 0.0
    %3416 = vmatpush1.msra.mxu0 0.0
    %3417 = vmatprep.subr.mxu0 0.0
    %3418 = vmatpush1.msra.mxu0 0.0
    %3419 = vmatprep.subr.mxu0 0.0
    %3420 = vmatpush1.msra.mxu0 0.0
    %3421 = vmatprep.subr.mxu0 0.0
    %3422 = vmatpush1.msra.mxu0 0.0
    %3423 = vmatprep.subr.mxu0 0.0
    %3424 = vmatpush1.msra.mxu0 0.0
    %3425 = vmatprep.subr.mxu0 0.0
    %3426 = vmatpush1.msra.mxu0 0.0
    %3427 = vmatprep.subr.mxu0 0.0
    %3428 = vmatpush1.msra.mxu0 0.0
    %3429 = vmatprep.subr.mxu0 0.0
    %3430 = vmatpush1.msra.mxu0 0.0
    %3431 = vmatprep.subr.mxu0 0.0
    %3432 = vmatpush1.msra.mxu0 0.0
    %3433 = vmatprep.subr.mxu0 0.0
    %3434 = vmatpush1.msra.mxu0 0.0
    %3435 = vmatprep.subr.mxu0 0.0
    %3436 = vmatpush1.msra.mxu0 0.0
    %3437 = vmatprep.subr.mxu0 0.0
    %3438 = vmatpush1.msra.mxu0 0.0
    %3439 = vmatprep.subr.mxu0 0.0
    %3440 = vmatpush1.msra.mxu0 0.0
    %3441 = vmatprep.subr.mxu0 0.0
    %3442 = vmatpush1.msra.mxu0 0.0
    %3443 = vmatprep.subr.mxu0 0.0
    %3444 = vmatpush1.msra.mxu0 0.0
    %3445 = vmatprep.subr.mxu0 0.0
    %3446 = vmatpush1.msra.mxu0 0.0
    %3447 = vmatprep.mubr.f32.mxu0 0.0
    %3448 = vmatmul.mubr.f32.gmra.mrb[0].mxu0 %v3382
    %v3449 = vpop.f32.mrb[0].mxu0
    %v3450 = vadd.f32 %v355, %v3449
    %v3451 = vpop.f32.mrb[0].mxu0
    %3452 = vdwg.mxu0
    %s3453 = scalar_lea.vmem [#allocation17], 40
    %3454 = vst [vmem:[%s3453] sm:$0xff] %v3450
    %3455 = vmax.xlane.f32.xlu0 %v3450
    %v3456 = vpop.xlane.xlu0 %3455
    %vm3457 = vcmp.eq.f32.partialorder %v3450, %v3456
    %v3458 = vsel %vm3457, %v2127, 128
    %v3459 = vand.u32 %v3458, 65535
    %v3460 = vshra.s32 %v3458, 16
    %v3461 = vcvt.s32.f32 %v3459
    %v3462 = vcvt.s32.f32 %v3460
    %3463 = vmin.xlane.f32.xlu0 %v3462
    %v3464 = vpop.xlane.xlu0 %3463
    %vm3465 = vcmp.eq.f32.partialorder %v3462, %v3464
    %v3466 = vsel %vm3465, %v3461, inf
    %3467 = vmin.xlane.f32.xlu0 %v3466
    %v3468 = vpop.xlane.xlu0 %3467
    %v3469 = vcvt.f32.s32 %v3468
    %v3470 = vcvt.f32.s32 %v3464
    %v3471 = vshll.u32 %v3470, 16
    %v3472 = vadd.s32 %v3471, %v3469
    %vm3473 = vcmp.eq.s32.totalorder %v2127, %v3472
    %v3474 = vsel %vm3473, 1, 0
    %v3475 = vcvt.s32.f32 %v3474
    %s3476 = sld [smem:[#allocation5 + $0x4]]
    %p3477 = scmp.eq.s32.totalorder %s3476, 1
    %s3478 = scalar_lea.vmem [#allocation9], 40
    %v3479 = vld [vmem:[%s3478] sm:$0xff]
    %s3480 = scalar_select %p3477, 1, 0
    %v3481 = vstv %s3480
    %vm3482 = vcmp.eq.s32.totalorder %v3481, 1
    %v3483 = vsel %vm3482, %v3479, %v3475
    %3484 = vst [vmem:[#allocation3] sm:$0xff] %v3483
    %3485 = vst [vmem:[#allocation3 + $0x8] sm:$0xff] %v3382
    %v3486 = vld [vmem:[#allocation3] sm:$0xff]
    %v3487 = vld [vmem:[#allocation3 + $0x8] sm:$0xff]
    %3488 = vmatprep.subr.mxu0 %v185
    %3489 = vmatpush1.msra.mxu0 %v184
    %3490 = vmatprep.subr.mxu0 %v189
    %3491 = vmatpush1.msra.mxu0 %v188
    %3492 = vmatprep.subr.mxu0 %v193
    %3493 = vmatpush1.msra.mxu0 %v192
    %3494 = vmatprep.subr.mxu0 %v197
    %3495 = vmatpush1.msra.mxu0 %v196
    %3496 = vmatprep.subr.mxu0 %v201
    %3497 = vmatpush1.msra.mxu0 %v200
    %3498 = vmatprep.subr.mxu0 %v205
    %3499 = vmatpush1.msra.mxu0 %v204
    %3500 = vmatprep.subr.mxu0 %v209
    %3501 = vmatpush1.msra.mxu0 %v208
    %3502 = vmatprep.subr.mxu0 %v213
    %3503 = vmatpush1.msra.mxu0 %v212
    %3504 = vmatprep.subr.mxu0 %v217
    %3505 = vmatpush1.msra.mxu0 %v216
    %3506 = vmatprep.subr.mxu0 %v221
    %3507 = vmatpush1.msra.mxu0 %v220
    %3508 = vmatprep.subr.mxu0 %v225
    %3509 = vmatpush1.msra.mxu0 %v224
    %3510 = vmatprep.subr.mxu0 %v229
    %3511 = vmatpush1.msra.mxu0 %v228
    %3512 = vmatprep.subr.mxu0 %v233
    %3513 = vmatpush1.msra.mxu0 %v232
    %3514 = vmatprep.subr.mxu0 %v237
    %3515 = vmatpush1.msra.mxu0 %v236
    %3516 = vmatprep.subr.mxu0 %v241
    %3517 = vmatpush1.msra.mxu0 %v240
    %3518 = vmatprep.subr.mxu0 %v245
    %3519 = vmatpush1.msra.mxu0 %v244
    %3520 = vmatprep.subr.mxu0 %v249
    %3521 = vmatpush1.msra.mxu0 %v248
    %3522 = vmatprep.subr.mxu0 %v253
    %3523 = vmatpush1.msra.mxu0 %v252
    %3524 = vmatprep.subr.mxu0 %v257
    %3525 = vmatpush1.msra.mxu0 %v256
    %3526 = vmatprep.subr.mxu0 %v261
    %3527 = vmatpush1.msra.mxu0 %v260
    %3528 = vmatprep.subr.mxu0 %v265
    %3529 = vmatpush1.msra.mxu0 %v264
    %3530 = vmatprep.subr.mxu0 %v269
    %3531 = vmatpush1.msra.mxu0 %v268
    %3532 = vmatprep.subr.mxu0 %v273
    %3533 = vmatpush1.msra.mxu0 %v272
    %3534 = vmatprep.subr.mxu0 %v277
    %3535 = vmatpush1.msra.mxu0 %v276
    %3536 = vmatprep.subr.mxu0 %v281
    %3537 = vmatpush1.msra.mxu0 %v280
    %3538 = vmatprep.subr.mxu0 %v285
    %3539 = vmatpush1.msra.mxu0 %v284
    %3540 = vmatprep.subr.mxu0 %v289
    %3541 = vmatpush1.msra.mxu0 %v288
    %3542 = vmatprep.subr.mxu0 %v293
    %3543 = vmatpush1.msra.mxu0 %v292
    %3544 = vmatprep.subr.mxu0 %v297
    %3545 = vmatpush1.msra.mxu0 %v296
    %3546 = vmatprep.subr.mxu0 %v301
    %3547 = vmatpush1.msra.mxu0 %v300
    %3548 = vmatprep.subr.mxu0 %v305
    %3549 = vmatpush1.msra.mxu0 %v304
    %3550 = vmatprep.subr.mxu0 %v309
    %3551 = vmatpush1.msra.mxu0 %v308
    %3552 = vmatprep.mubr.f32.mxu0 %v3487
    %3553 = vmatmul.mubr.f32.gmra.mrb[0].mxu0 %v3486
    %v3554 = vpop.f32.mrb[0].mxu0
    %v3555 = vadd.f32 %v333, %v3554
    %v3556 = vpop.f32.mrb[0].mxu0
    %v3557 = vadd.f32 %v337, %v3556
    %3558 = vdwg.mxu0
    %3559 = vmatprep.subr.mxu0 %v187
    %3560 = vmatpush1.msra.mxu0 %v186
    %3561 = vmatprep.subr.mxu0 %v191
    %3562 = vmatpush1.msra.mxu0 %v190
    %3563 = vmatprep.subr.mxu0 %v195
    %3564 = vmatpush1.msra.mxu0 %v194
    %3565 = vmatprep.subr.mxu0 %v199
    %3566 = vmatpush1.msra.mxu0 %v198
    %3567 = vmatprep.subr.mxu0 %v203
    %3568 = vmatpush1.msra.mxu0 %v202
    %3569 = vmatprep.subr.mxu0 %v207
    %3570 = vmatpush1.msra.mxu0 %v206
    %3571 = vmatprep.subr.mxu0 %v211
    %3572 = vmatpush1.msra.mxu0 %v210
    %3573 = vmatprep.subr.mxu0 %v215
    %3574 = vmatpush1.msra.mxu0 %v214
    %3575 = vmatprep.subr.mxu0 %v219
    %3576 = vmatpush1.msra.mxu0 %v218
    %3577 = vmatprep.subr.mxu0 %v223
    %3578 = vmatpush1.msra.mxu0 %v222
    %3579 = vmatprep.subr.mxu0 %v227
    %3580 = vmatpush1.msra.mxu0 %v226
    %3581 = vmatprep.subr.mxu0 %v231
    %3582 = vmatpush1.msra.mxu0 %v230
    %3583 = vmatprep.subr.mxu0 %v235
    %3584 = vmatpush1.msra.mxu0 %v234
    %3585 = vmatprep.subr.mxu0 %v239
    %3586 = vmatpush1.msra.mxu0 %v238
    %3587 = vmatprep.subr.mxu0 %v243
    %3588 = vmatpush1.msra.mxu0 %v242
    %3589 = vmatprep.subr.mxu0 %v247
    %3590 = vmatpush1.msra.mxu0 %v246
    %3591 = vmatprep.subr.mxu0 %v251
    %3592 = vmatpush1.msra.mxu0 %v250
    %3593 = vmatprep.subr.mxu0 %v255
    %3594 = vmatpush1.msra.mxu0 %v254
    %3595 = vmatprep.subr.mxu0 %v259
    %3596 = vmatpush1.msra.mxu0 %v258
    %3597 = vmatprep.subr.mxu0 %v263
    %3598 = vmatpush1.msra.mxu0 %v262
    %3599 = vmatprep.subr.mxu0 %v267
    %3600 = vmatpush1.msra.mxu0 %v266
    %3601 = vmatprep.subr.mxu0 %v271
    %3602 = vmatpush1.msra.mxu0 %v270
    %3603 = vmatprep.subr.mxu0 %v275
    %3604 = vmatpush1.msra.mxu0 %v274
    %3605 = vmatprep.subr.mxu0 %v279
    %3606 = vmatpush1.msra.mxu0 %v278
    %3607 = vmatprep.subr.mxu0 %v283
    %3608 = vmatpush1.msra.mxu0 %v282
    %3609 = vmatprep.subr.mxu0 %v287
    %3610 = vmatpush1.msra.mxu0 %v286
    %3611 = vmatprep.subr.mxu0 %v291
    %3612 = vmatpush1.msra.mxu0 %v290
    %3613 = vmatprep.subr.mxu0 %v295
    %3614 = vmatpush1.msra.mxu0 %v294
    %3615 = vmatprep.subr.mxu0 %v299
    %3616 = vmatpush1.msra.mxu0 %v298
    %3617 = vmatprep.subr.mxu0 %v303
    %3618 = vmatpush1.msra.mxu0 %v302
    %3619 = vmatprep.subr.mxu0 %v307
    %3620 = vmatpush1.msra.mxu0 %v306
    %3621 = vmatprep.subr.mxu0 %v311
    %3622 = vmatpush1.msra.mxu0 %v310
    %3623 = vmatprep.mubr.f32.mxu0 %v3487
    %3624 = vmatmul.mubr.f32.gmra.mrb[0].mxu0 %v3486
    %v3625 = vpop.f32.mrb[0].mxu0
    %v3626 = vadd.f32 %v341, %v3625
    %v3627 = vpop.f32.mrb[0].mxu0
    %v3628 = vadd.f32 %v345, %v3627
    %3629 = vdwg.mxu0
    %v3630 = vxor.u32 %v3555, 2147483648
    %v3631 = vmul.f32 %v3630, 1.442695
    %v3632 = vpow.pop %v3631
    %v3633 = vadd.f32 %v3632, 1.0
    %v3634 = vrcp.pop %v3633
    %v3635 = vmul.f32 1.0, %v3634
    %v3636 = vxor.u32 %v3557, 2147483648
    %v3637 = vmul.f32 %v3636, 1.442695
    %v3638 = vpow.pop %v3637
    %v3639 = vadd.f32 %v3638, 1.0
    %v3640 = vrcp.pop %v3639
    %v3641 = vmul.f32 1.0, %v3640
    %v3642 = vtanh.pop %v3626
    %v3643 = vxor.u32 %v3628, 2147483648
    %v3644 = vmul.f32 %v3643, 1.442695
    %v3645 = vpow.pop %v3644
    %v3646 = vadd.f32 %v3645, 1.0
    %v3647 = vrcp.pop %v3646
    %v3648 = vmul.f32 1.0, %v3647
    %v3649 = vmul.f32 %v3641, %v3380
    %v3650 = vmul.f32 %v3635, %v3642
    %v3651 = vadd.f32 %v3649, %v3650
    %v3652 = vtanh.pop %v3651
    %v3653 = vmul.f32 %v3648, %v3652
    %3654 = vmatprep.subr.mxu0 0.0
    %3655 = vmatpush1.msra.mxu0 %v312
    %3656 = vmatprep.subr.mxu0 0.0
    %3657 = vmatpush1.msra.mxu0 %v313
    %3658 = vmatprep.subr.mxu0 0.0
    %3659 = vmatpush1.msra.mxu0 %v314
    %3660 = vmatprep.subr.mxu0 0.0
    %3661 = vmatpush1.msra.mxu0 %v315
    %3662 = vmatprep.subr.mxu0 0.0
    %3663 = vmatpush1.msra.mxu0 %v316
    %3664 = vmatprep.subr.mxu0 0.0
    %3665 = vmatpush1.msra.mxu0 %v317
    %3666 = vmatprep.subr.mxu0 0.0
    %3667 = vmatpush1.msra.mxu0 %v318
    %3668 = vmatprep.subr.mxu0 0.0
    %3669 = vmatpush1.msra.mxu0 %v319
    %3670 = vmatprep.subr.mxu0 0.0
    %3671 = vmatpush1.msra.mxu0 %v320
    %3672 = vmatprep.subr.mxu0 0.0
    %3673 = vmatpush1.msra.mxu0 %v321
    %3674 = vmatprep.subr.mxu0 0.0
    %3675 = vmatpush1.msra.mxu0 %v322
    %3676 = vmatprep.subr.mxu0 0.0
    %3677 = vmatpush1.msra.mxu0 %v323
    %3678 = vmatprep.subr.mxu0 0.0
    %3679 = vmatpush1.msra.mxu0 %v324
    %3680 = vmatprep.subr.mxu0 0.0
    %3681 = vmatpush1.msra.mxu0 %v325
    %3682 = vmatprep.subr.mxu0 0.0
    %3683 = vmatpush1.msra.mxu0 %v326
    %3684 = vmatprep.subr.mxu0 0.0
    %3685 = vmatpush1.msra.mxu0 %v327
    %3686 = vmatprep.subr.mxu0 0.0
    %3687 = vmatpush1.msra.mxu0 0.0
    %3688 = vmatprep.subr.mxu0 0.0
    %3689 = vmatpush1.msra.mxu0 0.0
    %3690 = vmatprep.subr.mxu0 0.0
    %3691 = vmatpush1.msra.mxu0 0.0
    %3692 = vmatprep.subr.mxu0 0.0
    %3693 = vmatpush1.msra.mxu0 0.0
    %3694 = vmatprep.subr.mxu0 0.0
    %3695 = vmatpush1.msra.mxu0 0.0
    %3696 = vmatprep.subr.mxu0 0.0
    %3697 = vmatpush1.msra.mxu0 0.0
    %3698 = vmatprep.subr.mxu0 0.0
    %3699 = vmatpush1.msra.mxu0 0.0
    %3700 = vmatprep.subr.mxu0 0.0
    %3701 = vmatpush1.msra.mxu0 0.0
    %3702 = vmatprep.subr.mxu0 0.0
    %3703 = vmatpush1.msra.mxu0 0.0
    %3704 = vmatprep.subr.mxu0 0.0
    %3705 = vmatpush1.msra.mxu0 0.0
    %3706 = vmatprep.subr.mxu0 0.0
    %3707 = vmatpush1.msra.mxu0 0.0
    %3708 = vmatprep.subr.mxu0 0.0
    %3709 = vmatpush1.msra.mxu0 0.0
    %3710 = vmatprep.subr.mxu0 0.0
    %3711 = vmatpush1.msra.mxu0 0.0
    %3712 = vmatprep.subr.mxu0 0.0
    %3713 = vmatpush1.msra.mxu0 0.0
    %3714 = vmatprep.subr.mxu0 0.0
    %3715 = vmatpush1.msra.mxu0 0.0
    %3716 = vmatprep.subr.mxu0 0.0
    %3717 = vmatpush1.msra.mxu0 0.0
    %3718 = vmatprep.mubr.f32.mxu0 0.0
    %3719 = vmatmul.mubr.f32.gmra.mrb[0].mxu0 %v3653
    %v3720 = vpop.f32.mrb[0].mxu0
    %v3721 = vadd.f32 %v355, %v3720
    %v3722 = vpop.f32.mrb[0].mxu0
    %3723 = vdwg.mxu0
    %s3724 = scalar_lea.vmem [#allocation17], 48
    %3725 = vst [vmem:[%s3724] sm:$0xff] %v3721
    %3726 = vmax.xlane.f32.xlu0 %v3721
    %v3727 = vpop.xlane.xlu0 %3726
    %vm3728 = vcmp.eq.f32.partialorder %v3721, %v3727
    %v3729 = vsel %vm3728, %v2127, 128
    %v3730 = vand.u32 %v3729, 65535
    %v3731 = vshra.s32 %v3729, 16
    %v3732 = vcvt.s32.f32 %v3730
    %v3733 = vcvt.s32.f32 %v3731
    %3734 = vmin.xlane.f32.xlu0 %v3733
    %v3735 = vpop.xlane.xlu0 %3734
    %vm3736 = vcmp.eq.f32.partialorder %v3733, %v3735
    %v3737 = vsel %vm3736, %v3732, inf
    %3738 = vmin.xlane.f32.xlu0 %v3737
    %v3739 = vpop.xlane.xlu0 %3738
    %v3740 = vcvt.f32.s32 %v3739
    %v3741 = vcvt.f32.s32 %v3735
    %v3742 = vshll.u32 %v3741, 16
    %v3743 = vadd.s32 %v3742, %v3740
    %vm3744 = vcmp.eq.s32.totalorder %v2127, %v3743
    %v3745 = vsel %vm3744, 1, 0
    %v3746 = vcvt.s32.f32 %v3745
    %s3747 = sld [smem:[#allocation5 + $0x5]]
    %p3748 = scmp.eq.s32.totalorder %s3747, 1
    %s3749 = scalar_lea.vmem [#allocation9], 48
    %v3750 = vld [vmem:[%s3749] sm:$0xff]
    %s3751 = scalar_select %p3748, 1, 0
    %v3752 = vstv %s3751
    %vm3753 = vcmp.eq.s32.totalorder %v3752, 1
    %v3754 = vsel %vm3753, %v3750, %v3746
    %3755 = vst [vmem:[#allocation3] sm:$0xff] %v3754
    %3756 = vst [vmem:[#allocation3 + $0x8] sm:$0xff] %v3653
    %v3757 = vld [vmem:[#allocation3] sm:$0xff]
    %v3758 = vld [vmem:[#allocation3 + $0x8] sm:$0xff]
    %3759 = vmatprep.subr.mxu0 %v185
    %3760 = vmatpush1.msra.mxu0 %v184
    %3761 = vmatprep.subr.mxu0 %v189
    %3762 = vmatpush1.msra.mxu0 %v188
    %3763 = vmatprep.subr.mxu0 %v193
    %3764 = vmatpush1.msra.mxu0 %v192
    %3765 = vmatprep.subr.mxu0 %v197
    %3766 = vmatpush1.msra.mxu0 %v196
    %3767 = vmatprep.subr.mxu0 %v201
    %3768 = vmatpush1.msra.mxu0 %v200
    %3769 = vmatprep.subr.mxu0 %v205
    %3770 = vmatpush1.msra.mxu0 %v204
    %3771 = vmatprep.subr.mxu0 %v209
    %3772 = vmatpush1.msra.mxu0 %v208
    %3773 = vmatprep.subr.mxu0 %v213
    %3774 = vmatpush1.msra.mxu0 %v212
    %3775 = vmatprep.subr.mxu0 %v217
    %3776 = vmatpush1.msra.mxu0 %v216
    %3777 = vmatprep.subr.mxu0 %v221
    %3778 = vmatpush1.msra.mxu0 %v220
    %3779 = vmatprep.subr.mxu0 %v225
    %3780 = vmatpush1.msra.mxu0 %v224
    %3781 = vmatprep.subr.mxu0 %v229
    %3782 = vmatpush1.msra.mxu0 %v228
    %3783 = vmatprep.subr.mxu0 %v233
    %3784 = vmatpush1.msra.mxu0 %v232
    %3785 = vmatprep.subr.mxu0 %v237
    %3786 = vmatpush1.msra.mxu0 %v236
    %3787 = vmatprep.subr.mxu0 %v241
    %3788 = vmatpush1.msra.mxu0 %v240
    %3789 = vmatprep.subr.mxu0 %v245
    %3790 = vmatpush1.msra.mxu0 %v244
    %3791 = vmatprep.subr.mxu0 %v249
    %3792 = vmatpush1.msra.mxu0 %v248
    %3793 = vmatprep.subr.mxu0 %v253
    %3794 = vmatpush1.msra.mxu0 %v252
    %3795 = vmatprep.subr.mxu0 %v257
    %3796 = vmatpush1.msra.mxu0 %v256
    %3797 = vmatprep.subr.mxu0 %v261
    %3798 = vmatpush1.msra.mxu0 %v260
    %3799 = vmatprep.subr.mxu0 %v265
    %3800 = vmatpush1.msra.mxu0 %v264
    %3801 = vmatprep.subr.mxu0 %v269
    %3802 = vmatpush1.msra.mxu0 %v268
    %3803 = vmatprep.subr.mxu0 %v273
    %3804 = vmatpush1.msra.mxu0 %v272
    %3805 = vmatprep.subr.mxu0 %v277
    %3806 = vmatpush1.msra.mxu0 %v276
    %3807 = vmatprep.subr.mxu0 %v281
    %3808 = vmatpush1.msra.mxu0 %v280
    %3809 = vmatprep.subr.mxu0 %v285
    %3810 = vmatpush1.msra.mxu0 %v284
    %3811 = vmatprep.subr.mxu0 %v289
    %3812 = vmatpush1.msra.mxu0 %v288
    %3813 = vmatprep.subr.mxu0 %v293
    %3814 = vmatpush1.msra.mxu0 %v292
    %3815 = vmatprep.subr.mxu0 %v297
    %3816 = vmatpush1.msra.mxu0 %v296
    %3817 = vmatprep.subr.mxu0 %v301
    %3818 = vmatpush1.msra.mxu0 %v300
    %3819 = vmatprep.subr.mxu0 %v305
    %3820 = vmatpush1.msra.mxu0 %v304
    %3821 = vmatprep.subr.mxu0 %v309
    %3822 = vmatpush1.msra.mxu0 %v308
    %3823 = vmatprep.mubr.f32.mxu0 %v3758
    %3824 = vmatmul.mubr.f32.gmra.mrb[0].mxu0 %v3757
    %v3825 = vpop.f32.mrb[0].mxu0
    %v3826 = vadd.f32 %v333, %v3825
    %v3827 = vpop.f32.mrb[0].mxu0
    %v3828 = vadd.f32 %v337, %v3827
    %3829 = vdwg.mxu0
    %3830 = vmatprep.subr.mxu0 %v187
    %3831 = vmatpush1.msra.mxu0 %v186
    %3832 = vmatprep.subr.mxu0 %v191
    %3833 = vmatpush1.msra.mxu0 %v190
    %3834 = vmatprep.subr.mxu0 %v195
    %3835 = vmatpush1.msra.mxu0 %v194
    %3836 = vmatprep.subr.mxu0 %v199
    %3837 = vmatpush1.msra.mxu0 %v198
    %3838 = vmatprep.subr.mxu0 %v203
    %3839 = vmatpush1.msra.mxu0 %v202
    %3840 = vmatprep.subr.mxu0 %v207
    %3841 = vmatpush1.msra.mxu0 %v206
    %3842 = vmatprep.subr.mxu0 %v211
    %3843 = vmatpush1.msra.mxu0 %v210
    %3844 = vmatprep.subr.mxu0 %v215
    %3845 = vmatpush1.msra.mxu0 %v214
    %3846 = vmatprep.subr.mxu0 %v219
    %3847 = vmatpush1.msra.mxu0 %v218
    %3848 = vmatprep.subr.mxu0 %v223
    %3849 = vmatpush1.msra.mxu0 %v222
    %3850 = vmatprep.subr.mxu0 %v227
    %3851 = vmatpush1.msra.mxu0 %v226
    %3852 = vmatprep.subr.mxu0 %v231
    %3853 = vmatpush1.msra.mxu0 %v230
    %3854 = vmatprep.subr.mxu0 %v235
    %3855 = vmatpush1.msra.mxu0 %v234
    %3856 = vmatprep.subr.mxu0 %v239
    %3857 = vmatpush1.msra.mxu0 %v238
    %3858 = vmatprep.subr.mxu0 %v243
    %3859 = vmatpush1.msra.mxu0 %v242
    %3860 = vmatprep.subr.mxu0 %v247
    %3861 = vmatpush1.msra.mxu0 %v246
    %3862 = vmatprep.subr.mxu0 %v251
    %3863 = vmatpush1.msra.mxu0 %v250
    %3864 = vmatprep.subr.mxu0 %v255
    %3865 = vmatpush1.msra.mxu0 %v254
    %3866 = vmatprep.subr.mxu0 %v259
    %3867 = vmatpush1.msra.mxu0 %v258
    %3868 = vmatprep.subr.mxu0 %v263
    %3869 = vmatpush1.msra.mxu0 %v262
    %3870 = vmatprep.subr.mxu0 %v267
    %3871 = vmatpush1.msra.mxu0 %v266
    %3872 = vmatprep.subr.mxu0 %v271
    %3873 = vmatpush1.msra.mxu0 %v270
    %3874 = vmatprep.subr.mxu0 %v275
    %3875 = vmatpush1.msra.mxu0 %v274
    %3876 = vmatprep.subr.mxu0 %v279
    %3877 = vmatpush1.msra.mxu0 %v278
    %3878 = vmatprep.subr.mxu0 %v283
    %3879 = vmatpush1.msra.mxu0 %v282
    %3880 = vmatprep.subr.mxu0 %v287
    %3881 = vmatpush1.msra.mxu0 %v286
    %3882 = vmatprep.subr.mxu0 %v291
    %3883 = vmatpush1.msra.mxu0 %v290
    %3884 = vmatprep.subr.mxu0 %v295
    %3885 = vmatpush1.msra.mxu0 %v294
    %3886 = vmatprep.subr.mxu0 %v299
    %3887 = vmatpush1.msra.mxu0 %v298
    %3888 = vmatprep.subr.mxu0 %v303
    %3889 = vmatpush1.msra.mxu0 %v302
    %3890 = vmatprep.subr.mxu0 %v307
    %3891 = vmatpush1.msra.mxu0 %v306
    %3892 = vmatprep.subr.mxu0 %v311
    %3893 = vmatpush1.msra.mxu0 %v310
    %3894 = vmatprep.mubr.f32.mxu0 %v3758
    %3895 = vmatmul.mubr.f32.gmra.mrb[0].mxu0 %v3757
    %v3896 = vpop.f32.mrb[0].mxu0
    %v3897 = vadd.f32 %v341, %v3896
    %v3898 = vpop.f32.mrb[0].mxu0
    %v3899 = vadd.f32 %v345, %v3898
    %3900 = vdwg.mxu0
    %v3901 = vxor.u32 %v3826, 2147483648
    %v3902 = vmul.f32 %v3901, 1.442695
    %v3903 = vpow.pop %v3902
    %v3904 = vadd.f32 %v3903, 1.0
    %v3905 = vrcp.pop %v3904
    %v3906 = vmul.f32 1.0, %v3905
    %v3907 = vxor.u32 %v3828, 2147483648
    %v3908 = vmul.f32 %v3907, 1.442695
    %v3909 = vpow.pop %v3908
    %v3910 = vadd.f32 %v3909, 1.0
    %v3911 = vrcp.pop %v3910
    %v3912 = vmul.f32 1.0, %v3911
    %v3913 = vtanh.pop %v3897
    %v3914 = vxor.u32 %v3899, 2147483648
    %v3915 = vmul.f32 %v3914, 1.442695
    %v3916 = vpow.pop %v3915
    %v3917 = vadd.f32 %v3916, 1.0
    %v3918 = vrcp.pop %v3917
    %v3919 = vmul.f32 1.0, %v3918
    %v3920 = vmul.f32 %v3912, %v3651
    %v3921 = vmul.f32 %v3906, %v3913
    %v3922 = vadd.f32 %v3920, %v3921
    %v3923 = vtanh.pop %v3922
    %v3924 = vmul.f32 %v3919, %v3923
    %3925 = vmatprep.subr.mxu0 0.0
    %3926 = vmatpush1.msra.mxu0 %v312
    %3927 = vmatprep.subr.mxu0 0.0
    %3928 = vmatpush1.msra.mxu0 %v313
    %3929 = vmatprep.subr.mxu0 0.0
    %3930 = vmatpush1.msra.mxu0 %v314
    %3931 = vmatprep.subr.mxu0 0.0
    %3932 = vmatpush1.msra.mxu0 %v315
    %3933 = vmatprep.subr.mxu0 0.0
    %3934 = vmatpush1.msra.mxu0 %v316
    %3935 = vmatprep.subr.mxu0 0.0
    %3936 = vmatpush1.msra.mxu0 %v317
    %3937 = vmatprep.subr.mxu0 0.0
    %3938 = vmatpush1.msra.mxu0 %v318
    %3939 = vmatprep.subr.mxu0 0.0
    %3940 = vmatpush1.msra.mxu0 %v319
    %3941 = vmatprep.subr.mxu0 0.0
    %3942 = vmatpush1.msra.mxu0 %v320
    %3943 = vmatprep.subr.mxu0 0.0
    %3944 = vmatpush1.msra.mxu0 %v321
    %3945 = vmatprep.subr.mxu0 0.0
    %3946 = vmatpush1.msra.mxu0 %v322
    %3947 = vmatprep.subr.mxu0 0.0
    %3948 = vmatpush1.msra.mxu0 %v323
    %3949 = vmatprep.subr.mxu0 0.0
    %3950 = vmatpush1.msra.mxu0 %v324
    %3951 = vmatprep.subr.mxu0 0.0
    %3952 = vmatpush1.msra.mxu0 %v325
    %3953 = vmatprep.subr.mxu0 0.0
    %3954 = vmatpush1.msra.mxu0 %v326
    %3955 = vmatprep.subr.mxu0 0.0
    %3956 = vmatpush1.msra.mxu0 %v327
    %3957 = vmatprep.subr.mxu0 0.0
    %3958 = vmatpush1.msra.mxu0 0.0
    %3959 = vmatprep.subr.mxu0 0.0
    %3960 = vmatpush1.msra.mxu0 0.0
    %3961 = vmatprep.subr.mxu0 0.0
    %3962 = vmatpush1.msra.mxu0 0.0
    %3963 = vmatprep.subr.mxu0 0.0
    %3964 = vmatpush1.msra.mxu0 0.0
    %3965 = vmatprep.subr.mxu0 0.0
    %3966 = vmatpush1.msra.mxu0 0.0
    %3967 = vmatprep.subr.mxu0 0.0
    %3968 = vmatpush1.msra.mxu0 0.0
    %3969 = vmatprep.subr.mxu0 0.0
    %3970 = vmatpush1.msra.mxu0 0.0
    %3971 = vmatprep.subr.mxu0 0.0
    %3972 = vmatpush1.msra.mxu0 0.0
    %3973 = vmatprep.subr.mxu0 0.0
    %3974 = vmatpush1.msra.mxu0 0.0
    %3975 = vmatprep.subr.mxu0 0.0
    %3976 = vmatpush1.msra.mxu0 0.0
    %3977 = vmatprep.subr.mxu0 0.0
    %3978 = vmatpush1.msra.mxu0 0.0
    %3979 = vmatprep.subr.mxu0 0.0
    %3980 = vmatpush1.msra.mxu0 0.0
    %3981 = vmatprep.subr.mxu0 0.0
    %3982 = vmatpush1.msra.mxu0 0.0
    %3983 = vmatprep.subr.mxu0 0.0
    %3984 = vmatpush1.msra.mxu0 0.0
    %3985 = vmatprep.subr.mxu0 0.0
    %3986 = vmatpush1.msra.mxu0 0.0
    %3987 = vmatprep.subr.mxu0 0.0
    %3988 = vmatpush1.msra.mxu0 0.0
    %3989 = vmatprep.mubr.f32.mxu0 0.0
    %3990 = vmatmul.mubr.f32.gmra.mrb[0].mxu0 %v3924
    %v3991 = vpop.f32.mrb[0].mxu0
    %v3992 = vadd.f32 %v355, %v3991
    %v3993 = vpop.f32.mrb[0].mxu0
    %3994 = vdwg.mxu0
    %s3995 = scalar_lea.vmem [#allocation17], 56
    %3996 = vst [vmem:[%s3995] sm:$0xff] %v3992
    // Predicated region
    $region62: #{tpu_custom_call.1} parent=1 // pred_check
      _
    $region63: #{tpu_custom_call.1} parent=1 // pred_check_branch
      %3998 = sbr.rel (0) target = $region65
    $region64: #{tpu_custom_call.1} parent=1 // pred_region
      %s4000 = ssub.s32 1024, 1024
      %4001 = vsyncadd [#allocation8], %s4000
      %s4002 = sshll.u32 [#allocation17], 4
      %s4003 = int_to_ptr.vmem [resolvable:$true] %s4002
      %4008 = dma.vmem_to_hbm [thread:$0]  %s4003, 1024, %s10, [#allocation8], 128, 128, 8
    $region65: #{tpu_custom_call.1} parent=1 // pred_fallthru
      _
    // Predicated region
    $region66: #{tpu_custom_call.1} parent=1 // pred_check
      _
    $region67: #{tpu_custom_call.1} parent=1 // pred_check_branch
      %4010 = sbr.rel (0) target = $region69
    $region68: #{tpu_custom_call.1} parent=1 // pred_region
      %4011 = dma.done [#allocation8], 1024
    $region69: #{tpu_custom_call.1} parent=1 // pred_fallthru
      _
    %4012 = vsyncpa [#allocation7], 1
    %4013 = vsyncpa [#allocation10], 1
    %4014 = vsyncpa [#allocation13], 1
    %4015 = vsyncpa [#allocation16], 1
    %4016 = vsyncpa [#allocation8], 1

</llo_original>
